<compile_context>
chip_gen: v6e
topology: v6e:2x2x1
jax: 0.10.0
libtpu: 0.0.40
codegen_flags: <defaults>
</compile_context>

<pallas_src>
import functools

import jax
import jax.numpy as jnp
from jax import lax
from jax.experimental import pallas as pl
from jax.experimental.pallas import tpu as pltpu


def _convlstm_kernel(x_ref, h_ref, c_ref, w_ref, b_ref,
                     h_out_ref, c_out_ref, pad_ref,
                     *, H, W, K, Cin, hid, TH, NT, PAD0):
    """One grid step = one (batch element, row tile).

    x_ref:  (1, H*W, Cin)          bf16  full image (resident across row tiles)
    h_ref:  (1, H*W, hid)          bf16  full h_cur (resident across row tiles)
    c_ref:  (1, TH*W, hid)         f32   c_cur rows of this tile
    w_ref:  (K*K*(Cin+hid), 4*hid) bf16  tap-major im2col conv weights
    b_ref:  (1, 4*hid)             f32   conv bias
    h_out_ref: (1, TH*W, hid) bf16 ; c_out_ref: (1, TH*W, hid) f32
    pad_ref: (PAD0 + H*W + p*W + p, Cin+hid) bf16 merged zero-padded scratch
    """
    p = K // 2
    ctot = Cin + hid
    rows_t = TH * W
    t = pl.program_id(1)

    # Build the flat, zero-padded merged bf16 copy once per batch image
    # (t == 0).  Zero rows above/below the interior provide "same" padding.
    @pl.when(t == 0)
    def _():
        if PAD0 > 0:
            pad_ref[pl.ds(0, PAD0), :] = jnp.zeros((PAD0, ctot), pad_ref.dtype)
        if p > 0:
            pad_ref[pl.ds(PAD0 + H * W, p * W + p), :] = jnp.zeros(
                (p * W + p, ctot), pad_ref.dtype)
        pad_ref[pl.ds(PAD0, H * W), :] = jnp.concatenate(
            [x_ref[0], h_ref[0]], axis=-1).astype(pad_ref.dtype)

    if NT == 1:
        m0 = 0
    else:
        m0 = pl.multiple_of(t * rows_t, rows_t)

    # Horizontal-validity masks depend only on kx -> compute K-1 of them once
    # (flat-shift trick: taps with kx != p wrap to the adjacent image row and
    # must be zeroed where the source column falls outside the image).
    jj = lax.broadcasted_iota(jnp.int32, (rows_t, 1), 0) % W
    masks = {kx: (jj >= p - kx) & (jj < W + p - kx)
             for kx in range(K) if kx != p}

    # im2col slab: tap-major (ky, kx), [x-ch, h-ch] per tap -- exactly the
    # row order of w_hwio.reshape(K*K*ctot, 4*hid).
    base = PAD0 + m0
    pieces = []
    for ky in range(K):
        for kx in range(K):
            start = base + (ky - p) * W + (kx - p)
            piece = pad_ref[pl.ds(start, rows_t), :]        # (rows_t, ctot) bf16
            if kx != p:
                piece = jnp.where(masks[kx], piece, 0)
            pieces.append(piece)
    col = jnp.concatenate(pieces, axis=-1)                  # (rows_t, K*K*ctot)

    # Single deep MXU contraction over all taps; f32 accumulation, f32 gate
    # and elementwise math (v5e has no bf16 VPU/EUP).
    acc = jnp.dot(col, w_ref[...], preferred_element_type=jnp.float32)
    acc = acc + b_ref[...].astype(jnp.float32)              # (rows_t, 4*hid)

    # Gate order [i, f, o, g]; one sigmoid over the contiguous 3*hid slab.
    sig = jax.nn.sigmoid(acc[:, :3 * hid])
    g = jnp.tanh(acc[:, 3 * hid:])
    i_g = sig[:, 0 * hid:1 * hid]
    f_g = sig[:, 1 * hid:2 * hid]
    o_g = sig[:, 2 * hid:3 * hid]

    c_cur = c_ref[0].astype(jnp.float32)                    # (rows_t, hid)
    c_next = f_g * c_cur + i_g * g
    h_next = o_g * jnp.tanh(c_next)

    h_out_ref[...] = h_next[None].astype(h_out_ref.dtype)   # bf16
    c_out_ref[...] = c_next[None].astype(c_out_ref.dtype)   # f32


def _round_up(x, m):
    return (x + m - 1) // m * m


def _pick_row_tile(H, W, ctot, hid, K):
    """Row-tile height TH: divides H, (TH*W) % 8 == 0 (or TH == H), and the
    per-step temporaries (im2col slab + f32 accumulator/gates) fit a
    conservative per-generation VMEM budget (works on v7x's 64 MiB)."""
    bf16b, f32b = 2, 4
    per_px = K * K * ctot * bf16b + 8 * 4 * hid * f32b + 3 * hid * f32b
    try:
        cap = pltpu.get_tpu_info().vmem_capacity_bytes
        budget = max(4 * 1024 * 1024, min(cap // 6, 16 * 1024 * 1024))
    except Exception:
        budget = 8 * 1024 * 1024
    max_th = max(1, budget // max(1, per_px * W))
    best = None
    smallest_valid = None
    for th in range(1, H + 1):
        if H % th != 0:
            continue
        if (th * W) % 8 != 0 and th != H:
            continue
        if smallest_valid is None:
            smallest_valid = th
        if th <= max_th:
            best = th
    if best is None:
        best = smallest_valid if smallest_valid is not None else H
    return best


def convlstm_cell_pallas(x_nhwc, h_cur, c_cur, w_hwio, bias, *, kernel_size):
    """One ConvLSTMCell step. x_nhwc: (B,H,W,Cin); h_cur/c_cur: (B,H,W,hid)."""
    B, H, W, Cin = x_nhwc.shape
    hid = h_cur.shape[-1]
    K = kernel_size
    assert K % 2 == 1, "padding=K//2 preserves HxW only for odd kernel sizes"
    p = K // 2
    ctot = Cin + hid
    TH = _pick_row_tile(H, W, ctot, hid, K)
    NT = H // TH
    rows_t = TH * W
    pad0 = _round_up(p * W + p, 16)               # top zero rows (aligned)
    pad_rows = pad0 + H * W + p * W + p           # total flat padded rows

    # Free row-major re-views + bf16 MXU operands.  In a time loop the x cast
    # and the weight reshape/cast should be hoisted out of the per-step call
    # (h_next is already produced in bf16 by this kernel).
    x2 = x_nhwc.reshape(B, H * W, Cin).astype(jnp.bfloat16)
    h2 = h_cur.reshape(B, H * W, hid).astype(jnp.bfloat16)
    c2 = c_cur.reshape(B, H * W, hid).astype(jnp.float32)
    w_flat = w_hwio.reshape(K * K * ctot, 4 * hid).astype(jnp.bfloat16)
    b2 = bias.reshape(1, 4 * hid).astype(jnp.float32)

    kernel = functools.partial(_convlstm_kernel, H=H, W=W, K=K, Cin=Cin,
                               hid=hid, TH=TH, NT=NT, PAD0=pad0)

    # VMEM footprint: double-buffered blocks + merged padded scratch + im2col
    # slab + f32 accumulator / gate temporaries (rough, x1.5 headroom).
    # Cap at 48 MiB: leaves headroom below v7x's 64 MiB physical VMEM.
    f32b, bf16b = 4, 2
    blocks = (H * W * Cin * bf16b + H * W * hid * bf16b
              + rows_t * hid * f32b
              + rows_t * hid * (bf16b + f32b)
              + K * K * ctot * 4 * hid * bf16b + 4 * hid * f32b)
    est = 2 * blocks
    est += pad_rows * max(ctot, 128) * bf16b
    est += rows_t * K * K * ctot * bf16b
    est += 4 * rows_t * 4 * hid * f32b
    vmem_limit = min(48 * 1024 * 1024, max(32 * 1024 * 1024, (est * 3) // 2))

    grid_spec = pltpu.PrefetchScalarGridSpec(
        num_scalar_prefetch=0,
        grid=(B, NT),
        in_specs=[
            pl.BlockSpec((1, H * W, Cin), lambda b, t: (b, 0, 0)),   # x (resident)
            pl.BlockSpec((1, H * W, hid), lambda b, t: (b, 0, 0)),   # h_cur (resident)
            pl.BlockSpec((1, rows_t, hid), lambda b, t: (b, t, 0)),  # c_cur tile
            pl.BlockSpec((K * K * ctot, 4 * hid), lambda b, t: (0, 0)),
            pl.BlockSpec((1, 4 * hid), lambda b, t: (0, 0)),
        ],
        out_specs=(
            pl.BlockSpec((1, rows_t, hid), lambda b, t: (b, t, 0)),  # h_next bf16
            pl.BlockSpec((1, rows_t, hid), lambda b, t: (b, t, 0)),  # c_next f32
        ),
        scratch_shapes=[
            pltpu.VMEM((pad_rows, ctot), jnp.bfloat16),   # merged x|h padded copy
        ],
    )

    h_next, c_next = pl.pallas_call(
        kernel,
        out_shape=(jax.ShapeDtypeStruct((B, H * W, hid), jnp.bfloat16),
                   jax.ShapeDtypeStruct((B, H * W, hid), jnp.float32)),
        grid_spec=grid_spec,
        compiler_params=pltpu.CompilerParams(
            dimension_semantics=("parallel", "arbitrary"),
            vmem_limit_bytes=int(vmem_limit)),
    )(x2, h2, c2, w_flat, b2)

    return h_next.reshape(B, H, W, hid), c_next.reshape(B, H, W, hid)


def convlstm_cell_ref(x_nhwc, h_cur, c_cur, w_hwio, bias):
    """Pure-JAX reference (lax.conv), matching PyTorch semantics in NHWC."""
    combined = jnp.concatenate([x_nhwc, h_cur], axis=-1)
    conv = lax.conv_general_dilated(
        combined, w_hwio, window_strides=(1, 1), padding="SAME",
        dimension_numbers=("NHWC", "HWIO", "NHWC")) + bias
    cc_i, cc_f, cc_o, cc_g = jnp.split(conv, 4, axis=-1)
    i = jax.nn.sigmoid(cc_i)
    f = jax.nn.sigmoid(cc_f)
    o = jax.nn.sigmoid(cc_o)
    g = jnp.tanh(cc_g)
    c_next = f * c_cur + i * g
    h_next = o * jnp.tanh(c_next)
    return h_next, c_next


if __name__ == "__main__":
    # Shapes consistent with ConvLSTMCell(input_dim=4, hidden_dim=32, kernel_size=3)
    B, Cin, H, W = 2, 4, 16, 16
    hid, K = 32, 3
    cin_total = Cin + hid

    key = jax.random.PRNGKey(0)
    kx, kh, kc, kw, kb = jax.random.split(key, 5)

    x = jax.random.normal(kx, (B, H, W, Cin), dtype=jnp.float32)
    h0 = jax.random.normal(kh, (B, H, W, hid), dtype=jnp.float32) * 0.1
    c0 = jax.random.normal(kc, (B, H, W, hid), dtype=jnp.float32) * 0.1
    w = jax.random.normal(kw, (K, K, cin_total, 4 * hid), dtype=jnp.float32) * 0.05
    b = jax.random.normal(kb, (4 * hid,), dtype=jnp.float32) * 0.05

    h_next, c_next = convlstm_cell_pallas(x, h0, c0, w, b, kernel_size=K)
    jax.block_until_ready((h_next, c_next))

    h_ref, c_ref = convlstm_cell_ref(x, h0, c0, w, b)
    assert h_next.shape == (B, H, W, hid) and c_next.shape == (B, H, W, hid)
    # Tolerances: MXU operands are bf16 and h_next is stored in bf16
    # (accumulation and gate math stay f32; c carry stays f32).
    assert jnp.allclose(h_next.astype(jnp.float32), h_ref, atol=2e-2, rtol=2e-2)
    assert jnp.allclose(c_next, c_ref, atol=2e-2, rtol=2e-2)

    print("KERNEL_OK")
</pallas_src>

<mosaic_0001>
module attributes {stable_mosaic.version = 11 : i64} {
  func.func @_convlstm_kernel(%arg0: i32, %arg1: i32, %arg2: memref<1x256x4xbf16, #tpu.memory_space<vmem>>, %arg3: memref<1x256x32xbf16, #tpu.memory_space<vmem>>, %arg4: memref<1x256x32xf32, #tpu.memory_space<vmem>>, %arg5: memref<324x128xbf16, #tpu.memory_space<vmem>>, %arg6: memref<1x128xf32, #tpu.memory_space<vmem>>, %arg7: memref<1x256x32xbf16, #tpu.memory_space<vmem>>, %arg8: memref<1x256x32xf32, #tpu.memory_space<vmem>>, %arg9: memref<305x36xbf16, #tpu.memory_space<vmem>>) attributes {dimension_semantics = [#tpu.dimension_semantics<parallel>, #tpu.dimension_semantics<arbitrary>], iteration_bounds = array<i64: 2, 1>, scalar_prefetch = 0 : i64, scratch_operands = 1 : i64, tpu.core_type = #tpu.core_type<tc>, window_params = [{transform_indices = @transform_0, window_bounds = array<i64: 1, 256, 4>}, {transform_indices = @transform_1, window_bounds = array<i64: 1, 256, 32>}, {transform_indices = @transform_2, window_bounds = array<i64: 1, 256, 32>}, {pipeline_mode = #tpu.pipeline_mode<synchronous>, transform_indices = @transform_3, window_bounds = array<i64: 324, 128>}, {pipeline_mode = #tpu.pipeline_mode<synchronous>, transform_indices = @transform_4, window_bounds = array<i64: 1, 128>}, {transform_indices = @transform_5, window_bounds = array<i64: 1, 256, 32>}, {transform_indices = @transform_6, window_bounds = array<i64: 1, 256, 32>}]} {
    %c0_i32 = arith.constant 0 : i32
    %0 = arith.cmpi eq, %arg1, %c0_i32 : i32
    %1 = arith.extui %0 : i1 to i32
    %c0_i32_0 = arith.constant 0 : i32
    %2 = arith.cmpi ne, %1, %c0_i32_0 : i32
    scf.if %2 {
      %cst_34 = arith.constant 0.000000e+00 : bf16
      %98 = vector.broadcast %cst_34 : bf16 to vector<32x36xbf16>
      %c0_35 = arith.constant 0 : index
      %c0_36 = arith.constant 0 : index
      %99 = vector.load %arg9[%c0_35, %c0_36] : memref<305x36xbf16, #tpu.memory_space<vmem>>, vector<32x36xbf16>
      tpu.vector_store %arg9[%c0_35, %c0_36], %98 {strides = array<i32>} : memref<305x36xbf16, #tpu.memory_space<vmem>>, vector<32x36xbf16>,
      %cst_37 = arith.constant 0.000000e+00 : bf16
      %100 = vector.broadcast %cst_37 : bf16 to vector<17x36xbf16>
      %c288 = arith.constant 288 : index
      %c0_38 = arith.constant 0 : index
      %101 = vector.load %arg9[%c288, %c0_38] : memref<305x36xbf16, #tpu.memory_space<vmem>>, vector<17x36xbf16>
      tpu.vector_store %arg9[%c288, %c0_38], %100 {strides = array<i32>} : memref<305x36xbf16, #tpu.memory_space<vmem>>, vector<17x36xbf16>,
      %c0_39 = arith.constant 0 : index
      %c0_40 = arith.constant 0 : index
      %c0_41 = arith.constant 0 : index
      %102 = vector.load %arg2[%c0_39, %c0_40, %c0_41] : memref<1x256x4xbf16, #tpu.memory_space<vmem>>, vector<1x256x4xbf16>
      %103 = vector.shape_cast %102 : vector<1x256x4xbf16> to vector<256x4xbf16>
      %c0_42 = arith.constant 0 : index
      %c0_43 = arith.constant 0 : index
      %c0_44 = arith.constant 0 : index
      %104 = vector.load %arg3[%c0_42, %c0_43, %c0_44] : memref<1x256x32xbf16, #tpu.memory_space<vmem>>, vector<1x256x32xbf16>
      %105 = vector.shape_cast %104 : vector<1x256x32xbf16> to vector<256x32xbf16>
      %106 = tpu.concatenate %103, %105 in 1 : vector<256x4xbf16>, vector<256x32xbf16> -> vector<256x36xbf16>
      %c32_45 = arith.constant 32 : index
      %c0_46 = arith.constant 0 : index
      %107 = vector.load %arg9[%c32_45, %c0_46] : memref<305x36xbf16, #tpu.memory_space<vmem>>, vector<256x36xbf16>
      tpu.vector_store %arg9[%c32_45, %c0_46], %106 {strides = array<i32>} : memref<305x36xbf16, #tpu.memory_space<vmem>>, vector<256x36xbf16>,
    } else {
    }
    %3 = tpu.iota {dimensions = array<i32: 0>} : vector<256x1xi32>
    %c16_i32 = arith.constant 16 : i32
    %c0_i32_1 = arith.constant 0 : i32
    %4 = arith.cmpi eq, %c16_i32, %c0_i32_1 : i32
    %c1_i32 = arith.constant 1 : i32
    %5 = arith.select %4, %c1_i32, %c16_i32 : i32
    %6 = vector.broadcast %5 : i32 to vector<256x1xi32>
    %7 = arith.remsi %3, %6 : vector<256x1xi32>
    %c0_i32_2 = arith.constant 0 : i32
    %8 = vector.broadcast %c0_i32_2 : i32 to vector<256x1xi32>
    %9 = arith.cmpi ne, %7, %8 : vector<256x1xi32>
    %c0_i32_3 = arith.constant 0 : i32
    %10 = vector.broadcast %c0_i32_3 : i32 to vector<256x1xi32>
    %11 = arith.cmpi slt, %7, %10 : vector<256x1xi32>
    %c0_i32_4 = arith.constant 0 : i32
    %12 = arith.cmpi slt, %5, %c0_i32_4 : i32
    %13 = vector.broadcast %12 : i1 to vector<256x1xi1>
    %14 = vector.broadcast %13 : vector<256x1xi1> to vector<256x1xi1>
    %15 = arith.xori %11, %14 : vector<256x1xi1>
    %16 = arith.andi %15, %9 : vector<256x1xi1>
    %17 = vector.broadcast %5 : i32 to vector<256x1xi32>
    %18 = arith.addi %7, %17 : vector<256x1xi32>
    %19 = arith.select %16, %18, %7 : vector<256x1xi1>, vector<256x1xi32>
    %c1_i32_5 = arith.constant 1 : i32
    %20 = vector.broadcast %c1_i32_5 : i32 to vector<256x1xi32>
    %21 = arith.cmpi sge, %19, %20 : vector<256x1xi32>
    %c17_i32 = arith.constant 17 : i32
    %22 = vector.broadcast %c17_i32 : i32 to vector<256x1xi32>
    %23 = arith.cmpi slt, %19, %22 : vector<256x1xi32>
    %24 = arith.andi %21, %23 : vector<256x1xi1>
    %c-1_i32 = arith.constant -1 : i32
    %25 = vector.broadcast %c-1_i32 : i32 to vector<256x1xi32>
    %26 = arith.cmpi sge, %19, %25 : vector<256x1xi32>
    %c15_i32 = arith.constant 15 : i32
    %27 = vector.broadcast %c15_i32 : i32 to vector<256x1xi32>
    %28 = arith.cmpi slt, %19, %27 : vector<256x1xi32>
    %29 = arith.andi %26, %28 : vector<256x1xi1>
    %c15 = arith.constant 15 : index
    %c0 = arith.constant 0 : index
    %30 = vector.load %arg9[%c15, %c0] : memref<305x36xbf16, #tpu.memory_space<vmem>>, vector<256x36xbf16>
    %c0_i32_6 = arith.constant 0 : i32
    %31 = arith.sitofp %c0_i32_6 : i32 to bf16
    %32 = vector.shape_cast %24 : vector<256x1xi1> to vector<256x1xi1>
    %33 = vector.broadcast %32 : vector<256x1xi1> to vector<256x36xi1>
    %34 = vector.broadcast %31 : bf16 to vector<256x36xbf16>
    %35 = arith.select %33, %30, %34 : vector<256x36xi1>, vector<256x36xbf16>
    %c16 = arith.constant 16 : index
    %c0_7 = arith.constant 0 : index
    %36 = vector.load %arg9[%c16, %c0_7] : memref<305x36xbf16, #tpu.memory_space<vmem>>, vector<256x36xbf16>
    %c17 = arith.constant 17 : index
    %c0_8 = arith.constant 0 : index
    %37 = vector.load %arg9[%c17, %c0_8] : memref<305x36xbf16, #tpu.memory_space<vmem>>, vector<256x36xbf16>
    %c0_i32_9 = arith.constant 0 : i32
    %38 = arith.sitofp %c0_i32_9 : i32 to bf16
    %39 = vector.shape_cast %29 : vector<256x1xi1> to vector<256x1xi1>
    %40 = vector.broadcast %39 : vector<256x1xi1> to vector<256x36xi1>
    %41 = vector.broadcast %38 : bf16 to vector<256x36xbf16>
    %42 = arith.select %40, %37, %41 : vector<256x36xi1>, vector<256x36xbf16>
    %c31 = arith.constant 31 : index
    %c0_10 = arith.constant 0 : index
    %43 = vector.load %arg9[%c31, %c0_10] : memref<305x36xbf16, #tpu.memory_space<vmem>>, vector<256x36xbf16>
    %c0_i32_11 = arith.constant 0 : i32
    %44 = arith.sitofp %c0_i32_11 : i32 to bf16
    %45 = vector.shape_cast %24 : vector<256x1xi1> to vector<256x1xi1>
    %46 = vector.broadcast %45 : vector<256x1xi1> to vector<256x36xi1>
    %47 = vector.broadcast %44 : bf16 to vector<256x36xbf16>
    %48 = arith.select %46, %43, %47 : vector<256x36xi1>, vector<256x36xbf16>
    %c32 = arith.constant 32 : index
    %c0_12 = arith.constant 0 : index
    %49 = vector.load %arg9[%c32, %c0_12] : memref<305x36xbf16, #tpu.memory_space<vmem>>, vector<256x36xbf16>
    %c33 = arith.constant 33 : index
    %c0_13 = arith.constant 0 : index
    %50 = vector.load %arg9[%c33, %c0_13] : memref<305x36xbf16, #tpu.memory_space<vmem>>, vector<256x36xbf16>
    %c0_i32_14 = arith.constant 0 : i32
    %51 = arith.sitofp %c0_i32_14 : i32 to bf16
    %52 = vector.shape_cast %29 : vector<256x1xi1> to vector<256x1xi1>
    %53 = vector.broadcast %52 : vector<256x1xi1> to vector<256x36xi1>
    %54 = vector.broadcast %51 : bf16 to vector<256x36xbf16>
    %55 = arith.select %53, %50, %54 : vector<256x36xi1>, vector<256x36xbf16>
    %c47 = arith.constant 47 : index
    %c0_15 = arith.constant 0 : index
    %56 = vector.load %arg9[%c47, %c0_15] : memref<305x36xbf16, #tpu.memory_space<vmem>>, vector<256x36xbf16>
    %c0_i32_16 = arith.constant 0 : i32
    %57 = arith.sitofp %c0_i32_16 : i32 to bf16
    %58 = vector.shape_cast %24 : vector<256x1xi1> to vector<256x1xi1>
    %59 = vector.broadcast %58 : vector<256x1xi1> to vector<256x36xi1>
    %60 = vector.broadcast %57 : bf16 to vector<256x36xbf16>
    %61 = arith.select %59, %56, %60 : vector<256x36xi1>, vector<256x36xbf16>
    %c48 = arith.constant 48 : index
    %c0_17 = arith.constant 0 : index
    %62 = vector.load %arg9[%c48, %c0_17] : memref<305x36xbf16, #tpu.memory_space<vmem>>, vector<256x36xbf16>
    %c49 = arith.constant 49 : index
    %c0_18 = arith.constant 0 : index
    %63 = vector.load %arg9[%c49, %c0_18] : memref<305x36xbf16, #tpu.memory_space<vmem>>, vector<256x36xbf16>
    %c0_i32_19 = arith.constant 0 : i32
    %64 = arith.sitofp %c0_i32_19 : i32 to bf16
    %65 = vector.shape_cast %29 : vector<256x1xi1> to vector<256x1xi1>
    %66 = vector.broadcast %65 : vector<256x1xi1> to vector<256x36xi1>
    %67 = vector.broadcast %64 : bf16 to vector<256x36xbf16>
    %68 = arith.select %66, %63, %67 : vector<256x36xi1>, vector<256x36xbf16>
    %69 = tpu.concatenate %35, %36, %42, %48, %49, %55, %61, %62, %68 in 1 : vector<256x36xbf16>, vector<256x36xbf16>, vector<256x36xbf16>, vector<256x36xbf16>, vector<256x36xbf16>, vector<256x36xbf16>, vector<256x36xbf16>, vector<256x36xbf16>, vector<256x36xbf16> -> vector<256x324xbf16>
    %c0_20 = arith.constant 0 : index
    %c0_21 = arith.constant 0 : index
    %70 = vector.load %arg5[%c0_20, %c0_21] : memref<324x128xbf16, #tpu.memory_space<vmem>>, vector<324x128xbf16>
    %cst = arith.constant dense<0.000000e+00> : vector<256x128xf32>
    %71 = tpu.matmul %69, %70, %cst {dimension_numbers = #tpu.dot_dimension_numbers<[1], [0], [0], [1], [0, 0, 1, 1], [], []>} : vector<256x324xbf16>, vector<324x128xbf16>, vector<256x128xf32> -> vector<256x128xf32>
    %c0_22 = arith.constant 0 : index
    %c0_23 = arith.constant 0 : index
    %72 = vector.load %arg6[%c0_22, %c0_23] : memref<1x128xf32, #tpu.memory_space<vmem>>, vector<1x128xf32>
    %73 = vector.broadcast %72 : vector<1x128xf32> to vector<256x128xf32>
    %74 = arith.addf %71, %73 : vector<256x128xf32>
    %75 = vector.extract_strided_slice %74 {offsets = [0, 0], sizes = [256, 96], strides = [1, 1]} : vector<256x128xf32> to vector<256x96xf32>
    %76 = arith.negf %75 : vector<256x96xf32>
    %77 = math.exp %76 : vector<256x96xf32>
    %cst_24 = arith.constant 1.000000e+00 : f32
    %78 = vector.broadcast %cst_24 : f32 to vector<256x96xf32>
    %79 = arith.addf %78, %77 : vector<256x96xf32>
    %80 = arith.divf %78, %79 : vector<256x96xf32>
    %81 = vector.extract_strided_slice %74 {offsets = [0, 96], sizes = [256, 32], strides = [1, 1]} : vector<256x128xf32> to vector<256x32xf32>
    %82 = math.tanh %81 : vector<256x32xf32>
    %83 = vector.extract_strided_slice %80 {offsets = [0, 0], sizes = [256, 32], strides = [1, 1]} : vector<256x96xf32> to vector<256x32xf32>
    %84 = vector.extract_strided_slice %80 {offsets = [0, 32], sizes = [256, 32], strides = [1, 1]} : vector<256x96xf32> to vector<256x32xf32>
    %85 = vector.extract_strided_slice %80 {offsets = [0, 64], sizes = [256, 32], strides = [1, 1]} : vector<256x96xf32> to vector<256x32xf32>
    %c0_25 = arith.constant 0 : index
    %c0_26 = arith.constant 0 : index
    %c0_27 = arith.constant 0 : index
    %86 = vector.load %arg4[%c0_25, %c0_26, %c0_27] : memref<1x256x32xf32, #tpu.memory_space<vmem>>, vector<1x256x32xf32>
    %87 = vector.shape_cast %86 : vector<1x256x32xf32> to vector<256x32xf32>
    %88 = arith.mulf %84, %87 : vector<256x32xf32>
    %89 = arith.mulf %83, %82 : vector<256x32xf32>
    %90 = arith.addf %88, %89 : vector<256x32xf32>
    %91 = math.tanh %90 : vector<256x32xf32>
    %92 = arith.mulf %85, %91 : vector<256x32xf32>
    %93 = vector.shape_cast %92 : vector<256x32xf32> to vector<1x256x32xf32>
    %94 = arith.truncf %93 : vector<1x256x32xf32> to vector<1x256x32xbf16>
    %c0_28 = arith.constant 0 : index
    %c0_29 = arith.constant 0 : index
    %c0_30 = arith.constant 0 : index
    %95 = vector.load %arg7[%c0_28, %c0_29, %c0_30] : memref<1x256x32xbf16, #tpu.memory_space<vmem>>, vector<1x256x32xbf16>
    tpu.vector_store %arg7[%c0_28, %c0_29, %c0_30], %94 {strides = array<i32>} : memref<1x256x32xbf16, #tpu.memory_space<vmem>>, vector<1x256x32xbf16>,
    %96 = vector.shape_cast %90 : vector<256x32xf32> to vector<1x256x32xf32>
    %c0_31 = arith.constant 0 : index
    %c0_32 = arith.constant 0 : index
    %c0_33 = arith.constant 0 : index
    %97 = vector.load %arg8[%c0_31, %c0_32, %c0_33] : memref<1x256x32xf32, #tpu.memory_space<vmem>>, vector<1x256x32xf32>
    tpu.vector_store %arg8[%c0_31, %c0_32, %c0_33], %96 {strides = array<i32>} : memref<1x256x32xf32, #tpu.memory_space<vmem>>, vector<1x256x32xf32>,
    return
  }
  func.func @transform_0(%arg0: i32, %arg1: i32) -> (i32, i32, i32) {
    %c0_i32 = arith.constant 0 : i32
    %c0_i32_0 = arith.constant 0 : i32
    %c0_i32_1 = arith.constant 0 : i32
    return %arg0, %c0_i32, %c0_i32_0 : i32, i32, i32
  }
  func.func @transform_1(%arg0: i32, %arg1: i32) -> (i32, i32, i32) {
    %c0_i32 = arith.constant 0 : i32
    %c0_i32_0 = arith.constant 0 : i32
    %c0_i32_1 = arith.constant 0 : i32
    return %arg0, %c0_i32, %c0_i32_0 : i32, i32, i32
  }
  func.func @transform_2(%arg0: i32, %arg1: i32) -> (i32, i32, i32) {
    %c0_i32 = arith.constant 0 : i32
    %c0_i32_0 = arith.constant 0 : i32
    return %arg0, %arg1, %c0_i32 : i32, i32, i32
  }
  func.func @transform_3(%arg0: i32, %arg1: i32) -> (i32, i32) {
    %c0_i32 = arith.constant 0 : i32
    %c0_i32_0 = arith.constant 0 : i32
    %c0_i32_1 = arith.constant 0 : i32
    return %c0_i32, %c0_i32_0 : i32, i32
  }
  func.func @transform_4(%arg0: i32, %arg1: i32) -> (i32, i32) {
    %c0_i32 = arith.constant 0 : i32
    %c0_i32_0 = arith.constant 0 : i32
    %c0_i32_1 = arith.constant 0 : i32
    return %c0_i32, %c0_i32_0 : i32, i32
  }
  func.func @transform_5(%arg0: i32, %arg1: i32) -> (i32, i32, i32) {
    %c0_i32 = arith.constant 0 : i32
    %c0_i32_0 = arith.constant 0 : i32
    return %arg0, %arg1, %c0_i32 : i32, i32, i32
  }
  func.func @transform_6(%arg0: i32, %arg1: i32) -> (i32, i32, i32) {
    %c0_i32 = arith.constant 0 : i32
    %c0_i32_0 = arith.constant 0 : i32
    return %arg0, %arg1, %c0_i32 : i32, i32, i32
  }
}

</mosaic_0001>

<llo_original>
// kernel: tpu_custom_call.1
$region0: #{tpu_custom_call.1}
  #allocation0 [shape = 'u32[]', space=smem, size = 0x4, offset = 0x4, fixed_abs, tag = 'smem constant byte address 0x4 - core index']
  #allocation1 [shape = 'u32[144,128]{1,0:T(1,128)}', space=vmem, size = 0x12000, scoped, tag = 'internal scratch']
  #allocation2 [shape = 'bf16[305,36]{1,0:T(8,128)(2,1)}', space=vmem, size = 0x13800, scoped, tag = 'scratch operand']
  %s0 = inlined_call_operand.vmem [shape: bf16[2,256,4], index: 0, kind: input, shape index: {}]
  %s1 = inlined_call_operand.vmem [shape: bf16[2,256,32], index: 1, kind: input, shape index: {}]
  %s2 = inlined_call_operand.vmem [shape: f32[2,256,32], index: 2, kind: input, shape index: {}]
  %s3 = inlined_call_operand.vmem [shape: bf16[324,128], index: 3, kind: input, shape index: {}]
  %s4 = inlined_call_operand.vmem [shape: f32[1,128], index: 4, kind: input, shape index: {}]
  %s5 = inlined_call_operand.vmem [shape: bf16[2,256,32], index: 5, kind: output, shape index: {0}]
  %s6 = inlined_call_operand.vmem [shape: f32[2,256,32], index: 6, kind: output, shape index: {1}]
  %7 = xla_tuple %s5, %s6
  %s8 = sld [smem:[#allocation0]]
  $region65: #{tpu_custom_call.1} parent=0
    _
  %s10 = ssub.s32 1, %s8
  %s11 = scalar_select 0, %s10, %s8
  loop: start=0, step=1, limit=4
  $region2: #{tpu_custom_call.1} parent=0 // loop_pre_header
    _
  $region3: #{tpu_custom_call.1} parent=0 // loop_header
    %s13 = sphi 0, %s17
    %p14 = scmp.ge.s32.totalorder %s13, 4
    %s20 = sphi 0, %s32
    %s21 = sphi 0, %s28
    %s22 = sphi 0, %s20
    %s23 = sphi 0, %s21
    %s24 = sphi 0, %s22
    %s25 = sphi 0, %s23
    %s35 = sphi 0, %s37
    %s38 = sphi 0, %s35
    %s39 = sphi 0, %s38
    %s55 = sphi 0, %s39
    %s61 = sphi 0, %s63
    %s64 = sphi 0, %s61
    %s65 = sphi 0, %s64
    %s81 = sphi 0, %s65
    %s89 = sphi 0, %s91
    %s92 = sphi 0, %s89
    %s93 = sphi 0, %s92
    %s109 = sphi 0, %s93
    %s113 = sphi 0, %s113
    %s115 = sphi 0, %s113
    %s116 = sphi 0, %s115
    %s130 = sphi 0, %s116
    %s134 = sphi 0, %s134
    %s136 = sphi 0, %s134
    %s137 = sphi 0, %s136
    %s151 = sphi 0, %s137
    %s159 = sphi 0, %s161
    %s162 = sphi 0, %s159
    %s163 = sphi 0, %s162
    %s179 = sphi 0, %s163
    %s187 = sphi 0, %s189
    %s190 = sphi 0, %s187
    %s191 = sphi 0, %s190
    %s207 = sphi 0, %s191
  $region4: #{tpu_custom_call.1} parent=0 // loop_header_branch
    %16 = sbr.rel (%p14) target = $region8
  $region5: #{tpu_custom_call.1} parent=0 // loop_body
    %s18 = ssub.s32 %s13, 1
    %s19 = ssub.s32 %s13, 2
    %s26 = sadd.s32 1, %s21
    %p27 = scmp.ge.s32.totalorder %s26, 1
    %s28 = scalar_select %p27, 0, %s26
    %s29 = sadd.s32 1, %s20
    %s30 = scalar_select %p27, %s29, %s20
    %p31 = scmp.ge.s32.totalorder %s30, 2
    %s32 = scalar_select %p31, 0, %s30
    %s33 = ssub.s32 %s20, %s32
    %p34 = scmp.eq.s32.totalorder %s33, 0
    %s36 = sadd.s32 %s35, 1
    %s37 = scalar_select %p34, %s35, %s36
    %p40 = pneg %p34
    %p41 = scmp.eq.s32.totalorder %s13, 1
    %p42 = por %p40, %p41
    %p43 = scmp.ne.s32.totalorder %s35, %s38
    %p44 = scmp.eq.s32.totalorder %s13, 0
    %p45 = por %p43, %p44
    %p46 = scmp.ne.s32.totalorder %s35, %s38
    %p47 = scmp.eq.s32.totalorder %s18, 1
    %p48 = por %p46, %p47
    %p49 = scmp.ne.s32.totalorder %s38, %s39
    %p50 = scmp.eq.s32.totalorder %s18, 0
    %p51 = por %p49, %p50
    %p52 = scmp.ne.s32.totalorder %s38, %s39
    %p53 = scmp.eq.s32.totalorder %s19, 1
    %p54 = por %p52, %p53
    %p56 = scmp.ne.s32.totalorder %s39, %s55
    %p57 = scmp.eq.s32.totalorder %s19, 0
    %p58 = por %p56, %p57
    %s59 = ssub.s32 %s20, %s32
    %p60 = scmp.eq.s32.totalorder %s59, 0
    %s62 = sadd.s32 %s61, 1
    %s63 = scalar_select %p60, %s61, %s62
    %p66 = pneg %p60
    %p67 = scmp.eq.s32.totalorder %s13, 1
    %p68 = por %p66, %p67
    %p69 = scmp.ne.s32.totalorder %s61, %s64
    %p70 = scmp.eq.s32.totalorder %s13, 0
    %p71 = por %p69, %p70
    %p72 = scmp.ne.s32.totalorder %s61, %s64
    %p73 = scmp.eq.s32.totalorder %s18, 1
    %p74 = por %p72, %p73
    %p75 = scmp.ne.s32.totalorder %s64, %s65
    %p76 = scmp.eq.s32.totalorder %s18, 0
    %p77 = por %p75, %p76
    %p78 = scmp.ne.s32.totalorder %s64, %s65
    %p79 = scmp.eq.s32.totalorder %s19, 1
    %p80 = por %p78, %p79
    %p82 = scmp.ne.s32.totalorder %s65, %s81
    %p83 = scmp.eq.s32.totalorder %s19, 0
    %p84 = por %p82, %p83
    %s85 = ssub.s32 %s20, %s32
    %s86 = ssub.s32 %s21, %s28
    %s87 = sor.u32 %s85, %s86
    %p88 = scmp.eq.s32.totalorder %s87, 0
    %s90 = sadd.s32 %s89, 1
    %s91 = scalar_select %p88, %s89, %s90
    %p94 = pneg %p88
    %p95 = scmp.eq.s32.totalorder %s13, 1
    %p96 = por %p94, %p95
    %p97 = scmp.ne.s32.totalorder %s89, %s92
    %p98 = scmp.eq.s32.totalorder %s13, 0
    %p99 = por %p97, %p98
    %p100 = scmp.ne.s32.totalorder %s89, %s92
    %p101 = scmp.eq.s32.totalorder %s18, 1
    %p102 = por %p100, %p101
    %p103 = scmp.ne.s32.totalorder %s92, %s93
    %p104 = scmp.eq.s32.totalorder %s18, 0
    %p105 = por %p103, %p104
    %p106 = scmp.ne.s32.totalorder %s92, %s93
    %p107 = scmp.eq.s32.totalorder %s19, 1
    %p108 = por %p106, %p107
    %p110 = scmp.ne.s32.totalorder %s93, %s109
    %p111 = scmp.eq.s32.totalorder %s19, 0
    %p112 = por %p110, %p111
    %s114 = sadd.s32 %s113, 1
    %p117 = scmp.eq.s32.totalorder %s13, 1
    %p118 = scmp.ne.s32.totalorder %s113, %s115
    %p119 = scmp.eq.s32.totalorder %s13, 0
    %p120 = por %p118, %p119
    %p121 = scmp.ne.s32.totalorder %s113, %s115
    %p122 = scmp.eq.s32.totalorder %s18, 1
    %p123 = por %p121, %p122
    %p124 = scmp.ne.s32.totalorder %s115, %s116
    %p125 = scmp.eq.s32.totalorder %s18, 0
    %p126 = por %p124, %p125
    %p127 = scmp.ne.s32.totalorder %s115, %s116
    %p128 = scmp.eq.s32.totalorder %s19, 1
    %p129 = por %p127, %p128
    %p131 = scmp.ne.s32.totalorder %s116, %s130
    %p132 = scmp.eq.s32.totalorder %s19, 0
    %p133 = por %p131, %p132
    %s135 = sadd.s32 %s134, 1
    %p138 = scmp.eq.s32.totalorder %s13, 1
    %p139 = scmp.ne.s32.totalorder %s134, %s136
    %p140 = scmp.eq.s32.totalorder %s13, 0
    %p141 = por %p139, %p140
    %p142 = scmp.ne.s32.totalorder %s134, %s136
    %p143 = scmp.eq.s32.totalorder %s18, 1
    %p144 = por %p142, %p143
    %p145 = scmp.ne.s32.totalorder %s136, %s137
    %p146 = scmp.eq.s32.totalorder %s18, 0
    %p147 = por %p145, %p146
    %p148 = scmp.ne.s32.totalorder %s136, %s137
    %p149 = scmp.eq.s32.totalorder %s19, 1
    %p150 = por %p148, %p149
    %p152 = scmp.ne.s32.totalorder %s137, %s151
    %p153 = scmp.eq.s32.totalorder %s19, 0
    %p154 = por %p152, %p153
    %s155 = ssub.s32 %s20, %s32
    %s156 = ssub.s32 %s21, %s28
    %s157 = sor.u32 %s155, %s156
    %p158 = scmp.eq.s32.totalorder %s157, 0
    %s160 = sadd.s32 %s159, 1
    %s161 = scalar_select %p158, %s159, %s160
    %p164 = pneg %p158
    %p165 = scmp.eq.s32.totalorder %s13, 1
    %p166 = por %p164, %p165
    %p167 = scmp.ne.s32.totalorder %s159, %s162
    %p168 = scmp.eq.s32.totalorder %s13, 0
    %p169 = por %p167, %p168
    %p170 = scmp.ne.s32.totalorder %s159, %s162
    %p171 = scmp.eq.s32.totalorder %s18, 1
    %p172 = por %p170, %p171
    %p173 = scmp.ne.s32.totalorder %s162, %s163
    %p174 = scmp.eq.s32.totalorder %s18, 0
    %p175 = por %p173, %p174
    %p176 = scmp.ne.s32.totalorder %s162, %s163
    %p177 = scmp.eq.s32.totalorder %s19, 1
    %p178 = por %p176, %p177
    %p180 = scmp.ne.s32.totalorder %s163, %s179
    %p181 = scmp.eq.s32.totalorder %s19, 0
    %p182 = por %p180, %p181
    %s183 = ssub.s32 %s20, %s32
    %s184 = ssub.s32 %s21, %s28
    %s185 = sor.u32 %s183, %s184
    %p186 = scmp.eq.s32.totalorder %s185, 0
    %s188 = sadd.s32 %s187, 1
    %s189 = scalar_select %p186, %s187, %s188
    %p192 = pneg %p186
    %p193 = scmp.eq.s32.totalorder %s13, 1
    %p194 = por %p192, %p193
    %p195 = scmp.ne.s32.totalorder %s187, %s190
    %p196 = scmp.eq.s32.totalorder %s13, 0
    %p197 = por %p195, %p196
    %p198 = scmp.ne.s32.totalorder %s187, %s190
    %p199 = scmp.eq.s32.totalorder %s18, 1
    %p200 = por %p198, %p199
    %p201 = scmp.ne.s32.totalorder %s190, %s191
    %p202 = scmp.eq.s32.totalorder %s18, 0
    %p203 = por %p201, %p202
    %p204 = scmp.ne.s32.totalorder %s190, %s191
    %p205 = scmp.eq.s32.totalorder %s19, 1
    %p206 = por %p204, %p205
    %p208 = scmp.ne.s32.totalorder %s191, %s207
    %p209 = scmp.eq.s32.totalorder %s19, 0
    %p210 = por %p208, %p209
    %p211 = scmp.le.s32.totalorder 1, %s13
    %p212 = scmp.lt.s32.totalorder %s13, 3
    %p213 = pnand %p211, %p212
    %p214 = pneg %p213
    // Predicated region
    $region9: #{tpu_custom_call.1} parent=5 // pred_check
      _
    $region10: #{tpu_custom_call.1} parent=5 // pred_check_branch
      %216 = sbr.rel (%p213) target = $region12
    $region11: #{tpu_custom_call.1} parent=5 // pred_region
      %s217 = ssub.s32 %s13, 1
      // Predicated region
      $region13: #{tpu_custom_call.1} parent=11 // pred_check
        %p218 = pneg %p126
      $region14: #{tpu_custom_call.1} parent=11 // pred_check_branch
        %220 = sbr.rel (%p218) target = $region16
      $region15: #{tpu_custom_call.1} parent=11 // pred_region
        _
      $region16: #{tpu_custom_call.1} parent=11 // pred_fallthru
        _
      // Predicated region
      $region17: #{tpu_custom_call.1} parent=11 // pred_check
        %p221 = pneg %p147
      $region18: #{tpu_custom_call.1} parent=11 // pred_check_branch
        %223 = sbr.rel (%p221) target = $region20
      $region19: #{tpu_custom_call.1} parent=11 // pred_region
        _
      $region20: #{tpu_custom_call.1} parent=11 // pred_fallthru
        _
    $region12: #{tpu_custom_call.1} parent=5 // pred_fallthru
      _
    %p224 = scmp.lt.s32.totalorder %s13, 2
    // Predicated region
    $region21: #{tpu_custom_call.1} parent=5 // pred_check
      %p225 = pneg %p224
    $region22: #{tpu_custom_call.1} parent=5 // pred_check_branch
      %227 = sbr.rel (%p225) target = $region24
    $region23: #{tpu_custom_call.1} parent=5 // pred_region
      // Predicated region
      $region25: #{tpu_custom_call.1} parent=23 // pred_check
        %p228 = pneg %p45
      $region26: #{tpu_custom_call.1} parent=23 // pred_check_branch
        %230 = sbr.rel (%p228) target = $region28
      $region27: #{tpu_custom_call.1} parent=23 // pred_region
        %p231 = scmp.lt.s32.totalorder %s20, 1
        %s232 = scalar_select %p231, %s20, 1
        %s233 = smul.addr %s232, 32
        %s234 = smul.addr %s233, 4
        %s235 = scalar_lea.vmem %s0, %s234
      $region28: #{tpu_custom_call.1} parent=23 // pred_fallthru
        _
      // Predicated region
      $region29: #{tpu_custom_call.1} parent=23 // pred_check
        %p236 = pneg %p71
      $region30: #{tpu_custom_call.1} parent=23 // pred_check_branch
        %238 = sbr.rel (%p236) target = $region32
      $region31: #{tpu_custom_call.1} parent=23 // pred_region
        %p239 = scmp.lt.s32.totalorder %s20, 1
        %s240 = scalar_select %p239, %s20, 1
        %s241 = smul.addr %s240, 32
        %s242 = smul.addr %s241, 4
        %s243 = scalar_lea.vmem %s1, %s242
      $region32: #{tpu_custom_call.1} parent=23 // pred_fallthru
        _
      // Predicated region
      $region33: #{tpu_custom_call.1} parent=23 // pred_check
        %p244 = pneg %p99
      $region34: #{tpu_custom_call.1} parent=23 // pred_check_branch
        %246 = sbr.rel (%p244) target = $region36
      $region35: #{tpu_custom_call.1} parent=23 // pred_region
        %s247 = smul.u32 32, %s21
        %p248 = scmp.lt.s32.totalorder %s20, 1
        %s249 = scalar_select %p248, %s20, 1
        %p250 = scmp.lt.s32.totalorder %s247, 31
        %s251 = scalar_select %p250, %s247, 31
        %s252 = smul.addr %s249, 32
        %s253 = sadd.s32 %s251, %s252
        %s254 = smul.addr %s253, 8
        %s255 = scalar_lea.vmem %s2, %s254
        %s256 = smul.u32 32, %s21
      $region36: #{tpu_custom_call.1} parent=23 // pred_fallthru
        _
    $region24: #{tpu_custom_call.1} parent=5 // pred_fallthru
      _
    %p257 = scmp.le.s32.totalorder 1, %s13
    %p258 = scmp.lt.s32.totalorder %s13, 3
    %p259 = pnand %p257, %p258
    %p260 = pneg %p259
    // Predicated region
    $region37: #{tpu_custom_call.1} parent=5 // pred_check
      _
    $region38: #{tpu_custom_call.1} parent=5 // pred_check_branch
      %262 = sbr.rel (%p259) target = $region40
    $region39: #{tpu_custom_call.1} parent=5 // pred_region
      %s263 = ssub.s32 %s13, 1
      %p264 = scmp.lt.s32.totalorder %s22, 1
      %s265 = scalar_select %p264, %s22, 1
      %s266 = smul.addr %s265, 32
      %s267 = smul.addr %s266, 4
      %s268 = scalar_lea.vmem %s0, %s267
      %p269 = pneg %p51
      %p270 = pneg %p48
      %p271 = scmp.lt.s32.totalorder %s22, 1
      %s272 = scalar_select %p271, %s22, 1
      %s273 = smul.addr %s272, 32
      %s274 = smul.addr %s273, 4
      %s275 = scalar_lea.vmem %s1, %s274
      %p276 = pneg %p77
      %p277 = pneg %p74
      %s278 = smul.u32 32, %s23
      %p279 = scmp.lt.s32.totalorder %s22, 1
      %s280 = scalar_select %p279, %s22, 1
      %p281 = scmp.lt.s32.totalorder %s278, 31
      %s282 = scalar_select %p281, %s278, 31
      %s283 = smul.addr %s280, 32
      %s284 = sadd.s32 %s282, %s283
      %s285 = smul.addr %s284, 8
      %s286 = scalar_lea.vmem %s2, %s285
      %p287 = pneg %p105
      %p288 = pneg %p102
      %p289 = pneg %p126
      %p290 = pneg %p123
      %p291 = pneg %p147
      %p292 = pneg %p144
      %p293 = pneg %p175
      %p294 = pneg %p172
      %s295 = smul.u32 32, %s23
      %p296 = scmp.lt.s32.totalorder %s22, 1
      %s297 = scalar_select %p296, %s22, 1
      %p298 = scmp.lt.s32.totalorder %s295, 31
      %s299 = scalar_select %p298, %s295, 31
      %s300 = smul.addr %s297, 32
      %s301 = sadd.s32 %s299, %s300
      %s302 = smul.addr %s301, 4
      %s303 = scalar_lea.vmem %s5, %s302
      %p304 = pneg %p203
      %p305 = pneg %p200
      %s306 = smul.u32 32, %s23
      %p307 = scmp.lt.s32.totalorder %s22, 1
      %s308 = scalar_select %p307, %s22, 1
      %p309 = scmp.lt.s32.totalorder %s306, 31
      %s310 = scalar_select %p309, %s306, 31
      %s311 = smul.addr %s308, 32
      %s312 = sadd.s32 %s310, %s311
      %s313 = smul.addr %s312, 8
      %s314 = scalar_lea.vmem %s6, %s313
      %p315 = scmp.lt.s32.totalorder %s22, 1
      %s316 = scalar_select %p315, %s22, 1
      %s317 = smul.addr %s316, 32
      %s318 = smul.addr %s317, 4
      %s319 = scalar_lea.vmem %s0, %s318
      %p320 = scmp.lt.s32.totalorder %s22, 1
      %s321 = scalar_select %p320, %s22, 1
      %s322 = smul.addr %s321, 32
      %s323 = smul.addr %s322, 4
      %s324 = scalar_lea.vmem %s1, %s323
      %s325 = smul.u32 32, %s23
      %p326 = scmp.lt.s32.totalorder %s22, 1
      %s327 = scalar_select %p326, %s22, 1
      %p328 = scmp.lt.s32.totalorder %s325, 31
      %s329 = scalar_select %p328, %s325, 31
      %s330 = smul.addr %s327, 32
      %s331 = sadd.s32 %s329, %s330
      %s332 = smul.addr %s331, 8
      %s333 = scalar_lea.vmem %s2, %s332
      %s334 = smul.u32 32, %s23
      %s335 = smul.u32 32, %s23
      %p336 = scmp.lt.s32.totalorder %s22, 1
      %s337 = scalar_select %p336, %s22, 1
      %p338 = scmp.lt.s32.totalorder %s335, 31
      %s339 = scalar_select %p338, %s335, 31
      %s340 = smul.addr %s337, 32
      %s341 = sadd.s32 %s339, %s340
      %s342 = smul.addr %s341, 4
      %s343 = scalar_lea.vmem %s5, %s342
      %s344 = smul.u32 32, %s23
      %s345 = smul.u32 32, %s23
      %p346 = scmp.lt.s32.totalorder %s22, 1
      %s347 = scalar_select %p346, %s22, 1
      %p348 = scmp.lt.s32.totalorder %s345, 31
      %s349 = scalar_select %p348, %s345, 31
      %s350 = smul.addr %s347, 32
      %s351 = sadd.s32 %s349, %s350
      %s352 = smul.addr %s351, 8
      %s353 = scalar_lea.vmem %s6, %s352
      %s354 = smul.u32 32, %s23
      %p358 = scmp.eq.s32.totalorder %s23, 0
      // Predicated region
      $region41: #{tpu_custom_call.1} parent=39 // pred_check
        %p359 = pneg %p358
      $region42: #{tpu_custom_call.1} parent=39 // pred_check_branch
        %361 = sbr.rel (%p359) target = $region44
      $region43: #{tpu_custom_call.1} parent=39 // pred_region
        %vm362 = vcmask 289792
        %363 = vst.msk [vmem:[#allocation2] sm:$0xf] %vm362, 0
        %364 = vst.msk [vmem:[#allocation2 + $0x4] sm:$0xf] %vm362, 0
        %365 = vst.msk [vmem:[#allocation2 + $0x8] sm:$0xf] %vm362, 0
        %366 = vst.msk [vmem:[#allocation2 + $0xc] sm:$0xf] %vm362, 0
        %367 = vst.msk [vmem:[#allocation2 + $0x90] sm:$0xf] %vm362, 0
        %368 = vst.msk [vmem:[#allocation2 + $0x94] sm:$0xf] %vm362, 0
        %vm369 = vcmask 286720
        %vm370 = vsmask.f32 256
        %vm371 = vmand %vm369, %vm370
        %v372 = vld [vmem:[#allocation2 + $0x98] sm:$0x1]
        %v373 = vsel %vm371, 0, %v372
        %374 = vst [vmem:[#allocation2 + $0x98] sm:$0x1] %v373
        %v375 = vld [vmem:[%s319] sm:$0xf]
        %v376 = vld [vmem:[%s319 + $0x4] sm:$0xf]
        %v377 = vld [vmem:[%s319 + $0x8] sm:$0xf]
        %v378 = vld [vmem:[%s319 + $0xc] sm:$0xf]
        %v379 = vld [vmem:[%s319 + $0x10] sm:$0xf]
        %v380 = vld [vmem:[%s319 + $0x14] sm:$0xf]
        %v381 = vld [vmem:[%s319 + $0x18] sm:$0xf]
        %v382 = vld [vmem:[%s319 + $0x1c] sm:$0xf]
        %v383 = vld [vmem:[%s319 + $0x20] sm:$0xf]
        %v384 = vld [vmem:[%s319 + $0x24] sm:$0xf]
        %v385 = vld [vmem:[%s319 + $0x28] sm:$0xf]
        %v386 = vld [vmem:[%s319 + $0x2c] sm:$0xf]
        %v387 = vld [vmem:[%s319 + $0x30] sm:$0xf]
        %v388 = vld [vmem:[%s319 + $0x34] sm:$0xf]
        %v389 = vld [vmem:[%s319 + $0x38] sm:$0xf]
        %v390 = vld [vmem:[%s319 + $0x3c] sm:$0xf]
        %v391 = vld [vmem:[%s319 + $0x40] sm:$0xf]
        %v392 = vld [vmem:[%s319 + $0x44] sm:$0xf]
        %v393 = vld [vmem:[%s319 + $0x48] sm:$0xf]
        %v394 = vld [vmem:[%s319 + $0x4c] sm:$0xf]
        %v395 = vld [vmem:[%s319 + $0x50] sm:$0xf]
        %v396 = vld [vmem:[%s319 + $0x54] sm:$0xf]
        %v397 = vld [vmem:[%s319 + $0x58] sm:$0xf]
        %v398 = vld [vmem:[%s319 + $0x5c] sm:$0xf]
        %v399 = vld [vmem:[%s319 + $0x60] sm:$0xf]
        %v400 = vld [vmem:[%s319 + $0x64] sm:$0xf]
        %v401 = vld [vmem:[%s319 + $0x68] sm:$0xf]
        %v402 = vld [vmem:[%s319 + $0x6c] sm:$0xf]
        %v403 = vld [vmem:[%s319 + $0x70] sm:$0xf]
        %v404 = vld [vmem:[%s319 + $0x74] sm:$0xf]
        %v405 = vld [vmem:[%s319 + $0x78] sm:$0xf]
        %v406 = vld [vmem:[%s319 + $0x7c] sm:$0xf]
        %v407 = vld [vmem:[%s324] sm:$0xf]
        %v408 = vld [vmem:[%s324 + $0x4] sm:$0xf]
        %v409 = vld [vmem:[%s324 + $0x8] sm:$0xf]
        %v410 = vld [vmem:[%s324 + $0xc] sm:$0xf]
        %v411 = vld [vmem:[%s324 + $0x10] sm:$0xf]
        %v412 = vld [vmem:[%s324 + $0x14] sm:$0xf]
        %v413 = vld [vmem:[%s324 + $0x18] sm:$0xf]
        %v414 = vld [vmem:[%s324 + $0x1c] sm:$0xf]
        %v415 = vld [vmem:[%s324 + $0x20] sm:$0xf]
        %v416 = vld [vmem:[%s324 + $0x24] sm:$0xf]
        %v417 = vld [vmem:[%s324 + $0x28] sm:$0xf]
        %v418 = vld [vmem:[%s324 + $0x2c] sm:$0xf]
        %v419 = vld [vmem:[%s324 + $0x30] sm:$0xf]
        %v420 = vld [vmem:[%s324 + $0x34] sm:$0xf]
        %v421 = vld [vmem:[%s324 + $0x38] sm:$0xf]
        %v422 = vld [vmem:[%s324 + $0x3c] sm:$0xf]
        %v423 = vld [vmem:[%s324 + $0x40] sm:$0xf]
        %v424 = vld [vmem:[%s324 + $0x44] sm:$0xf]
        %v425 = vld [vmem:[%s324 + $0x48] sm:$0xf]
        %v426 = vld [vmem:[%s324 + $0x4c] sm:$0xf]
        %v427 = vld [vmem:[%s324 + $0x50] sm:$0xf]
        %v428 = vld [vmem:[%s324 + $0x54] sm:$0xf]
        %v429 = vld [vmem:[%s324 + $0x58] sm:$0xf]
        %v430 = vld [vmem:[%s324 + $0x5c] sm:$0xf]
        %v431 = vld [vmem:[%s324 + $0x60] sm:$0xf]
        %v432 = vld [vmem:[%s324 + $0x64] sm:$0xf]
        %v433 = vld [vmem:[%s324 + $0x68] sm:$0xf]
        %v434 = vld [vmem:[%s324 + $0x6c] sm:$0xf]
        %v435 = vld [vmem:[%s324 + $0x70] sm:$0xf]
        %v436 = vld [vmem:[%s324 + $0x74] sm:$0xf]
        %v437 = vld [vmem:[%s324 + $0x78] sm:$0xf]
        %v438 = vld [vmem:[%s324 + $0x7c] sm:$0xf]
        %v471 = vunpack.c.l.b16 %v375
        %v472 = vunpack.c.l.b16 %v376
        %v473 = vunpack.c.l.b16 %v377
        %v474 = vunpack.c.l.b16 %v378
        %v475 = vunpack.c.l.b16 %v379
        %v476 = vunpack.c.l.b16 %v380
        %v477 = vunpack.c.l.b16 %v381
        %v478 = vunpack.c.l.b16 %v382
        %v479 = vunpack.c.l.b16 %v383
        %v480 = vunpack.c.l.b16 %v384
        %v481 = vunpack.c.l.b16 %v385
        %v482 = vunpack.c.l.b16 %v386
        %v483 = vunpack.c.l.b16 %v387
        %v484 = vunpack.c.l.b16 %v388
        %v485 = vunpack.c.l.b16 %v389
        %v486 = vunpack.c.l.b16 %v390
        %v487 = vunpack.c.l.b16 %v391
        %v488 = vunpack.c.l.b16 %v392
        %v489 = vunpack.c.l.b16 %v393
        %v490 = vunpack.c.l.b16 %v394
        %v491 = vunpack.c.l.b16 %v395
        %v492 = vunpack.c.l.b16 %v396
        %v493 = vunpack.c.l.b16 %v397
        %v494 = vunpack.c.l.b16 %v398
        %v495 = vunpack.c.l.b16 %v399
        %v496 = vunpack.c.l.b16 %v400
        %v497 = vunpack.c.l.b16 %v401
        %v498 = vunpack.c.l.b16 %v402
        %v499 = vunpack.c.l.b16 %v403
        %v500 = vunpack.c.l.b16 %v404
        %v501 = vunpack.c.l.b16 %v405
        %v502 = vunpack.c.l.b16 %v406
        %v503 = vpack.c.b16 %v472, %v471
        %v504 = vpack.c.b16 %v474, %v473
        %v505 = vpack.c.b16 %v476, %v475
        %v506 = vpack.c.b16 %v478, %v477
        %v507 = vpack.c.b16 %v480, %v479
        %v508 = vpack.c.b16 %v482, %v481
        %v509 = vpack.c.b16 %v484, %v483
        %v510 = vpack.c.b16 %v486, %v485
        %v511 = vpack.c.b16 %v488, %v487
        %v512 = vpack.c.b16 %v490, %v489
        %v513 = vpack.c.b16 %v492, %v491
        %v514 = vpack.c.b16 %v494, %v493
        %v515 = vpack.c.b16 %v496, %v495
        %v516 = vpack.c.b16 %v498, %v497
        %v517 = vpack.c.b16 %v500, %v499
        %v518 = vpack.c.b16 %v502, %v501
        %v551 = vunpack.c.l.b16 %v407
        %v552 = vunpack.c.l.b16 %v408
        %v553 = vunpack.c.l.b16 %v409
        %v554 = vunpack.c.l.b16 %v410
        %v555 = vunpack.c.l.b16 %v411
        %v556 = vunpack.c.l.b16 %v412
        %v557 = vunpack.c.l.b16 %v413
        %v558 = vunpack.c.l.b16 %v414
        %v559 = vunpack.c.l.b16 %v415
        %v560 = vunpack.c.l.b16 %v416
        %v561 = vunpack.c.l.b16 %v417
        %v562 = vunpack.c.l.b16 %v418
        %v563 = vunpack.c.l.b16 %v419
        %v564 = vunpack.c.l.b16 %v420
        %v565 = vunpack.c.l.b16 %v421
        %v566 = vunpack.c.l.b16 %v422
        %v567 = vunpack.c.l.b16 %v423
        %v568 = vunpack.c.l.b16 %v424
        %v569 = vunpack.c.l.b16 %v425
        %v570 = vunpack.c.l.b16 %v426
        %v571 = vunpack.c.l.b16 %v427
        %v572 = vunpack.c.l.b16 %v428
        %v573 = vunpack.c.l.b16 %v429
        %v574 = vunpack.c.l.b16 %v430
        %v575 = vunpack.c.l.b16 %v431
        %v576 = vunpack.c.l.b16 %v432
        %v577 = vunpack.c.l.b16 %v433
        %v578 = vunpack.c.l.b16 %v434
        %v579 = vunpack.c.l.b16 %v435
        %v580 = vunpack.c.l.b16 %v436
        %v581 = vunpack.c.l.b16 %v437
        %v582 = vunpack.c.l.b16 %v438
        %v583 = vpack.c.b16 %v552, %v551
        %v584 = vpack.c.b16 %v554, %v553
        %v585 = vpack.c.b16 %v556, %v555
        %v586 = vpack.c.b16 %v558, %v557
        %v587 = vpack.c.b16 %v560, %v559
        %v588 = vpack.c.b16 %v562, %v561
        %v589 = vpack.c.b16 %v564, %v563
        %v590 = vpack.c.b16 %v566, %v565
        %v591 = vpack.c.b16 %v568, %v567
        %v592 = vpack.c.b16 %v570, %v569
        %v593 = vpack.c.b16 %v572, %v571
        %v594 = vpack.c.b16 %v574, %v573
        %v595 = vpack.c.b16 %v576, %v575
        %v596 = vpack.c.b16 %v578, %v577
        %v597 = vpack.c.b16 %v580, %v579
        %v598 = vpack.c.b16 %v582, %v581
        %599 = vrot.lane.b32.xlu0 %v583, 4
        %v600 = vpop.permute.xlu0 %599
        %601 = vrot.lane.b32.xlu0 %v584, 4
        %v602 = vpop.permute.xlu0 %601
        %603 = vrot.lane.b32.xlu0 %v585, 4
        %v604 = vpop.permute.xlu0 %603
        %605 = vrot.lane.b32.xlu0 %v586, 4
        %v606 = vpop.permute.xlu0 %605
        %607 = vrot.lane.b32.xlu0 %v587, 4
        %v608 = vpop.permute.xlu0 %607
        %609 = vrot.lane.b32.xlu0 %v588, 4
        %v610 = vpop.permute.xlu0 %609
        %611 = vrot.lane.b32.xlu0 %v589, 4
        %v612 = vpop.permute.xlu0 %611
        %613 = vrot.lane.b32.xlu0 %v590, 4
        %v614 = vpop.permute.xlu0 %613
        %615 = vrot.lane.b32.xlu0 %v591, 4
        %v616 = vpop.permute.xlu0 %615
        %617 = vrot.lane.b32.xlu0 %v592, 4
        %v618 = vpop.permute.xlu0 %617
        %619 = vrot.lane.b32.xlu0 %v593, 4
        %v620 = vpop.permute.xlu0 %619
        %621 = vrot.lane.b32.xlu0 %v594, 4
        %v622 = vpop.permute.xlu0 %621
        %623 = vrot.lane.b32.xlu0 %v595, 4
        %v624 = vpop.permute.xlu0 %623
        %625 = vrot.lane.b32.xlu0 %v596, 4
        %v626 = vpop.permute.xlu0 %625
        %627 = vrot.lane.b32.xlu0 %v597, 4
        %v628 = vpop.permute.xlu0 %627
        %629 = vrot.lane.b32.xlu0 %v598, 4
        %v630 = vpop.permute.xlu0 %629
        %vm631 = vcmask 31744
        %v634 = vsel %vm631, %v503, %v600
        %v637 = vsel %vm631, %v504, %v602
        %v640 = vsel %vm631, %v505, %v604
        %v643 = vsel %vm631, %v506, %v606
        %v646 = vsel %vm631, %v507, %v608
        %v649 = vsel %vm631, %v508, %v610
        %v652 = vsel %vm631, %v509, %v612
        %v655 = vsel %vm631, %v510, %v614
        %v658 = vsel %vm631, %v511, %v616
        %v661 = vsel %vm631, %v512, %v618
        %v664 = vsel %vm631, %v513, %v620
        %v667 = vsel %vm631, %v514, %v622
        %v670 = vsel %vm631, %v515, %v624
        %v673 = vsel %vm631, %v516, %v626
        %v676 = vsel %vm631, %v517, %v628
        %v679 = vsel %vm631, %v518, %v630
        %v696 = vunpack.c.l.b16 %v634
        %v697 = vunpack.c.h.b16 %v634
        %v698 = vunpack.c.l.b16 %v637
        %v699 = vunpack.c.h.b16 %v637
        %v700 = vunpack.c.l.b16 %v640
        %v701 = vunpack.c.h.b16 %v640
        %v702 = vunpack.c.l.b16 %v643
        %v703 = vunpack.c.h.b16 %v643
        %v704 = vunpack.c.l.b16 %v646
        %v705 = vunpack.c.h.b16 %v646
        %v706 = vunpack.c.l.b16 %v649
        %v707 = vunpack.c.h.b16 %v649
        %v708 = vunpack.c.l.b16 %v652
        %v709 = vunpack.c.h.b16 %v652
        %v710 = vunpack.c.l.b16 %v655
        %v711 = vunpack.c.h.b16 %v655
        %v712 = vunpack.c.l.b16 %v658
        %v713 = vunpack.c.h.b16 %v658
        %v714 = vunpack.c.l.b16 %v661
        %v715 = vunpack.c.h.b16 %v661
        %v716 = vunpack.c.l.b16 %v664
        %v717 = vunpack.c.h.b16 %v664
        %v718 = vunpack.c.l.b16 %v667
        %v719 = vunpack.c.h.b16 %v667
        %v720 = vunpack.c.l.b16 %v670
        %v721 = vunpack.c.h.b16 %v670
        %v722 = vunpack.c.l.b16 %v673
        %v723 = vunpack.c.h.b16 %v673
        %v724 = vunpack.c.l.b16 %v676
        %v725 = vunpack.c.h.b16 %v676
        %v726 = vunpack.c.l.b16 %v679
        %v727 = vunpack.c.h.b16 %v679
        %v728 = vpack.c.b16 %v696, %v696
        %v729 = vpack.c.b16 %v697, %v697
        %v730 = vpack.c.b16 %v698, %v698
        %v731 = vpack.c.b16 %v699, %v699
        %v732 = vpack.c.b16 %v700, %v700
        %v733 = vpack.c.b16 %v701, %v701
        %v734 = vpack.c.b16 %v702, %v702
        %v735 = vpack.c.b16 %v703, %v703
        %v736 = vpack.c.b16 %v704, %v704
        %v737 = vpack.c.b16 %v705, %v705
        %v738 = vpack.c.b16 %v706, %v706
        %v739 = vpack.c.b16 %v707, %v707
        %v740 = vpack.c.b16 %v708, %v708
        %v741 = vpack.c.b16 %v709, %v709
        %v742 = vpack.c.b16 %v710, %v710
        %v743 = vpack.c.b16 %v711, %v711
        %v744 = vpack.c.b16 %v712, %v712
        %v745 = vpack.c.b16 %v713, %v713
        %v746 = vpack.c.b16 %v714, %v714
        %v747 = vpack.c.b16 %v715, %v715
        %v748 = vpack.c.b16 %v716, %v716
        %v749 = vpack.c.b16 %v717, %v717
        %v750 = vpack.c.b16 %v718, %v718
        %v751 = vpack.c.b16 %v719, %v719
        %v752 = vpack.c.b16 %v720, %v720
        %v753 = vpack.c.b16 %v721, %v721
        %v754 = vpack.c.b16 %v722, %v722
        %v755 = vpack.c.b16 %v723, %v723
        %v756 = vpack.c.b16 %v724, %v724
        %v757 = vpack.c.b16 %v725, %v725
        %v758 = vpack.c.b16 %v726, %v726
        %v759 = vpack.c.b16 %v727, %v727
        %792 = vst.msk [vmem:[#allocation2 + $0x10] sm:$0xf] %vm362, %v728
        %793 = vst.msk [vmem:[#allocation2 + $0x14] sm:$0xf] %vm362, %v729
        %794 = vst.msk [vmem:[#allocation2 + $0x18] sm:$0xf] %vm362, %v730
        %795 = vst.msk [vmem:[#allocation2 + $0x1c] sm:$0xf] %vm362, %v731
        %796 = vst.msk [vmem:[#allocation2 + $0x20] sm:$0xf] %vm362, %v732
        %797 = vst.msk [vmem:[#allocation2 + $0x24] sm:$0xf] %vm362, %v733
        %798 = vst.msk [vmem:[#allocation2 + $0x28] sm:$0xf] %vm362, %v734
        %799 = vst.msk [vmem:[#allocation2 + $0x2c] sm:$0xf] %vm362, %v735
        %800 = vst.msk [vmem:[#allocation2 + $0x30] sm:$0xf] %vm362, %v736
        %801 = vst.msk [vmem:[#allocation2 + $0x34] sm:$0xf] %vm362, %v737
        %802 = vst.msk [vmem:[#allocation2 + $0x38] sm:$0xf] %vm362, %v738
        %803 = vst.msk [vmem:[#allocation2 + $0x3c] sm:$0xf] %vm362, %v739
        %804 = vst.msk [vmem:[#allocation2 + $0x40] sm:$0xf] %vm362, %v740
        %805 = vst.msk [vmem:[#allocation2 + $0x44] sm:$0xf] %vm362, %v741
        %806 = vst.msk [vmem:[#allocation2 + $0x48] sm:$0xf] %vm362, %v742
        %807 = vst.msk [vmem:[#allocation2 + $0x4c] sm:$0xf] %vm362, %v743
        %808 = vst.msk [vmem:[#allocation2 + $0x50] sm:$0xf] %vm362, %v744
        %809 = vst.msk [vmem:[#allocation2 + $0x54] sm:$0xf] %vm362, %v745
        %810 = vst.msk [vmem:[#allocation2 + $0x58] sm:$0xf] %vm362, %v746
        %811 = vst.msk [vmem:[#allocation2 + $0x5c] sm:$0xf] %vm362, %v747
        %812 = vst.msk [vmem:[#allocation2 + $0x60] sm:$0xf] %vm362, %v748
        %813 = vst.msk [vmem:[#allocation2 + $0x64] sm:$0xf] %vm362, %v749
        %814 = vst.msk [vmem:[#allocation2 + $0x68] sm:$0xf] %vm362, %v750
        %815 = vst.msk [vmem:[#allocation2 + $0x6c] sm:$0xf] %vm362, %v751
        %816 = vst.msk [vmem:[#allocation2 + $0x70] sm:$0xf] %vm362, %v752
        %817 = vst.msk [vmem:[#allocation2 + $0x74] sm:$0xf] %vm362, %v753
        %818 = vst.msk [vmem:[#allocation2 + $0x78] sm:$0xf] %vm362, %v754
        %819 = vst.msk [vmem:[#allocation2 + $0x7c] sm:$0xf] %vm362, %v755
        %820 = vst.msk [vmem:[#allocation2 + $0x80] sm:$0xf] %vm362, %v756
        %821 = vst.msk [vmem:[#allocation2 + $0x84] sm:$0xf] %vm362, %v757
        %822 = vst.msk [vmem:[#allocation2 + $0x88] sm:$0xf] %vm362, %v758
        %823 = vst.msk [vmem:[#allocation2 + $0x8c] sm:$0xf] %vm362, %v759
      $region44: #{tpu_custom_call.1} parent=39 // pred_fallthru
        _
      %v824 = vlaneseq
      %v825 = vshrl.u32 %v824, 7
      %v826 = vadd.s32 %v825, 8
      %v827 = vadd.s32 %v825, 16
      %v828 = vadd.s32 %v825, 24
      %v829 = vadd.s32 %v825, 32
      %v830 = vadd.s32 %v825, 40
      %v831 = vadd.s32 %v825, 48
      %v832 = vadd.s32 %v825, 56
      %v833 = vadd.s32 %v825, 64
      %v834 = vadd.s32 %v825, 72
      %v835 = vadd.s32 %v825, 80
      %v836 = vadd.s32 %v825, 88
      %v837 = vadd.s32 %v825, 96
      %v838 = vadd.s32 %v825, 104
      %v839 = vadd.s32 %v825, 112
      %v840 = vadd.s32 %v825, 120
      %v841 = vadd.s32 %v825, 128
      %v842 = vadd.s32 %v825, 136
      %v843 = vadd.s32 %v825, 144
      %v844 = vadd.s32 %v825, 152
      %v845 = vadd.s32 %v825, 160
      %v846 = vadd.s32 %v825, 168
      %v847 = vadd.s32 %v825, 176
      %v848 = vadd.s32 %v825, 184
      %v849 = vadd.s32 %v825, 192
      %v850 = vadd.s32 %v825, 200
      %v851 = vadd.s32 %v825, 208
      %v852 = vadd.s32 %v825, 216
      %v853 = vadd.s32 %v825, 224
      %v854 = vadd.s32 %v825, 232
      %v855 = vadd.s32 %v825, 240
      %v856 = vadd.s32 %v825, 248
      %vm857 = vcmp.lt.s32.totalorder %v825, 0
      %v858 = vsub.s32 0, %v825
      %v859 = vsel %vm857, %v858, %v825
      %v860 = vshrl.u32 %v859, 4
      %v861 = vand.u32 %v859, 15
      %v862 = vsub.s32 0, %v861
      %v863 = vsel %vm857, %v862, %v861
      %vm864 = vcmp.lt.s32.totalorder %v826, 0
      %v865 = vsub.s32 0, %v826
      %v866 = vsel %vm864, %v865, %v826
      %v867 = vshrl.u32 %v866, 4
      %v868 = vand.u32 %v866, 15
      %v869 = vsub.s32 0, %v868
      %v870 = vsel %vm864, %v869, %v868
      %vm871 = vcmp.lt.s32.totalorder %v827, 0
      %v872 = vsub.s32 0, %v827
      %v873 = vsel %vm871, %v872, %v827
      %v874 = vshrl.u32 %v873, 4
      %v875 = vand.u32 %v873, 15
      %v876 = vsub.s32 0, %v875
      %v877 = vsel %vm871, %v876, %v875
      %vm878 = vcmp.lt.s32.totalorder %v828, 0
      %v879 = vsub.s32 0, %v828
      %v880 = vsel %vm878, %v879, %v828
      %v881 = vshrl.u32 %v880, 4
      %v882 = vand.u32 %v880, 15
      %v883 = vsub.s32 0, %v882
      %v884 = vsel %vm878, %v883, %v882
      %vm885 = vcmp.lt.s32.totalorder %v829, 0
      %v886 = vsub.s32 0, %v829
      %v887 = vsel %vm885, %v886, %v829
      %v888 = vshrl.u32 %v887, 4
      %v889 = vand.u32 %v887, 15
      %v890 = vsub.s32 0, %v889
      %v891 = vsel %vm885, %v890, %v889
      %vm892 = vcmp.lt.s32.totalorder %v830, 0
      %v893 = vsub.s32 0, %v830
      %v894 = vsel %vm892, %v893, %v830
      %v895 = vshrl.u32 %v894, 4
      %v896 = vand.u32 %v894, 15
      %v897 = vsub.s32 0, %v896
      %v898 = vsel %vm892, %v897, %v896
      %vm899 = vcmp.lt.s32.totalorder %v831, 0
      %v900 = vsub.s32 0, %v831
      %v901 = vsel %vm899, %v900, %v831
      %v902 = vshrl.u32 %v901, 4
      %v903 = vand.u32 %v901, 15
      %v904 = vsub.s32 0, %v903
      %v905 = vsel %vm899, %v904, %v903
      %vm906 = vcmp.lt.s32.totalorder %v832, 0
      %v907 = vsub.s32 0, %v832
      %v908 = vsel %vm906, %v907, %v832
      %v909 = vshrl.u32 %v908, 4
      %v910 = vand.u32 %v908, 15
      %v911 = vsub.s32 0, %v910
      %v912 = vsel %vm906, %v911, %v910
      %vm913 = vcmp.lt.s32.totalorder %v833, 0
      %v914 = vsub.s32 0, %v833
      %v915 = vsel %vm913, %v914, %v833
      %v916 = vshrl.u32 %v915, 4
      %v917 = vand.u32 %v915, 15
      %v918 = vsub.s32 0, %v917
      %v919 = vsel %vm913, %v918, %v917
      %vm920 = vcmp.lt.s32.totalorder %v834, 0
      %v921 = vsub.s32 0, %v834
      %v922 = vsel %vm920, %v921, %v834
      %v923 = vshrl.u32 %v922, 4
      %v924 = vand.u32 %v922, 15
      %v925 = vsub.s32 0, %v924
      %v926 = vsel %vm920, %v925, %v924
      %vm927 = vcmp.lt.s32.totalorder %v835, 0
      %v928 = vsub.s32 0, %v835
      %v929 = vsel %vm927, %v928, %v835
      %v930 = vshrl.u32 %v929, 4
      %v931 = vand.u32 %v929, 15
      %v932 = vsub.s32 0, %v931
      %v933 = vsel %vm927, %v932, %v931
      %vm934 = vcmp.lt.s32.totalorder %v836, 0
      %v935 = vsub.s32 0, %v836
      %v936 = vsel %vm934, %v935, %v836
      %v937 = vshrl.u32 %v936, 4
      %v938 = vand.u32 %v936, 15
      %v939 = vsub.s32 0, %v938
      %v940 = vsel %vm934, %v939, %v938
      %vm941 = vcmp.lt.s32.totalorder %v837, 0
      %v942 = vsub.s32 0, %v837
      %v943 = vsel %vm941, %v942, %v837
      %v944 = vshrl.u32 %v943, 4
      %v945 = vand.u32 %v943, 15
      %v946 = vsub.s32 0, %v945
      %v947 = vsel %vm941, %v946, %v945
      %vm948 = vcmp.lt.s32.totalorder %v838, 0
      %v949 = vsub.s32 0, %v838
      %v950 = vsel %vm948, %v949, %v838
      %v951 = vshrl.u32 %v950, 4
      %v952 = vand.u32 %v950, 15
      %v953 = vsub.s32 0, %v952
      %v954 = vsel %vm948, %v953, %v952
      %vm955 = vcmp.lt.s32.totalorder %v839, 0
      %v956 = vsub.s32 0, %v839
      %v957 = vsel %vm955, %v956, %v839
      %v958 = vshrl.u32 %v957, 4
      %v959 = vand.u32 %v957, 15
      %v960 = vsub.s32 0, %v959
      %v961 = vsel %vm955, %v960, %v959
      %vm962 = vcmp.lt.s32.totalorder %v840, 0
      %v963 = vsub.s32 0, %v840
      %v964 = vsel %vm962, %v963, %v840
      %v965 = vshrl.u32 %v964, 4
      %v966 = vand.u32 %v964, 15
      %v967 = vsub.s32 0, %v966
      %v968 = vsel %vm962, %v967, %v966
      %vm969 = vcmp.lt.s32.totalorder %v841, 0
      %v970 = vsub.s32 0, %v841
      %v971 = vsel %vm969, %v970, %v841
      %v972 = vshrl.u32 %v971, 4
      %v973 = vand.u32 %v971, 15
      %v974 = vsub.s32 0, %v973
      %v975 = vsel %vm969, %v974, %v973
      %vm976 = vcmp.lt.s32.totalorder %v842, 0
      %v977 = vsub.s32 0, %v842
      %v978 = vsel %vm976, %v977, %v842
      %v979 = vshrl.u32 %v978, 4
      %v980 = vand.u32 %v978, 15
      %v981 = vsub.s32 0, %v980
      %v982 = vsel %vm976, %v981, %v980
      %vm983 = vcmp.lt.s32.totalorder %v843, 0
      %v984 = vsub.s32 0, %v843
      %v985 = vsel %vm983, %v984, %v843
      %v986 = vshrl.u32 %v985, 4
      %v987 = vand.u32 %v985, 15
      %v988 = vsub.s32 0, %v987
      %v989 = vsel %vm983, %v988, %v987
      %vm990 = vcmp.lt.s32.totalorder %v844, 0
      %v991 = vsub.s32 0, %v844
      %v992 = vsel %vm990, %v991, %v844
      %v993 = vshrl.u32 %v992, 4
      %v994 = vand.u32 %v992, 15
      %v995 = vsub.s32 0, %v994
      %v996 = vsel %vm990, %v995, %v994
      %vm997 = vcmp.lt.s32.totalorder %v845, 0
      %v998 = vsub.s32 0, %v845
      %v999 = vsel %vm997, %v998, %v845
      %v1000 = vshrl.u32 %v999, 4
      %v1001 = vand.u32 %v999, 15
      %v1002 = vsub.s32 0, %v1001
      %v1003 = vsel %vm997, %v1002, %v1001
      %vm1004 = vcmp.lt.s32.totalorder %v846, 0
      %v1005 = vsub.s32 0, %v846
      %v1006 = vsel %vm1004, %v1005, %v846
      %v1007 = vshrl.u32 %v1006, 4
      %v1008 = vand.u32 %v1006, 15
      %v1009 = vsub.s32 0, %v1008
      %v1010 = vsel %vm1004, %v1009, %v1008
      %vm1011 = vcmp.lt.s32.totalorder %v847, 0
      %v1012 = vsub.s32 0, %v847
      %v1013 = vsel %vm1011, %v1012, %v847
      %v1014 = vshrl.u32 %v1013, 4
      %v1015 = vand.u32 %v1013, 15
      %v1016 = vsub.s32 0, %v1015
      %v1017 = vsel %vm1011, %v1016, %v1015
      %vm1018 = vcmp.lt.s32.totalorder %v848, 0
      %v1019 = vsub.s32 0, %v848
      %v1020 = vsel %vm1018, %v1019, %v848
      %v1021 = vshrl.u32 %v1020, 4
      %v1022 = vand.u32 %v1020, 15
      %v1023 = vsub.s32 0, %v1022
      %v1024 = vsel %vm1018, %v1023, %v1022
      %vm1025 = vcmp.lt.s32.totalorder %v849, 0
      %v1026 = vsub.s32 0, %v849
      %v1027 = vsel %vm1025, %v1026, %v849
      %v1028 = vshrl.u32 %v1027, 4
      %v1029 = vand.u32 %v1027, 15
      %v1030 = vsub.s32 0, %v1029
      %v1031 = vsel %vm1025, %v1030, %v1029
      %vm1032 = vcmp.lt.s32.totalorder %v850, 0
      %v1033 = vsub.s32 0, %v850
      %v1034 = vsel %vm1032, %v1033, %v850
      %v1035 = vshrl.u32 %v1034, 4
      %v1036 = vand.u32 %v1034, 15
      %v1037 = vsub.s32 0, %v1036
      %v1038 = vsel %vm1032, %v1037, %v1036
      %vm1039 = vcmp.lt.s32.totalorder %v851, 0
      %v1040 = vsub.s32 0, %v851
      %v1041 = vsel %vm1039, %v1040, %v851
      %v1042 = vshrl.u32 %v1041, 4
      %v1043 = vand.u32 %v1041, 15
      %v1044 = vsub.s32 0, %v1043
      %v1045 = vsel %vm1039, %v1044, %v1043
      %vm1046 = vcmp.lt.s32.totalorder %v852, 0
      %v1047 = vsub.s32 0, %v852
      %v1048 = vsel %vm1046, %v1047, %v852
      %v1049 = vshrl.u32 %v1048, 4
      %v1050 = vand.u32 %v1048, 15
      %v1051 = vsub.s32 0, %v1050
      %v1052 = vsel %vm1046, %v1051, %v1050
      %vm1053 = vcmp.lt.s32.totalorder %v853, 0
      %v1054 = vsub.s32 0, %v853
      %v1055 = vsel %vm1053, %v1054, %v853
      %v1056 = vshrl.u32 %v1055, 4
      %v1057 = vand.u32 %v1055, 15
      %v1058 = vsub.s32 0, %v1057
      %v1059 = vsel %vm1053, %v1058, %v1057
      %vm1060 = vcmp.lt.s32.totalorder %v854, 0
      %v1061 = vsub.s32 0, %v854
      %v1062 = vsel %vm1060, %v1061, %v854
      %v1063 = vshrl.u32 %v1062, 4
      %v1064 = vand.u32 %v1062, 15
      %v1065 = vsub.s32 0, %v1064
      %v1066 = vsel %vm1060, %v1065, %v1064
      %vm1067 = vcmp.lt.s32.totalorder %v855, 0
      %v1068 = vsub.s32 0, %v855
      %v1069 = vsel %vm1067, %v1068, %v855
      %v1070 = vshrl.u32 %v1069, 4
      %v1071 = vand.u32 %v1069, 15
      %v1072 = vsub.s32 0, %v1071
      %v1073 = vsel %vm1067, %v1072, %v1071
      %vm1074 = vcmp.lt.s32.totalorder %v856, 0
      %v1075 = vsub.s32 0, %v856
      %v1076 = vsel %vm1074, %v1075, %v856
      %v1077 = vshrl.u32 %v1076, 4
      %v1078 = vand.u32 %v1076, 15
      %v1079 = vsub.s32 0, %v1078
      %v1080 = vsel %vm1074, %v1079, %v1078
      %vm1081 = vcmp.ne.s32.totalorder %v863, 0
      %vm1082 = vcmp.ne.s32.totalorder %v870, 0
      %vm1083 = vcmp.ne.s32.totalorder %v877, 0
      %vm1084 = vcmp.ne.s32.totalorder %v884, 0
      %vm1085 = vcmp.ne.s32.totalorder %v891, 0
      %vm1086 = vcmp.ne.s32.totalorder %v898, 0
      %vm1087 = vcmp.ne.s32.totalorder %v905, 0
      %vm1088 = vcmp.ne.s32.totalorder %v912, 0
      %vm1089 = vcmp.ne.s32.totalorder %v919, 0
      %vm1090 = vcmp.ne.s32.totalorder %v926, 0
      %vm1091 = vcmp.ne.s32.totalorder %v933, 0
      %vm1092 = vcmp.ne.s32.totalorder %v940, 0
      %vm1093 = vcmp.ne.s32.totalorder %v947, 0
      %vm1094 = vcmp.ne.s32.totalorder %v954, 0
      %vm1095 = vcmp.ne.s32.totalorder %v961, 0
      %vm1096 = vcmp.ne.s32.totalorder %v968, 0
      %vm1097 = vcmp.ne.s32.totalorder %v975, 0
      %vm1098 = vcmp.ne.s32.totalorder %v982, 0
      %vm1099 = vcmp.ne.s32.totalorder %v989, 0
      %vm1100 = vcmp.ne.s32.totalorder %v996, 0
      %vm1101 = vcmp.ne.s32.totalorder %v1003, 0
      %vm1102 = vcmp.ne.s32.totalorder %v1010, 0
      %vm1103 = vcmp.ne.s32.totalorder %v1017, 0
      %vm1104 = vcmp.ne.s32.totalorder %v1024, 0
      %vm1105 = vcmp.ne.s32.totalorder %v1031, 0
      %vm1106 = vcmp.ne.s32.totalorder %v1038, 0
      %vm1107 = vcmp.ne.s32.totalorder %v1045, 0
      %vm1108 = vcmp.ne.s32.totalorder %v1052, 0
      %vm1109 = vcmp.ne.s32.totalorder %v1059, 0
      %vm1110 = vcmp.ne.s32.totalorder %v1066, 0
      %vm1111 = vcmp.ne.s32.totalorder %v1073, 0
      %vm1112 = vcmp.ne.s32.totalorder %v1080, 0
      %vm1113 = vcmp.lt.s32.totalorder %v863, 0
      %vm1114 = vcmp.lt.s32.totalorder %v870, 0
      %vm1115 = vcmp.lt.s32.totalorder %v877, 0
      %vm1116 = vcmp.lt.s32.totalorder %v884, 0
      %vm1117 = vcmp.lt.s32.totalorder %v891, 0
      %vm1118 = vcmp.lt.s32.totalorder %v898, 0
      %vm1119 = vcmp.lt.s32.totalorder %v905, 0
      %vm1120 = vcmp.lt.s32.totalorder %v912, 0
      %vm1121 = vcmp.lt.s32.totalorder %v919, 0
      %vm1122 = vcmp.lt.s32.totalorder %v926, 0
      %vm1123 = vcmp.lt.s32.totalorder %v933, 0
      %vm1124 = vcmp.lt.s32.totalorder %v940, 0
      %vm1125 = vcmp.lt.s32.totalorder %v947, 0
      %vm1126 = vcmp.lt.s32.totalorder %v954, 0
      %vm1127 = vcmp.lt.s32.totalorder %v961, 0
      %vm1128 = vcmp.lt.s32.totalorder %v968, 0
      %vm1129 = vcmp.lt.s32.totalorder %v975, 0
      %vm1130 = vcmp.lt.s32.totalorder %v982, 0
      %vm1131 = vcmp.lt.s32.totalorder %v989, 0
      %vm1132 = vcmp.lt.s32.totalorder %v996, 0
      %vm1133 = vcmp.lt.s32.totalorder %v1003, 0
      %vm1134 = vcmp.lt.s32.totalorder %v1010, 0
      %vm1135 = vcmp.lt.s32.totalorder %v1017, 0
      %vm1136 = vcmp.lt.s32.totalorder %v1024, 0
      %vm1137 = vcmp.lt.s32.totalorder %v1031, 0
      %vm1138 = vcmp.lt.s32.totalorder %v1038, 0
      %vm1139 = vcmp.lt.s32.totalorder %v1045, 0
      %vm1140 = vcmp.lt.s32.totalorder %v1052, 0
      %vm1141 = vcmp.lt.s32.totalorder %v1059, 0
      %vm1142 = vcmp.lt.s32.totalorder %v1066, 0
      %vm1143 = vcmp.lt.s32.totalorder %v1073, 0
      %vm1144 = vcmp.lt.s32.totalorder %v1080, 0
      %vm1145 = vmand %vm1113, %vm1081
      %vm1146 = vmand %vm1114, %vm1082
      %vm1147 = vmand %vm1115, %vm1083
      %vm1148 = vmand %vm1116, %vm1084
      %vm1149 = vmand %vm1117, %vm1085
      %vm1150 = vmand %vm1118, %vm1086
      %vm1151 = vmand %vm1119, %vm1087
      %vm1152 = vmand %vm1120, %vm1088
      %vm1153 = vmand %vm1121, %vm1089
      %vm1154 = vmand %vm1122, %vm1090
      %vm1155 = vmand %vm1123, %vm1091
      %vm1156 = vmand %vm1124, %vm1092
      %vm1157 = vmand %vm1125, %vm1093
      %vm1158 = vmand %vm1126, %vm1094
      %vm1159 = vmand %vm1127, %vm1095
      %vm1160 = vmand %vm1128, %vm1096
      %vm1161 = vmand %vm1129, %vm1097
      %vm1162 = vmand %vm1130, %vm1098
      %vm1163 = vmand %vm1131, %vm1099
      %vm1164 = vmand %vm1132, %vm1100
      %vm1165 = vmand %vm1133, %vm1101
      %vm1166 = vmand %vm1134, %vm1102
      %vm1167 = vmand %vm1135, %vm1103
      %vm1168 = vmand %vm1136, %vm1104
      %vm1169 = vmand %vm1137, %vm1105
      %vm1170 = vmand %vm1138, %vm1106
      %vm1171 = vmand %vm1139, %vm1107
      %vm1172 = vmand %vm1140, %vm1108
      %vm1173 = vmand %vm1141, %vm1109
      %vm1174 = vmand %vm1142, %vm1110
      %vm1175 = vmand %vm1143, %vm1111
      %vm1176 = vmand %vm1144, %vm1112
      %v1177 = vadd.s32 %v863, 16
      %v1178 = vadd.s32 %v870, 16
      %v1179 = vadd.s32 %v877, 16
      %v1180 = vadd.s32 %v884, 16
      %v1181 = vadd.s32 %v891, 16
      %v1182 = vadd.s32 %v898, 16
      %v1183 = vadd.s32 %v905, 16
      %v1184 = vadd.s32 %v912, 16
      %v1185 = vadd.s32 %v919, 16
      %v1186 = vadd.s32 %v926, 16
      %v1187 = vadd.s32 %v933, 16
      %v1188 = vadd.s32 %v940, 16
      %v1189 = vadd.s32 %v947, 16
      %v1190 = vadd.s32 %v954, 16
      %v1191 = vadd.s32 %v961, 16
      %v1192 = vadd.s32 %v968, 16
      %v1193 = vadd.s32 %v975, 16
      %v1194 = vadd.s32 %v982, 16
      %v1195 = vadd.s32 %v989, 16
      %v1196 = vadd.s32 %v996, 16
      %v1197 = vadd.s32 %v1003, 16
      %v1198 = vadd.s32 %v1010, 16
      %v1199 = vadd.s32 %v1017, 16
      %v1200 = vadd.s32 %v1024, 16
      %v1201 = vadd.s32 %v1031, 16
      %v1202 = vadd.s32 %v1038, 16
      %v1203 = vadd.s32 %v1045, 16
      %v1204 = vadd.s32 %v1052, 16
      %v1205 = vadd.s32 %v1059, 16
      %v1206 = vadd.s32 %v1066, 16
      %v1207 = vadd.s32 %v1073, 16
      %v1208 = vadd.s32 %v1080, 16
      %v1209 = vsel %vm1145, %v1177, %v863
      %v1210 = vsel %vm1146, %v1178, %v870
      %v1211 = vsel %vm1147, %v1179, %v877
      %v1212 = vsel %vm1148, %v1180, %v884
      %v1213 = vsel %vm1149, %v1181, %v891
      %v1214 = vsel %vm1150, %v1182, %v898
      %v1215 = vsel %vm1151, %v1183, %v905
      %v1216 = vsel %vm1152, %v1184, %v912
      %v1217 = vsel %vm1153, %v1185, %v919
      %v1218 = vsel %vm1154, %v1186, %v926
      %v1219 = vsel %vm1155, %v1187, %v933
      %v1220 = vsel %vm1156, %v1188, %v940
      %v1221 = vsel %vm1157, %v1189, %v947
      %v1222 = vsel %vm1158, %v1190, %v954
      %v1223 = vsel %vm1159, %v1191, %v961
      %v1224 = vsel %vm1160, %v1192, %v968
      %v1225 = vsel %vm1161, %v1193, %v975
      %v1226 = vsel %vm1162, %v1194, %v982
      %v1227 = vsel %vm1163, %v1195, %v989
      %v1228 = vsel %vm1164, %v1196, %v996
      %v1229 = vsel %vm1165, %v1197, %v1003
      %v1230 = vsel %vm1166, %v1198, %v1010
      %v1231 = vsel %vm1167, %v1199, %v1017
      %v1232 = vsel %vm1168, %v1200, %v1024
      %v1233 = vsel %vm1169, %v1201, %v1031
      %v1234 = vsel %vm1170, %v1202, %v1038
      %v1235 = vsel %vm1171, %v1203, %v1045
      %v1236 = vsel %vm1172, %v1204, %v1052
      %v1237 = vsel %vm1173, %v1205, %v1059
      %v1238 = vsel %vm1174, %v1206, %v1066
      %v1239 = vsel %vm1175, %v1207, %v1073
      %v1240 = vsel %vm1176, %v1208, %v1080
      %vm1241 = vcmp.ge.s32.totalorder %v1209, 1
      %vm1242 = vcmp.ge.s32.totalorder %v1210, 1
      %vm1243 = vcmp.ge.s32.totalorder %v1211, 1
      %vm1244 = vcmp.ge.s32.totalorder %v1212, 1
      %vm1245 = vcmp.ge.s32.totalorder %v1213, 1
      %vm1246 = vcmp.ge.s32.totalorder %v1214, 1
      %vm1247 = vcmp.ge.s32.totalorder %v1215, 1
      %vm1248 = vcmp.ge.s32.totalorder %v1216, 1
      %vm1249 = vcmp.ge.s32.totalorder %v1217, 1
      %vm1250 = vcmp.ge.s32.totalorder %v1218, 1
      %vm1251 = vcmp.ge.s32.totalorder %v1219, 1
      %vm1252 = vcmp.ge.s32.totalorder %v1220, 1
      %vm1253 = vcmp.ge.s32.totalorder %v1221, 1
      %vm1254 = vcmp.ge.s32.totalorder %v1222, 1
      %vm1255 = vcmp.ge.s32.totalorder %v1223, 1
      %vm1256 = vcmp.ge.s32.totalorder %v1224, 1
      %vm1257 = vcmp.ge.s32.totalorder %v1225, 1
      %vm1258 = vcmp.ge.s32.totalorder %v1226, 1
      %vm1259 = vcmp.ge.s32.totalorder %v1227, 1
      %vm1260 = vcmp.ge.s32.totalorder %v1228, 1
      %vm1261 = vcmp.ge.s32.totalorder %v1229, 1
      %vm1262 = vcmp.ge.s32.totalorder %v1230, 1
      %vm1263 = vcmp.ge.s32.totalorder %v1231, 1
      %vm1264 = vcmp.ge.s32.totalorder %v1232, 1
      %vm1265 = vcmp.ge.s32.totalorder %v1233, 1
      %vm1266 = vcmp.ge.s32.totalorder %v1234, 1
      %vm1267 = vcmp.ge.s32.totalorder %v1235, 1
      %vm1268 = vcmp.ge.s32.totalorder %v1236, 1
      %vm1269 = vcmp.ge.s32.totalorder %v1237, 1
      %vm1270 = vcmp.ge.s32.totalorder %v1238, 1
      %vm1271 = vcmp.ge.s32.totalorder %v1239, 1
      %vm1272 = vcmp.ge.s32.totalorder %v1240, 1
      %vm1273 = vcmp.lt.s32.totalorder %v1209, 17
      %vm1274 = vcmp.lt.s32.totalorder %v1210, 17
      %vm1275 = vcmp.lt.s32.totalorder %v1211, 17
      %vm1276 = vcmp.lt.s32.totalorder %v1212, 17
      %vm1277 = vcmp.lt.s32.totalorder %v1213, 17
      %vm1278 = vcmp.lt.s32.totalorder %v1214, 17
      %vm1279 = vcmp.lt.s32.totalorder %v1215, 17
      %vm1280 = vcmp.lt.s32.totalorder %v1216, 17
      %vm1281 = vcmp.lt.s32.totalorder %v1217, 17
      %vm1282 = vcmp.lt.s32.totalorder %v1218, 17
      %vm1283 = vcmp.lt.s32.totalorder %v1219, 17
      %vm1284 = vcmp.lt.s32.totalorder %v1220, 17
      %vm1285 = vcmp.lt.s32.totalorder %v1221, 17
      %vm1286 = vcmp.lt.s32.totalorder %v1222, 17
      %vm1287 = vcmp.lt.s32.totalorder %v1223, 17
      %vm1288 = vcmp.lt.s32.totalorder %v1224, 17
      %vm1289 = vcmp.lt.s32.totalorder %v1225, 17
      %vm1290 = vcmp.lt.s32.totalorder %v1226, 17
      %vm1291 = vcmp.lt.s32.totalorder %v1227, 17
      %vm1292 = vcmp.lt.s32.totalorder %v1228, 17
      %vm1293 = vcmp.lt.s32.totalorder %v1229, 17
      %vm1294 = vcmp.lt.s32.totalorder %v1230, 17
      %vm1295 = vcmp.lt.s32.totalorder %v1231, 17
      %vm1296 = vcmp.lt.s32.totalorder %v1232, 17
      %vm1297 = vcmp.lt.s32.totalorder %v1233, 17
      %vm1298 = vcmp.lt.s32.totalorder %v1234, 17
      %vm1299 = vcmp.lt.s32.totalorder %v1235, 17
      %vm1300 = vcmp.lt.s32.totalorder %v1236, 17
      %vm1301 = vcmp.lt.s32.totalorder %v1237, 17
      %vm1302 = vcmp.lt.s32.totalorder %v1238, 17
      %vm1303 = vcmp.lt.s32.totalorder %v1239, 17
      %vm1304 = vcmp.lt.s32.totalorder %v1240, 17
      %vm1305 = vmand %vm1241, %vm1273
      %vm1306 = vmand %vm1242, %vm1274
      %vm1307 = vmand %vm1243, %vm1275
      %vm1308 = vmand %vm1244, %vm1276
      %vm1309 = vmand %vm1245, %vm1277
      %vm1310 = vmand %vm1246, %vm1278
      %vm1311 = vmand %vm1247, %vm1279
      %vm1312 = vmand %vm1248, %vm1280
      %vm1313 = vmand %vm1249, %vm1281
      %vm1314 = vmand %vm1250, %vm1282
      %vm1315 = vmand %vm1251, %vm1283
      %vm1316 = vmand %vm1252, %vm1284
      %vm1317 = vmand %vm1253, %vm1285
      %vm1318 = vmand %vm1254, %vm1286
      %vm1319 = vmand %vm1255, %vm1287
      %vm1320 = vmand %vm1256, %vm1288
      %vm1321 = vmand %vm1257, %vm1289
      %vm1322 = vmand %vm1258, %vm1290
      %vm1323 = vmand %vm1259, %vm1291
      %vm1324 = vmand %vm1260, %vm1292
      %vm1325 = vmand %vm1261, %vm1293
      %vm1326 = vmand %vm1262, %vm1294
      %vm1327 = vmand %vm1263, %vm1295
      %vm1328 = vmand %vm1264, %vm1296
      %vm1329 = vmand %vm1265, %vm1297
      %vm1330 = vmand %vm1266, %vm1298
      %vm1331 = vmand %vm1267, %vm1299
      %vm1332 = vmand %vm1268, %vm1300
      %vm1333 = vmand %vm1269, %vm1301
      %vm1334 = vmand %vm1270, %vm1302
      %vm1335 = vmand %vm1271, %vm1303
      %vm1336 = vmand %vm1272, %vm1304
      %vm1337 = vcmp.ge.s32.totalorder %v1209, 4294967295
      %vm1338 = vcmp.ge.s32.totalorder %v1210, 4294967295
      %vm1339 = vcmp.ge.s32.totalorder %v1211, 4294967295
      %vm1340 = vcmp.ge.s32.totalorder %v1212, 4294967295
      %vm1341 = vcmp.ge.s32.totalorder %v1213, 4294967295
      %vm1342 = vcmp.ge.s32.totalorder %v1214, 4294967295
      %vm1343 = vcmp.ge.s32.totalorder %v1215, 4294967295
      %vm1344 = vcmp.ge.s32.totalorder %v1216, 4294967295
      %vm1345 = vcmp.ge.s32.totalorder %v1217, 4294967295
      %vm1346 = vcmp.ge.s32.totalorder %v1218, 4294967295
      %vm1347 = vcmp.ge.s32.totalorder %v1219, 4294967295
      %vm1348 = vcmp.ge.s32.totalorder %v1220, 4294967295
      %vm1349 = vcmp.ge.s32.totalorder %v1221, 4294967295
      %vm1350 = vcmp.ge.s32.totalorder %v1222, 4294967295
      %vm1351 = vcmp.ge.s32.totalorder %v1223, 4294967295
      %vm1352 = vcmp.ge.s32.totalorder %v1224, 4294967295
      %vm1353 = vcmp.ge.s32.totalorder %v1225, 4294967295
      %vm1354 = vcmp.ge.s32.totalorder %v1226, 4294967295
      %vm1355 = vcmp.ge.s32.totalorder %v1227, 4294967295
      %vm1356 = vcmp.ge.s32.totalorder %v1228, 4294967295
      %vm1357 = vcmp.ge.s32.totalorder %v1229, 4294967295
      %vm1358 = vcmp.ge.s32.totalorder %v1230, 4294967295
      %vm1359 = vcmp.ge.s32.totalorder %v1231, 4294967295
      %vm1360 = vcmp.ge.s32.totalorder %v1232, 4294967295
      %vm1361 = vcmp.ge.s32.totalorder %v1233, 4294967295
      %vm1362 = vcmp.ge.s32.totalorder %v1234, 4294967295
      %vm1363 = vcmp.ge.s32.totalorder %v1235, 4294967295
      %vm1364 = vcmp.ge.s32.totalorder %v1236, 4294967295
      %vm1365 = vcmp.ge.s32.totalorder %v1237, 4294967295
      %vm1366 = vcmp.ge.s32.totalorder %v1238, 4294967295
      %vm1367 = vcmp.ge.s32.totalorder %v1239, 4294967295
      %vm1368 = vcmp.ge.s32.totalorder %v1240, 4294967295
      %vm1369 = vcmp.lt.s32.totalorder %v1209, 15
      %vm1370 = vcmp.lt.s32.totalorder %v1210, 15
      %vm1371 = vcmp.lt.s32.totalorder %v1211, 15
      %vm1372 = vcmp.lt.s32.totalorder %v1212, 15
      %vm1373 = vcmp.lt.s32.totalorder %v1213, 15
      %vm1374 = vcmp.lt.s32.totalorder %v1214, 15
      %vm1375 = vcmp.lt.s32.totalorder %v1215, 15
      %vm1376 = vcmp.lt.s32.totalorder %v1216, 15
      %vm1377 = vcmp.lt.s32.totalorder %v1217, 15
      %vm1378 = vcmp.lt.s32.totalorder %v1218, 15
      %vm1379 = vcmp.lt.s32.totalorder %v1219, 15
      %vm1380 = vcmp.lt.s32.totalorder %v1220, 15
      %vm1381 = vcmp.lt.s32.totalorder %v1221, 15
      %vm1382 = vcmp.lt.s32.totalorder %v1222, 15
      %vm1383 = vcmp.lt.s32.totalorder %v1223, 15
      %vm1384 = vcmp.lt.s32.totalorder %v1224, 15
      %vm1385 = vcmp.lt.s32.totalorder %v1225, 15
      %vm1386 = vcmp.lt.s32.totalorder %v1226, 15
      %vm1387 = vcmp.lt.s32.totalorder %v1227, 15
      %vm1388 = vcmp.lt.s32.totalorder %v1228, 15
      %vm1389 = vcmp.lt.s32.totalorder %v1229, 15
      %vm1390 = vcmp.lt.s32.totalorder %v1230, 15
      %vm1391 = vcmp.lt.s32.totalorder %v1231, 15
      %vm1392 = vcmp.lt.s32.totalorder %v1232, 15
      %vm1393 = vcmp.lt.s32.totalorder %v1233, 15
      %vm1394 = vcmp.lt.s32.totalorder %v1234, 15
      %vm1395 = vcmp.lt.s32.totalorder %v1235, 15
      %vm1396 = vcmp.lt.s32.totalorder %v1236, 15
      %vm1397 = vcmp.lt.s32.totalorder %v1237, 15
      %vm1398 = vcmp.lt.s32.totalorder %v1238, 15
      %vm1399 = vcmp.lt.s32.totalorder %v1239, 15
      %vm1400 = vcmp.lt.s32.totalorder %v1240, 15
      %vm1401 = vmand %vm1337, %vm1369
      %vm1402 = vmand %vm1338, %vm1370
      %vm1403 = vmand %vm1339, %vm1371
      %vm1404 = vmand %vm1340, %vm1372
      %vm1405 = vmand %vm1341, %vm1373
      %vm1406 = vmand %vm1342, %vm1374
      %vm1407 = vmand %vm1343, %vm1375
      %vm1408 = vmand %vm1344, %vm1376
      %vm1409 = vmand %vm1345, %vm1377
      %vm1410 = vmand %vm1346, %vm1378
      %vm1411 = vmand %vm1347, %vm1379
      %vm1412 = vmand %vm1348, %vm1380
      %vm1413 = vmand %vm1349, %vm1381
      %vm1414 = vmand %vm1350, %vm1382
      %vm1415 = vmand %vm1351, %vm1383
      %vm1416 = vmand %vm1352, %vm1384
      %vm1417 = vmand %vm1353, %vm1385
      %vm1418 = vmand %vm1354, %vm1386
      %vm1419 = vmand %vm1355, %vm1387
      %vm1420 = vmand %vm1356, %vm1388
      %vm1421 = vmand %vm1357, %vm1389
      %vm1422 = vmand %vm1358, %vm1390
      %vm1423 = vmand %vm1359, %vm1391
      %vm1424 = vmand %vm1360, %vm1392
      %vm1425 = vmand %vm1361, %vm1393
      %vm1426 = vmand %vm1362, %vm1394
      %vm1427 = vmand %vm1363, %vm1395
      %vm1428 = vmand %vm1364, %vm1396
      %vm1429 = vmand %vm1365, %vm1397
      %vm1430 = vmand %vm1366, %vm1398
      %vm1431 = vmand %vm1367, %vm1399
      %vm1432 = vmand %vm1368, %vm1400
      %v1433 = vld [vmem:[#allocation2 + $0x4] sm:$0x8]
      %v1434 = vld [vmem:[#allocation2 + $0x8] sm:$0xf]
      %v1435 = vld [vmem:[#allocation2 + $0xc] sm:$0xf]
      %v1436 = vld [vmem:[#allocation2 + $0x10] sm:$0xf]
      %v1437 = vld [vmem:[#allocation2 + $0x14] sm:$0xf]
      %v1438 = vld [vmem:[#allocation2 + $0x18] sm:$0xf]
      %v1439 = vld [vmem:[#allocation2 + $0x1c] sm:$0xf]
      %v1440 = vld [vmem:[#allocation2 + $0x20] sm:$0xf]
      %v1441 = vld [vmem:[#allocation2 + $0x24] sm:$0xf]
      %v1442 = vld [vmem:[#allocation2 + $0x28] sm:$0xf]
      %v1443 = vld [vmem:[#allocation2 + $0x2c] sm:$0xf]
      %v1444 = vld [vmem:[#allocation2 + $0x30] sm:$0xf]
      %v1445 = vld [vmem:[#allocation2 + $0x34] sm:$0xf]
      %v1446 = vld [vmem:[#allocation2 + $0x38] sm:$0xf]
      %v1447 = vld [vmem:[#allocation2 + $0x3c] sm:$0xf]
      %v1448 = vld [vmem:[#allocation2 + $0x40] sm:$0xf]
      %v1449 = vld [vmem:[#allocation2 + $0x44] sm:$0xf]
      %v1450 = vld [vmem:[#allocation2 + $0x48] sm:$0xf]
      %v1451 = vld [vmem:[#allocation2 + $0x4c] sm:$0xf]
      %v1452 = vld [vmem:[#allocation2 + $0x50] sm:$0xf]
      %v1453 = vld [vmem:[#allocation2 + $0x54] sm:$0xf]
      %v1454 = vld [vmem:[#allocation2 + $0x58] sm:$0xf]
      %v1455 = vld [vmem:[#allocation2 + $0x5c] sm:$0xf]
      %v1456 = vld [vmem:[#allocation2 + $0x60] sm:$0xf]
      %v1457 = vld [vmem:[#allocation2 + $0x64] sm:$0xf]
      %v1458 = vld [vmem:[#allocation2 + $0x68] sm:$0xf]
      %v1459 = vld [vmem:[#allocation2 + $0x6c] sm:$0xf]
      %v1460 = vld [vmem:[#allocation2 + $0x70] sm:$0xf]
      %v1461 = vld [vmem:[#allocation2 + $0x74] sm:$0xf]
      %v1462 = vld [vmem:[#allocation2 + $0x78] sm:$0xf]
      %v1463 = vld [vmem:[#allocation2 + $0x7c] sm:$0xf]
      %v1464 = vld [vmem:[#allocation2 + $0x80] sm:$0xf]
      %v1465 = vld [vmem:[#allocation2 + $0x84] sm:$0xf]
      %v1466 = vsel %vm1305, 1, 0
      %v1467 = vsel %vm1306, 1, 0
      %v1468 = vsel %vm1307, 1, 0
      %v1469 = vsel %vm1308, 1, 0
      %v1470 = vsel %vm1309, 1, 0
      %v1471 = vsel %vm1310, 1, 0
      %v1472 = vsel %vm1311, 1, 0
      %v1473 = vsel %vm1312, 1, 0
      %v1474 = vsel %vm1313, 1, 0
      %v1475 = vsel %vm1314, 1, 0
      %v1476 = vsel %vm1315, 1, 0
      %v1477 = vsel %vm1316, 1, 0
      %v1478 = vsel %vm1317, 1, 0
      %v1479 = vsel %vm1318, 1, 0
      %v1480 = vsel %vm1319, 1, 0
      %v1481 = vsel %vm1320, 1, 0
      %v1482 = vsel %vm1321, 1, 0
      %v1483 = vsel %vm1322, 1, 0
      %v1484 = vsel %vm1323, 1, 0
      %v1485 = vsel %vm1324, 1, 0
      %v1486 = vsel %vm1325, 1, 0
      %v1487 = vsel %vm1326, 1, 0
      %v1488 = vsel %vm1327, 1, 0
      %v1489 = vsel %vm1328, 1, 0
      %v1490 = vsel %vm1329, 1, 0
      %v1491 = vsel %vm1330, 1, 0
      %v1492 = vsel %vm1331, 1, 0
      %v1493 = vsel %vm1332, 1, 0
      %v1494 = vsel %vm1333, 1, 0
      %v1495 = vsel %vm1334, 1, 0
      %v1496 = vsel %vm1335, 1, 0
      %v1497 = vsel %vm1336, 1, 0
      %vm1498 = vcmp.eq.s32.totalorder %v1466, 1
      %vm1499 = vcmp.eq.s32.totalorder %v1467, 1
      %vm1500 = vcmp.eq.s32.totalorder %v1468, 1
      %vm1501 = vcmp.eq.s32.totalorder %v1469, 1
      %vm1502 = vcmp.eq.s32.totalorder %v1470, 1
      %vm1503 = vcmp.eq.s32.totalorder %v1471, 1
      %vm1504 = vcmp.eq.s32.totalorder %v1472, 1
      %vm1505 = vcmp.eq.s32.totalorder %v1473, 1
      %vm1506 = vcmp.eq.s32.totalorder %v1474, 1
      %vm1507 = vcmp.eq.s32.totalorder %v1475, 1
      %vm1508 = vcmp.eq.s32.totalorder %v1476, 1
      %vm1509 = vcmp.eq.s32.totalorder %v1477, 1
      %vm1510 = vcmp.eq.s32.totalorder %v1478, 1
      %vm1511 = vcmp.eq.s32.totalorder %v1479, 1
      %vm1512 = vcmp.eq.s32.totalorder %v1480, 1
      %vm1513 = vcmp.eq.s32.totalorder %v1481, 1
      %vm1514 = vcmp.eq.s32.totalorder %v1482, 1
      %vm1515 = vcmp.eq.s32.totalorder %v1483, 1
      %vm1516 = vcmp.eq.s32.totalorder %v1484, 1
      %vm1517 = vcmp.eq.s32.totalorder %v1485, 1
      %vm1518 = vcmp.eq.s32.totalorder %v1486, 1
      %vm1519 = vcmp.eq.s32.totalorder %v1487, 1
      %vm1520 = vcmp.eq.s32.totalorder %v1488, 1
      %vm1521 = vcmp.eq.s32.totalorder %v1489, 1
      %vm1522 = vcmp.eq.s32.totalorder %v1490, 1
      %vm1523 = vcmp.eq.s32.totalorder %v1491, 1
      %vm1524 = vcmp.eq.s32.totalorder %v1492, 1
      %vm1525 = vcmp.eq.s32.totalorder %v1493, 1
      %vm1526 = vcmp.eq.s32.totalorder %v1494, 1
      %vm1527 = vcmp.eq.s32.totalorder %v1495, 1
      %vm1528 = vcmp.eq.s32.totalorder %v1496, 1
      %vm1529 = vcmp.eq.s32.totalorder %v1497, 1
      %vm1530 = vmpackc.low %vm1498, %vm1498
      %vm1531 = vmpackc.low %vm1499, %vm1499
      %vm1532 = vmpackc.low %vm1500, %vm1500
      %vm1533 = vmpackc.low %vm1501, %vm1501
      %vm1534 = vmpackc.low %vm1502, %vm1502
      %vm1535 = vmpackc.low %vm1503, %vm1503
      %vm1536 = vmpackc.low %vm1504, %vm1504
      %vm1537 = vmpackc.low %vm1505, %vm1505
      %vm1538 = vmpackc.low %vm1506, %vm1506
      %vm1539 = vmpackc.low %vm1507, %vm1507
      %vm1540 = vmpackc.low %vm1508, %vm1508
      %vm1541 = vmpackc.low %vm1509, %vm1509
      %vm1542 = vmpackc.low %vm1510, %vm1510
      %vm1543 = vmpackc.low %vm1511, %vm1511
      %vm1544 = vmpackc.low %vm1512, %vm1512
      %vm1545 = vmpackc.low %vm1513, %vm1513
      %vm1546 = vmpackc.low %vm1514, %vm1514
      %vm1547 = vmpackc.low %vm1515, %vm1515
      %vm1548 = vmpackc.low %vm1516, %vm1516
      %vm1549 = vmpackc.low %vm1517, %vm1517
      %vm1550 = vmpackc.low %vm1518, %vm1518
      %vm1551 = vmpackc.low %vm1519, %vm1519
      %vm1552 = vmpackc.low %vm1520, %vm1520
      %vm1553 = vmpackc.low %vm1521, %vm1521
      %vm1554 = vmpackc.low %vm1522, %vm1522
      %vm1555 = vmpackc.low %vm1523, %vm1523
      %vm1556 = vmpackc.low %vm1524, %vm1524
      %vm1557 = vmpackc.low %vm1525, %vm1525
      %vm1558 = vmpackc.low %vm1526, %vm1526
      %vm1559 = vmpackc.low %vm1527, %vm1527
      %vm1560 = vmpackc.low %vm1528, %vm1528
      %vm1561 = vmpackc.low %vm1529, %vm1529
      %v1562 = vsel %vm1530, 65537, 0
      %v1563 = vsel %vm1531, 65537, 0
      %v1564 = vsel %vm1532, 65537, 0
      %v1565 = vsel %vm1533, 65537, 0
      %v1566 = vsel %vm1534, 65537, 0
      %v1567 = vsel %vm1535, 65537, 0
      %v1568 = vsel %vm1536, 65537, 0
      %v1569 = vsel %vm1537, 65537, 0
      %v1570 = vsel %vm1538, 65537, 0
      %v1571 = vsel %vm1539, 65537, 0
      %v1572 = vsel %vm1540, 65537, 0
      %v1573 = vsel %vm1541, 65537, 0
      %v1574 = vsel %vm1542, 65537, 0
      %v1575 = vsel %vm1543, 65537, 0
      %v1576 = vsel %vm1544, 65537, 0
      %v1577 = vsel %vm1545, 65537, 0
      %v1578 = vsel %vm1546, 65537, 0
      %v1579 = vsel %vm1547, 65537, 0
      %v1580 = vsel %vm1548, 65537, 0
      %v1581 = vsel %vm1549, 65537, 0
      %v1582 = vsel %vm1550, 65537, 0
      %v1583 = vsel %vm1551, 65537, 0
      %v1584 = vsel %vm1552, 65537, 0
      %v1585 = vsel %vm1553, 65537, 0
      %v1586 = vsel %vm1554, 65537, 0
      %v1587 = vsel %vm1555, 65537, 0
      %v1588 = vsel %vm1556, 65537, 0
      %v1589 = vsel %vm1557, 65537, 0
      %v1590 = vsel %vm1558, 65537, 0
      %v1591 = vsel %vm1559, 65537, 0
      %v1592 = vsel %vm1560, 65537, 0
      %v1593 = vsel %vm1561, 65537, 0
      %vm1594 = vsmask.f32 3328
      %vm1595 = vsmask.f32 7440
      %vm1596 = vmor %vm1594, %vm1595
      %v1598 = vshll.u32 %v1562, 16
      %v1600 = vrot.slane %v1598, 5
      %v1601 = vshrl.u32 %v1562, 16
      %v1603 = vrot.slane %v1601, 4
      %v1604 = vor.u32 %v1603, %v1600
      %v1605 = vrot.slane %v1604, 4
      %v1607 = vshll.u32 %v1563, 16
      %v1609 = vrot.slane %v1607, 5
      %v1610 = vsel %vm1596, %v1605, %v1609
      %v1611 = vshrl.u32 %v1563, 16
      %v1613 = vrot.slane %v1611, 4
      %v1614 = vor.u32 %v1613, %v1609
      %v1615 = vrot.slane %v1614, 4
      %v1617 = vshll.u32 %v1564, 16
      %v1619 = vrot.slane %v1617, 5
      %v1620 = vsel %vm1596, %v1615, %v1619
      %v1621 = vshrl.u32 %v1564, 16
      %v1623 = vrot.slane %v1621, 4
      %v1624 = vor.u32 %v1623, %v1619
      %v1625 = vrot.slane %v1624, 4
      %v1627 = vshll.u32 %v1565, 16
      %v1629 = vrot.slane %v1627, 5
      %v1630 = vsel %vm1596, %v1625, %v1629
      %v1631 = vshrl.u32 %v1565, 16
      %v1633 = vrot.slane %v1631, 4
      %v1634 = vor.u32 %v1633, %v1629
      %v1635 = vrot.slane %v1634, 4
      %v1637 = vshll.u32 %v1566, 16
      %v1639 = vrot.slane %v1637, 5
      %v1640 = vsel %vm1596, %v1635, %v1639
      %v1641 = vshrl.u32 %v1566, 16
      %v1643 = vrot.slane %v1641, 4
      %v1644 = vor.u32 %v1643, %v1639
      %v1645 = vrot.slane %v1644, 4
      %v1647 = vshll.u32 %v1567, 16
      %v1649 = vrot.slane %v1647, 5
      %v1650 = vsel %vm1596, %v1645, %v1649
      %v1651 = vshrl.u32 %v1567, 16
      %v1653 = vrot.slane %v1651, 4
      %v1654 = vor.u32 %v1653, %v1649
      %v1655 = vrot.slane %v1654, 4
      %v1657 = vshll.u32 %v1568, 16
      %v1659 = vrot.slane %v1657, 5
      %v1660 = vsel %vm1596, %v1655, %v1659
      %v1661 = vshrl.u32 %v1568, 16
      %v1663 = vrot.slane %v1661, 4
      %v1664 = vor.u32 %v1663, %v1659
      %v1665 = vrot.slane %v1664, 4
      %v1667 = vshll.u32 %v1569, 16
      %v1669 = vrot.slane %v1667, 5
      %v1670 = vsel %vm1596, %v1665, %v1669
      %v1671 = vshrl.u32 %v1569, 16
      %v1673 = vrot.slane %v1671, 4
      %v1674 = vor.u32 %v1673, %v1669
      %v1675 = vrot.slane %v1674, 4
      %v1677 = vshll.u32 %v1570, 16
      %v1679 = vrot.slane %v1677, 5
      %v1680 = vsel %vm1596, %v1675, %v1679
      %v1681 = vshrl.u32 %v1570, 16
      %v1683 = vrot.slane %v1681, 4
      %v1684 = vor.u32 %v1683, %v1679
      %v1685 = vrot.slane %v1684, 4
      %v1687 = vshll.u32 %v1571, 16
      %v1689 = vrot.slane %v1687, 5
      %v1690 = vsel %vm1596, %v1685, %v1689
      %v1691 = vshrl.u32 %v1571, 16
      %v1693 = vrot.slane %v1691, 4
      %v1694 = vor.u32 %v1693, %v1689
      %v1695 = vrot.slane %v1694, 4
      %v1697 = vshll.u32 %v1572, 16
      %v1699 = vrot.slane %v1697, 5
      %v1700 = vsel %vm1596, %v1695, %v1699
      %v1701 = vshrl.u32 %v1572, 16
      %v1703 = vrot.slane %v1701, 4
      %v1704 = vor.u32 %v1703, %v1699
      %v1705 = vrot.slane %v1704, 4
      %v1707 = vshll.u32 %v1573, 16
      %v1709 = vrot.slane %v1707, 5
      %v1710 = vsel %vm1596, %v1705, %v1709
      %v1711 = vshrl.u32 %v1573, 16
      %v1713 = vrot.slane %v1711, 4
      %v1714 = vor.u32 %v1713, %v1709
      %v1715 = vrot.slane %v1714, 4
      %v1717 = vshll.u32 %v1574, 16
      %v1719 = vrot.slane %v1717, 5
      %v1720 = vsel %vm1596, %v1715, %v1719
      %v1721 = vshrl.u32 %v1574, 16
      %v1723 = vrot.slane %v1721, 4
      %v1724 = vor.u32 %v1723, %v1719
      %v1725 = vrot.slane %v1724, 4
      %v1727 = vshll.u32 %v1575, 16
      %v1729 = vrot.slane %v1727, 5
      %v1730 = vsel %vm1596, %v1725, %v1729
      %v1731 = vshrl.u32 %v1575, 16
      %v1733 = vrot.slane %v1731, 4
      %v1734 = vor.u32 %v1733, %v1729
      %v1735 = vrot.slane %v1734, 4
      %v1737 = vshll.u32 %v1576, 16
      %v1739 = vrot.slane %v1737, 5
      %v1740 = vsel %vm1596, %v1735, %v1739
      %v1741 = vshrl.u32 %v1576, 16
      %v1743 = vrot.slane %v1741, 4
      %v1744 = vor.u32 %v1743, %v1739
      %v1745 = vrot.slane %v1744, 4
      %v1747 = vshll.u32 %v1577, 16
      %v1749 = vrot.slane %v1747, 5
      %v1750 = vsel %vm1596, %v1745, %v1749
      %v1751 = vshrl.u32 %v1577, 16
      %v1753 = vrot.slane %v1751, 4
      %v1754 = vor.u32 %v1753, %v1749
      %v1755 = vrot.slane %v1754, 4
      %v1757 = vshll.u32 %v1578, 16
      %v1759 = vrot.slane %v1757, 5
      %v1760 = vsel %vm1596, %v1755, %v1759
      %v1761 = vshrl.u32 %v1578, 16
      %v1763 = vrot.slane %v1761, 4
      %v1764 = vor.u32 %v1763, %v1759
      %v1765 = vrot.slane %v1764, 4
      %v1767 = vshll.u32 %v1579, 16
      %v1769 = vrot.slane %v1767, 5
      %v1770 = vsel %vm1596, %v1765, %v1769
      %v1771 = vshrl.u32 %v1579, 16
      %v1773 = vrot.slane %v1771, 4
      %v1774 = vor.u32 %v1773, %v1769
      %v1775 = vrot.slane %v1774, 4
      %v1777 = vshll.u32 %v1580, 16
      %v1779 = vrot.slane %v1777, 5
      %v1780 = vsel %vm1596, %v1775, %v1779
      %v1781 = vshrl.u32 %v1580, 16
      %v1783 = vrot.slane %v1781, 4
      %v1784 = vor.u32 %v1783, %v1779
      %v1785 = vrot.slane %v1784, 4
      %v1787 = vshll.u32 %v1581, 16
      %v1789 = vrot.slane %v1787, 5
      %v1790 = vsel %vm1596, %v1785, %v1789
      %v1791 = vshrl.u32 %v1581, 16
      %v1793 = vrot.slane %v1791, 4
      %v1794 = vor.u32 %v1793, %v1789
      %v1795 = vrot.slane %v1794, 4
      %v1797 = vshll.u32 %v1582, 16
      %v1799 = vrot.slane %v1797, 5
      %v1800 = vsel %vm1596, %v1795, %v1799
      %v1801 = vshrl.u32 %v1582, 16
      %v1803 = vrot.slane %v1801, 4
      %v1804 = vor.u32 %v1803, %v1799
      %v1805 = vrot.slane %v1804, 4
      %v1807 = vshll.u32 %v1583, 16
      %v1809 = vrot.slane %v1807, 5
      %v1810 = vsel %vm1596, %v1805, %v1809
      %v1811 = vshrl.u32 %v1583, 16
      %v1813 = vrot.slane %v1811, 4
      %v1814 = vor.u32 %v1813, %v1809
      %v1815 = vrot.slane %v1814, 4
      %v1817 = vshll.u32 %v1584, 16
      %v1819 = vrot.slane %v1817, 5
      %v1820 = vsel %vm1596, %v1815, %v1819
      %v1821 = vshrl.u32 %v1584, 16
      %v1823 = vrot.slane %v1821, 4
      %v1824 = vor.u32 %v1823, %v1819
      %v1825 = vrot.slane %v1824, 4
      %v1827 = vshll.u32 %v1585, 16
      %v1829 = vrot.slane %v1827, 5
      %v1830 = vsel %vm1596, %v1825, %v1829
      %v1831 = vshrl.u32 %v1585, 16
      %v1833 = vrot.slane %v1831, 4
      %v1834 = vor.u32 %v1833, %v1829
      %v1835 = vrot.slane %v1834, 4
      %v1837 = vshll.u32 %v1586, 16
      %v1839 = vrot.slane %v1837, 5
      %v1840 = vsel %vm1596, %v1835, %v1839
      %v1841 = vshrl.u32 %v1586, 16
      %v1843 = vrot.slane %v1841, 4
      %v1844 = vor.u32 %v1843, %v1839
      %v1845 = vrot.slane %v1844, 4
      %v1847 = vshll.u32 %v1587, 16
      %v1849 = vrot.slane %v1847, 5
      %v1850 = vsel %vm1596, %v1845, %v1849
      %v1851 = vshrl.u32 %v1587, 16
      %v1853 = vrot.slane %v1851, 4
      %v1854 = vor.u32 %v1853, %v1849
      %v1855 = vrot.slane %v1854, 4
      %v1857 = vshll.u32 %v1588, 16
      %v1859 = vrot.slane %v1857, 5
      %v1860 = vsel %vm1596, %v1855, %v1859
      %v1861 = vshrl.u32 %v1588, 16
      %v1863 = vrot.slane %v1861, 4
      %v1864 = vor.u32 %v1863, %v1859
      %v1865 = vrot.slane %v1864, 4
      %v1867 = vshll.u32 %v1589, 16
      %v1869 = vrot.slane %v1867, 5
      %v1870 = vsel %vm1596, %v1865, %v1869
      %v1871 = vshrl.u32 %v1589, 16
      %v1873 = vrot.slane %v1871, 4
      %v1874 = vor.u32 %v1873, %v1869
      %v1875 = vrot.slane %v1874, 4
      %v1877 = vshll.u32 %v1590, 16
      %v1879 = vrot.slane %v1877, 5
      %v1880 = vsel %vm1596, %v1875, %v1879
      %v1881 = vshrl.u32 %v1590, 16
      %v1883 = vrot.slane %v1881, 4
      %v1884 = vor.u32 %v1883, %v1879
      %v1885 = vrot.slane %v1884, 4
      %v1887 = vshll.u32 %v1591, 16
      %v1889 = vrot.slane %v1887, 5
      %v1890 = vsel %vm1596, %v1885, %v1889
      %v1891 = vshrl.u32 %v1591, 16
      %v1893 = vrot.slane %v1891, 4
      %v1894 = vor.u32 %v1893, %v1889
      %v1895 = vrot.slane %v1894, 4
      %v1897 = vshll.u32 %v1592, 16
      %v1899 = vrot.slane %v1897, 5
      %v1900 = vsel %vm1596, %v1895, %v1899
      %v1901 = vshrl.u32 %v1592, 16
      %v1903 = vrot.slane %v1901, 4
      %v1904 = vor.u32 %v1903, %v1899
      %v1905 = vrot.slane %v1904, 4
      %v1907 = vshll.u32 %v1593, 16
      %v1909 = vrot.slane %v1907, 5
      %v1910 = vsel %vm1596, %v1905, %v1909
      %v1911 = vshrl.u32 %v1593, 16
      %v1913 = vrot.slane %v1911, 4
      %v1914 = vor.u32 %v1913, %v1909
      %v1915 = vrot.slane %v1914, 4
      %vm1916 = vcmp.ne.s16.totalorder %v1600, 0
      %vm1917 = vcmp.ne.s16.totalorder %v1610, 0
      %vm1918 = vcmp.ne.s16.totalorder %v1620, 0
      %vm1919 = vcmp.ne.s16.totalorder %v1630, 0
      %vm1920 = vcmp.ne.s16.totalorder %v1640, 0
      %vm1921 = vcmp.ne.s16.totalorder %v1650, 0
      %vm1922 = vcmp.ne.s16.totalorder %v1660, 0
      %vm1923 = vcmp.ne.s16.totalorder %v1670, 0
      %vm1924 = vcmp.ne.s16.totalorder %v1680, 0
      %vm1925 = vcmp.ne.s16.totalorder %v1690, 0
      %vm1926 = vcmp.ne.s16.totalorder %v1700, 0
      %vm1927 = vcmp.ne.s16.totalorder %v1710, 0
      %vm1928 = vcmp.ne.s16.totalorder %v1720, 0
      %vm1929 = vcmp.ne.s16.totalorder %v1730, 0
      %vm1930 = vcmp.ne.s16.totalorder %v1740, 0
      %vm1931 = vcmp.ne.s16.totalorder %v1750, 0
      %vm1932 = vcmp.ne.s16.totalorder %v1760, 0
      %vm1933 = vcmp.ne.s16.totalorder %v1770, 0
      %vm1934 = vcmp.ne.s16.totalorder %v1780, 0
      %vm1935 = vcmp.ne.s16.totalorder %v1790, 0
      %vm1936 = vcmp.ne.s16.totalorder %v1800, 0
      %vm1937 = vcmp.ne.s16.totalorder %v1810, 0
      %vm1938 = vcmp.ne.s16.totalorder %v1820, 0
      %vm1939 = vcmp.ne.s16.totalorder %v1830, 0
      %vm1940 = vcmp.ne.s16.totalorder %v1840, 0
      %vm1941 = vcmp.ne.s16.totalorder %v1850, 0
      %vm1942 = vcmp.ne.s16.totalorder %v1860, 0
      %vm1943 = vcmp.ne.s16.totalorder %v1870, 0
      %vm1944 = vcmp.ne.s16.totalorder %v1880, 0
      %vm1945 = vcmp.ne.s16.totalorder %v1890, 0
      %vm1946 = vcmp.ne.s16.totalorder %v1900, 0
      %vm1947 = vcmp.ne.s16.totalorder %v1910, 0
      %vm1948 = vcmp.ne.s16.totalorder %v1915, 0
      %v1949 = vsel %vm1916, %v1433, 0
      %v1950 = vsel %vm1917, %v1434, 0
      %v1951 = vsel %vm1918, %v1435, 0
      %v1952 = vsel %vm1919, %v1436, 0
      %v1953 = vsel %vm1920, %v1437, 0
      %v1954 = vsel %vm1921, %v1438, 0
      %v1955 = vsel %vm1922, %v1439, 0
      %v1956 = vsel %vm1923, %v1440, 0
      %v1957 = vsel %vm1924, %v1441, 0
      %v1958 = vsel %vm1925, %v1442, 0
      %v1959 = vsel %vm1926, %v1443, 0
      %v1960 = vsel %vm1927, %v1444, 0
      %v1961 = vsel %vm1928, %v1445, 0
      %v1962 = vsel %vm1929, %v1446, 0
      %v1963 = vsel %vm1930, %v1447, 0
      %v1964 = vsel %vm1931, %v1448, 0
      %v1965 = vsel %vm1932, %v1449, 0
      %v1966 = vsel %vm1933, %v1450, 0
      %v1967 = vsel %vm1934, %v1451, 0
      %v1968 = vsel %vm1935, %v1452, 0
      %v1969 = vsel %vm1936, %v1453, 0
      %v1970 = vsel %vm1937, %v1454, 0
      %v1971 = vsel %vm1938, %v1455, 0
      %v1972 = vsel %vm1939, %v1456, 0
      %v1973 = vsel %vm1940, %v1457, 0
      %v1974 = vsel %vm1941, %v1458, 0
      %v1975 = vsel %vm1942, %v1459, 0
      %v1976 = vsel %vm1943, %v1460, 0
      %v1977 = vsel %vm1944, %v1461, 0
      %v1978 = vsel %vm1945, %v1462, 0
      %v1979 = vsel %vm1946, %v1463, 0
      %v1980 = vsel %vm1947, %v1464, 0
      %v1981 = vsel %vm1948, %v1465, 0
      %v1982 = vld [vmem:[#allocation2 + $0x88] sm:$0x1]
      %v1983 = vsel %vm1401, 1, 0
      %v1984 = vsel %vm1402, 1, 0
      %v1985 = vsel %vm1403, 1, 0
      %v1986 = vsel %vm1404, 1, 0
      %v1987 = vsel %vm1405, 1, 0
      %v1988 = vsel %vm1406, 1, 0
      %v1989 = vsel %vm1407, 1, 0
      %v1990 = vsel %vm1408, 1, 0
      %v1991 = vsel %vm1409, 1, 0
      %v1992 = vsel %vm1410, 1, 0
      %v1993 = vsel %vm1411, 1, 0
      %v1994 = vsel %vm1412, 1, 0
      %v1995 = vsel %vm1413, 1, 0
      %v1996 = vsel %vm1414, 1, 0
      %v1997 = vsel %vm1415, 1, 0
      %v1998 = vsel %vm1416, 1, 0
      %v1999 = vsel %vm1417, 1, 0
      %v2000 = vsel %vm1418, 1, 0
      %v2001 = vsel %vm1419, 1, 0
      %v2002 = vsel %vm1420, 1, 0
      %v2003 = vsel %vm1421, 1, 0
      %v2004 = vsel %vm1422, 1, 0
      %v2005 = vsel %vm1423, 1, 0
      %v2006 = vsel %vm1424, 1, 0
      %v2007 = vsel %vm1425, 1, 0
      %v2008 = vsel %vm1426, 1, 0
      %v2009 = vsel %vm1427, 1, 0
      %v2010 = vsel %vm1428, 1, 0
      %v2011 = vsel %vm1429, 1, 0
      %v2012 = vsel %vm1430, 1, 0
      %v2013 = vsel %vm1431, 1, 0
      %v2014 = vsel %vm1432, 1, 0
      %vm2015 = vcmp.eq.s32.totalorder %v1983, 1
      %vm2016 = vcmp.eq.s32.totalorder %v1984, 1
      %vm2017 = vcmp.eq.s32.totalorder %v1985, 1
      %vm2018 = vcmp.eq.s32.totalorder %v1986, 1
      %vm2019 = vcmp.eq.s32.totalorder %v1987, 1
      %vm2020 = vcmp.eq.s32.totalorder %v1988, 1
      %vm2021 = vcmp.eq.s32.totalorder %v1989, 1
      %vm2022 = vcmp.eq.s32.totalorder %v1990, 1
      %vm2023 = vcmp.eq.s32.totalorder %v1991, 1
      %vm2024 = vcmp.eq.s32.totalorder %v1992, 1
      %vm2025 = vcmp.eq.s32.totalorder %v1993, 1
      %vm2026 = vcmp.eq.s32.totalorder %v1994, 1
      %vm2027 = vcmp.eq.s32.totalorder %v1995, 1
      %vm2028 = vcmp.eq.s32.totalorder %v1996, 1
      %vm2029 = vcmp.eq.s32.totalorder %v1997, 1
      %vm2030 = vcmp.eq.s32.totalorder %v1998, 1
      %vm2031 = vcmp.eq.s32.totalorder %v1999, 1
      %vm2032 = vcmp.eq.s32.totalorder %v2000, 1
      %vm2033 = vcmp.eq.s32.totalorder %v2001, 1
      %vm2034 = vcmp.eq.s32.totalorder %v2002, 1
      %vm2035 = vcmp.eq.s32.totalorder %v2003, 1
      %vm2036 = vcmp.eq.s32.totalorder %v2004, 1
      %vm2037 = vcmp.eq.s32.totalorder %v2005, 1
      %vm2038 = vcmp.eq.s32.totalorder %v2006, 1
      %vm2039 = vcmp.eq.s32.totalorder %v2007, 1
      %vm2040 = vcmp.eq.s32.totalorder %v2008, 1
      %vm2041 = vcmp.eq.s32.totalorder %v2009, 1
      %vm2042 = vcmp.eq.s32.totalorder %v2010, 1
      %vm2043 = vcmp.eq.s32.totalorder %v2011, 1
      %vm2044 = vcmp.eq.s32.totalorder %v2012, 1
      %vm2045 = vcmp.eq.s32.totalorder %v2013, 1
      %vm2046 = vcmp.eq.s32.totalorder %v2014, 1
      %vm2047 = vmpackc.low %vm2015, %vm2015
      %vm2048 = vmpackc.low %vm2016, %vm2016
      %vm2049 = vmpackc.low %vm2017, %vm2017
      %vm2050 = vmpackc.low %vm2018, %vm2018
      %vm2051 = vmpackc.low %vm2019, %vm2019
      %vm2052 = vmpackc.low %vm2020, %vm2020
      %vm2053 = vmpackc.low %vm2021, %vm2021
      %vm2054 = vmpackc.low %vm2022, %vm2022
      %vm2055 = vmpackc.low %vm2023, %vm2023
      %vm2056 = vmpackc.low %vm2024, %vm2024
      %vm2057 = vmpackc.low %vm2025, %vm2025
      %vm2058 = vmpackc.low %vm2026, %vm2026
      %vm2059 = vmpackc.low %vm2027, %vm2027
      %vm2060 = vmpackc.low %vm2028, %vm2028
      %vm2061 = vmpackc.low %vm2029, %vm2029
      %vm2062 = vmpackc.low %vm2030, %vm2030
      %vm2063 = vmpackc.low %vm2031, %vm2031
      %vm2064 = vmpackc.low %vm2032, %vm2032
      %vm2065 = vmpackc.low %vm2033, %vm2033
      %vm2066 = vmpackc.low %vm2034, %vm2034
      %vm2067 = vmpackc.low %vm2035, %vm2035
      %vm2068 = vmpackc.low %vm2036, %vm2036
      %vm2069 = vmpackc.low %vm2037, %vm2037
      %vm2070 = vmpackc.low %vm2038, %vm2038
      %vm2071 = vmpackc.low %vm2039, %vm2039
      %vm2072 = vmpackc.low %vm2040, %vm2040
      %vm2073 = vmpackc.low %vm2041, %vm2041
      %vm2074 = vmpackc.low %vm2042, %vm2042
      %vm2075 = vmpackc.low %vm2043, %vm2043
      %vm2076 = vmpackc.low %vm2044, %vm2044
      %vm2077 = vmpackc.low %vm2045, %vm2045
      %vm2078 = vmpackc.low %vm2046, %vm2046
      %v2079 = vsel %vm2047, 65537, 0
      %v2080 = vsel %vm2048, 65537, 0
      %v2081 = vsel %vm2049, 65537, 0
      %v2082 = vsel %vm2050, 65537, 0
      %v2083 = vsel %vm2051, 65537, 0
      %v2084 = vsel %vm2052, 65537, 0
      %v2085 = vsel %vm2053, 65537, 0
      %v2086 = vsel %vm2054, 65537, 0
      %v2087 = vsel %vm2055, 65537, 0
      %v2088 = vsel %vm2056, 65537, 0
      %v2089 = vsel %vm2057, 65537, 0
      %v2090 = vsel %vm2058, 65537, 0
      %v2091 = vsel %vm2059, 65537, 0
      %v2092 = vsel %vm2060, 65537, 0
      %v2093 = vsel %vm2061, 65537, 0
      %v2094 = vsel %vm2062, 65537, 0
      %v2095 = vsel %vm2063, 65537, 0
      %v2096 = vsel %vm2064, 65537, 0
      %v2097 = vsel %vm2065, 65537, 0
      %v2098 = vsel %vm2066, 65537, 0
      %v2099 = vsel %vm2067, 65537, 0
      %v2100 = vsel %vm2068, 65537, 0
      %v2101 = vsel %vm2069, 65537, 0
      %v2102 = vsel %vm2070, 65537, 0
      %v2103 = vsel %vm2071, 65537, 0
      %v2104 = vsel %vm2072, 65537, 0
      %v2105 = vsel %vm2073, 65537, 0
      %v2106 = vsel %vm2074, 65537, 0
      %v2107 = vsel %vm2075, 65537, 0
      %v2108 = vsel %vm2076, 65537, 0
      %v2109 = vsel %vm2077, 65537, 0
      %v2110 = vsel %vm2078, 65537, 0
      %vm2111 = vsmask.f32 256
      %vm2112 = vsmask.f32 4368
      %vm2113 = vmor %vm2111, %vm2112
      %v2115 = vshrl.u32 %v2079, 16
      %v2117 = vrot.slane %v2115, 7
      %v2118 = vshll.u32 %v2079, 16
      %v2120 = vor.u32 %v2117, %v2118
      %v2121 = vrot.slane %v2117, 4
      %v2123 = vshrl.u32 %v2080, 16
      %v2125 = vrot.slane %v2123, 7
      %v2126 = vshll.u32 %v2080, 16
      %v2128 = vor.u32 %v2125, %v2126
      %v2129 = vsel %vm2113, %v2121, %v2128
      %v2130 = vrot.slane %v2125, 4
      %v2132 = vshrl.u32 %v2081, 16
      %v2134 = vrot.slane %v2132, 7
      %v2135 = vshll.u32 %v2081, 16
      %v2137 = vor.u32 %v2134, %v2135
      %v2138 = vsel %vm2113, %v2130, %v2137
      %v2139 = vrot.slane %v2134, 4
      %v2141 = vshrl.u32 %v2082, 16
      %v2143 = vrot.slane %v2141, 7
      %v2144 = vshll.u32 %v2082, 16
      %v2146 = vor.u32 %v2143, %v2144
      %v2147 = vsel %vm2113, %v2139, %v2146
      %v2148 = vrot.slane %v2143, 4
      %v2150 = vshrl.u32 %v2083, 16
      %v2152 = vrot.slane %v2150, 7
      %v2153 = vshll.u32 %v2083, 16
      %v2155 = vor.u32 %v2152, %v2153
      %v2156 = vsel %vm2113, %v2148, %v2155
      %v2157 = vrot.slane %v2152, 4
      %v2159 = vshrl.u32 %v2084, 16
      %v2161 = vrot.slane %v2159, 7
      %v2162 = vshll.u32 %v2084, 16
      %v2164 = vor.u32 %v2161, %v2162
      %v2165 = vsel %vm2113, %v2157, %v2164
      %v2166 = vrot.slane %v2161, 4
      %v2168 = vshrl.u32 %v2085, 16
      %v2170 = vrot.slane %v2168, 7
      %v2171 = vshll.u32 %v2085, 16
      %v2173 = vor.u32 %v2170, %v2171
      %v2174 = vsel %vm2113, %v2166, %v2173
      %v2175 = vrot.slane %v2170, 4
      %v2177 = vshrl.u32 %v2086, 16
      %v2179 = vrot.slane %v2177, 7
      %v2180 = vshll.u32 %v2086, 16
      %v2182 = vor.u32 %v2179, %v2180
      %v2183 = vsel %vm2113, %v2175, %v2182
      %v2184 = vrot.slane %v2179, 4
      %v2186 = vshrl.u32 %v2087, 16
      %v2188 = vrot.slane %v2186, 7
      %v2189 = vshll.u32 %v2087, 16
      %v2191 = vor.u32 %v2188, %v2189
      %v2192 = vsel %vm2113, %v2184, %v2191
      %v2193 = vrot.slane %v2188, 4
      %v2195 = vshrl.u32 %v2088, 16
      %v2197 = vrot.slane %v2195, 7
      %v2198 = vshll.u32 %v2088, 16
      %v2200 = vor.u32 %v2197, %v2198
      %v2201 = vsel %vm2113, %v2193, %v2200
      %v2202 = vrot.slane %v2197, 4
      %v2204 = vshrl.u32 %v2089, 16
      %v2206 = vrot.slane %v2204, 7
      %v2207 = vshll.u32 %v2089, 16
      %v2209 = vor.u32 %v2206, %v2207
      %v2210 = vsel %vm2113, %v2202, %v2209
      %v2211 = vrot.slane %v2206, 4
      %v2213 = vshrl.u32 %v2090, 16
      %v2215 = vrot.slane %v2213, 7
      %v2216 = vshll.u32 %v2090, 16
      %v2218 = vor.u32 %v2215, %v2216
      %v2219 = vsel %vm2113, %v2211, %v2218
      %v2220 = vrot.slane %v2215, 4
      %v2222 = vshrl.u32 %v2091, 16
      %v2224 = vrot.slane %v2222, 7
      %v2225 = vshll.u32 %v2091, 16
      %v2227 = vor.u32 %v2224, %v2225
      %v2228 = vsel %vm2113, %v2220, %v2227
      %v2229 = vrot.slane %v2224, 4
      %v2231 = vshrl.u32 %v2092, 16
      %v2233 = vrot.slane %v2231, 7
      %v2234 = vshll.u32 %v2092, 16
      %v2236 = vor.u32 %v2233, %v2234
      %v2237 = vsel %vm2113, %v2229, %v2236
      %v2238 = vrot.slane %v2233, 4
      %v2240 = vshrl.u32 %v2093, 16
      %v2242 = vrot.slane %v2240, 7
      %v2243 = vshll.u32 %v2093, 16
      %v2245 = vor.u32 %v2242, %v2243
      %v2246 = vsel %vm2113, %v2238, %v2245
      %v2247 = vrot.slane %v2242, 4
      %v2249 = vshrl.u32 %v2094, 16
      %v2251 = vrot.slane %v2249, 7
      %v2252 = vshll.u32 %v2094, 16
      %v2254 = vor.u32 %v2251, %v2252
      %v2255 = vsel %vm2113, %v2247, %v2254
      %v2256 = vrot.slane %v2251, 4
      %v2258 = vshrl.u32 %v2095, 16
      %v2260 = vrot.slane %v2258, 7
      %v2261 = vshll.u32 %v2095, 16
      %v2263 = vor.u32 %v2260, %v2261
      %v2264 = vsel %vm2113, %v2256, %v2263
      %v2265 = vrot.slane %v2260, 4
      %v2267 = vshrl.u32 %v2096, 16
      %v2269 = vrot.slane %v2267, 7
      %v2270 = vshll.u32 %v2096, 16
      %v2272 = vor.u32 %v2269, %v2270
      %v2273 = vsel %vm2113, %v2265, %v2272
      %v2274 = vrot.slane %v2269, 4
      %v2276 = vshrl.u32 %v2097, 16
      %v2278 = vrot.slane %v2276, 7
      %v2279 = vshll.u32 %v2097, 16
      %v2281 = vor.u32 %v2278, %v2279
      %v2282 = vsel %vm2113, %v2274, %v2281
      %v2283 = vrot.slane %v2278, 4
      %v2285 = vshrl.u32 %v2098, 16
      %v2287 = vrot.slane %v2285, 7
      %v2288 = vshll.u32 %v2098, 16
      %v2290 = vor.u32 %v2287, %v2288
      %v2291 = vsel %vm2113, %v2283, %v2290
      %v2292 = vrot.slane %v2287, 4
      %v2294 = vshrl.u32 %v2099, 16
      %v2296 = vrot.slane %v2294, 7
      %v2297 = vshll.u32 %v2099, 16
      %v2299 = vor.u32 %v2296, %v2297
      %v2300 = vsel %vm2113, %v2292, %v2299
      %v2301 = vrot.slane %v2296, 4
      %v2303 = vshrl.u32 %v2100, 16
      %v2305 = vrot.slane %v2303, 7
      %v2306 = vshll.u32 %v2100, 16
      %v2308 = vor.u32 %v2305, %v2306
      %v2309 = vsel %vm2113, %v2301, %v2308
      %v2310 = vrot.slane %v2305, 4
      %v2312 = vshrl.u32 %v2101, 16
      %v2314 = vrot.slane %v2312, 7
      %v2315 = vshll.u32 %v2101, 16
      %v2317 = vor.u32 %v2314, %v2315
      %v2318 = vsel %vm2113, %v2310, %v2317
      %v2319 = vrot.slane %v2314, 4
      %v2321 = vshrl.u32 %v2102, 16
      %v2323 = vrot.slane %v2321, 7
      %v2324 = vshll.u32 %v2102, 16
      %v2326 = vor.u32 %v2323, %v2324
      %v2327 = vsel %vm2113, %v2319, %v2326
      %v2328 = vrot.slane %v2323, 4
      %v2330 = vshrl.u32 %v2103, 16
      %v2332 = vrot.slane %v2330, 7
      %v2333 = vshll.u32 %v2103, 16
      %v2335 = vor.u32 %v2332, %v2333
      %v2336 = vsel %vm2113, %v2328, %v2335
      %v2337 = vrot.slane %v2332, 4
      %v2339 = vshrl.u32 %v2104, 16
      %v2341 = vrot.slane %v2339, 7
      %v2342 = vshll.u32 %v2104, 16
      %v2344 = vor.u32 %v2341, %v2342
      %v2345 = vsel %vm2113, %v2337, %v2344
      %v2346 = vrot.slane %v2341, 4
      %v2348 = vshrl.u32 %v2105, 16
      %v2350 = vrot.slane %v2348, 7
      %v2351 = vshll.u32 %v2105, 16
      %v2353 = vor.u32 %v2350, %v2351
      %v2354 = vsel %vm2113, %v2346, %v2353
      %v2355 = vrot.slane %v2350, 4
      %v2357 = vshrl.u32 %v2106, 16
      %v2359 = vrot.slane %v2357, 7
      %v2360 = vshll.u32 %v2106, 16
      %v2362 = vor.u32 %v2359, %v2360
      %v2363 = vsel %vm2113, %v2355, %v2362
      %v2364 = vrot.slane %v2359, 4
      %v2366 = vshrl.u32 %v2107, 16
      %v2368 = vrot.slane %v2366, 7
      %v2369 = vshll.u32 %v2107, 16
      %v2371 = vor.u32 %v2368, %v2369
      %v2372 = vsel %vm2113, %v2364, %v2371
      %v2373 = vrot.slane %v2368, 4
      %v2375 = vshrl.u32 %v2108, 16
      %v2377 = vrot.slane %v2375, 7
      %v2378 = vshll.u32 %v2108, 16
      %v2380 = vor.u32 %v2377, %v2378
      %v2381 = vsel %vm2113, %v2373, %v2380
      %v2382 = vrot.slane %v2377, 4
      %v2384 = vshrl.u32 %v2109, 16
      %v2386 = vrot.slane %v2384, 7
      %v2387 = vshll.u32 %v2109, 16
      %v2389 = vor.u32 %v2386, %v2387
      %v2390 = vsel %vm2113, %v2382, %v2389
      %v2391 = vrot.slane %v2386, 4
      %v2393 = vshrl.u32 %v2110, 16
      %v2395 = vrot.slane %v2393, 7
      %v2396 = vshll.u32 %v2110, 16
      %v2398 = vor.u32 %v2395, %v2396
      %v2399 = vsel %vm2113, %v2391, %v2398
      %v2400 = vrot.slane %v2395, 4
      %vm2401 = vcmp.ne.s16.totalorder %v2120, 0
      %vm2402 = vcmp.ne.s16.totalorder %v2129, 0
      %vm2403 = vcmp.ne.s16.totalorder %v2138, 0
      %vm2404 = vcmp.ne.s16.totalorder %v2147, 0
      %vm2405 = vcmp.ne.s16.totalorder %v2156, 0
      %vm2406 = vcmp.ne.s16.totalorder %v2165, 0
      %vm2407 = vcmp.ne.s16.totalorder %v2174, 0
      %vm2408 = vcmp.ne.s16.totalorder %v2183, 0
      %vm2409 = vcmp.ne.s16.totalorder %v2192, 0
      %vm2410 = vcmp.ne.s16.totalorder %v2201, 0
      %vm2411 = vcmp.ne.s16.totalorder %v2210, 0
      %vm2412 = vcmp.ne.s16.totalorder %v2219, 0
      %vm2413 = vcmp.ne.s16.totalorder %v2228, 0
      %vm2414 = vcmp.ne.s16.totalorder %v2237, 0
      %vm2415 = vcmp.ne.s16.totalorder %v2246, 0
      %vm2416 = vcmp.ne.s16.totalorder %v2255, 0
      %vm2417 = vcmp.ne.s16.totalorder %v2264, 0
      %vm2418 = vcmp.ne.s16.totalorder %v2273, 0
      %vm2419 = vcmp.ne.s16.totalorder %v2282, 0
      %vm2420 = vcmp.ne.s16.totalorder %v2291, 0
      %vm2421 = vcmp.ne.s16.totalorder %v2300, 0
      %vm2422 = vcmp.ne.s16.totalorder %v2309, 0
      %vm2423 = vcmp.ne.s16.totalorder %v2318, 0
      %vm2424 = vcmp.ne.s16.totalorder %v2327, 0
      %vm2425 = vcmp.ne.s16.totalorder %v2336, 0
      %vm2426 = vcmp.ne.s16.totalorder %v2345, 0
      %vm2427 = vcmp.ne.s16.totalorder %v2354, 0
      %vm2428 = vcmp.ne.s16.totalorder %v2363, 0
      %vm2429 = vcmp.ne.s16.totalorder %v2372, 0
      %vm2430 = vcmp.ne.s16.totalorder %v2381, 0
      %vm2431 = vcmp.ne.s16.totalorder %v2390, 0
      %vm2432 = vcmp.ne.s16.totalorder %v2399, 0
      %vm2433 = vcmp.ne.s16.totalorder %v2400, 0
      %v2434 = vsel %vm2401, %v1434, 0
      %v2435 = vsel %vm2402, %v1435, 0
      %v2436 = vsel %vm2403, %v1436, 0
      %v2437 = vsel %vm2404, %v1437, 0
      %v2438 = vsel %vm2405, %v1438, 0
      %v2439 = vsel %vm2406, %v1439, 0
      %v2440 = vsel %vm2407, %v1440, 0
      %v2441 = vsel %vm2408, %v1441, 0
      %v2442 = vsel %vm2409, %v1442, 0
      %v2443 = vsel %vm2410, %v1443, 0
      %v2444 = vsel %vm2411, %v1444, 0
      %v2445 = vsel %vm2412, %v1445, 0
      %v2446 = vsel %vm2413, %v1446, 0
      %v2447 = vsel %vm2414, %v1447, 0
      %v2448 = vsel %vm2415, %v1448, 0
      %v2449 = vsel %vm2416, %v1449, 0
      %v2450 = vsel %vm2417, %v1450, 0
      %v2451 = vsel %vm2418, %v1451, 0
      %v2452 = vsel %vm2419, %v1452, 0
      %v2453 = vsel %vm2420, %v1453, 0
      %v2454 = vsel %vm2421, %v1454, 0
      %v2455 = vsel %vm2422, %v1455, 0
      %v2456 = vsel %vm2423, %v1456, 0
      %v2457 = vsel %vm2424, %v1457, 0
      %v2458 = vsel %vm2425, %v1458, 0
      %v2459 = vsel %vm2426, %v1459, 0
      %v2460 = vsel %vm2427, %v1460, 0
      %v2461 = vsel %vm2428, %v1461, 0
      %v2462 = vsel %vm2429, %v1462, 0
      %v2463 = vsel %vm2430, %v1463, 0
      %v2464 = vsel %vm2431, %v1464, 0
      %v2465 = vsel %vm2432, %v1465, 0
      %v2466 = vsel %vm2433, %v1982, 0
      %v2467 = vld [vmem:[#allocation2 + $0xc] sm:$0x8]
      %v2468 = vld [vmem:[#allocation2 + $0x88] sm:$0xf]
      %v2469 = vld [vmem:[#allocation2 + $0x8c] sm:$0xf]
      %v2470 = vsel %vm1916, %v2467, 0
      %v2471 = vsel %vm1917, %v1436, 0
      %v2472 = vsel %vm1918, %v1437, 0
      %v2473 = vsel %vm1919, %v1438, 0
      %v2474 = vsel %vm1920, %v1439, 0
      %v2475 = vsel %vm1921, %v1440, 0
      %v2476 = vsel %vm1922, %v1441, 0
      %v2477 = vsel %vm1923, %v1442, 0
      %v2478 = vsel %vm1924, %v1443, 0
      %v2479 = vsel %vm1925, %v1444, 0
      %v2480 = vsel %vm1926, %v1445, 0
      %v2481 = vsel %vm1927, %v1446, 0
      %v2482 = vsel %vm1928, %v1447, 0
      %v2483 = vsel %vm1929, %v1448, 0
      %v2484 = vsel %vm1930, %v1449, 0
      %v2485 = vsel %vm1931, %v1450, 0
      %v2486 = vsel %vm1932, %v1451, 0
      %v2487 = vsel %vm1933, %v1452, 0
      %v2488 = vsel %vm1934, %v1453, 0
      %v2489 = vsel %vm1935, %v1454, 0
      %v2490 = vsel %vm1936, %v1455, 0
      %v2491 = vsel %vm1937, %v1456, 0
      %v2492 = vsel %vm1938, %v1457, 0
      %v2493 = vsel %vm1939, %v1458, 0
      %v2494 = vsel %vm1940, %v1459, 0
      %v2495 = vsel %vm1941, %v1460, 0
      %v2496 = vsel %vm1942, %v1461, 0
      %v2497 = vsel %vm1943, %v1462, 0
      %v2498 = vsel %vm1944, %v1463, 0
      %v2499 = vsel %vm1945, %v1464, 0
      %v2500 = vsel %vm1946, %v1465, 0
      %v2501 = vsel %vm1947, %v2468, 0
      %v2502 = vsel %vm1948, %v2469, 0
      %v2503 = vld [vmem:[#allocation2 + $0x90] sm:$0x1]
      %v2504 = vsel %vm2401, %v1436, 0
      %v2505 = vsel %vm2402, %v1437, 0
      %v2506 = vsel %vm2403, %v1438, 0
      %v2507 = vsel %vm2404, %v1439, 0
      %v2508 = vsel %vm2405, %v1440, 0
      %v2509 = vsel %vm2406, %v1441, 0
      %v2510 = vsel %vm2407, %v1442, 0
      %v2511 = vsel %vm2408, %v1443, 0
      %v2512 = vsel %vm2409, %v1444, 0
      %v2513 = vsel %vm2410, %v1445, 0
      %v2514 = vsel %vm2411, %v1446, 0
      %v2515 = vsel %vm2412, %v1447, 0
      %v2516 = vsel %vm2413, %v1448, 0
      %v2517 = vsel %vm2414, %v1449, 0
      %v2518 = vsel %vm2415, %v1450, 0
      %v2519 = vsel %vm2416, %v1451, 0
      %v2520 = vsel %vm2417, %v1452, 0
      %v2521 = vsel %vm2418, %v1453, 0
      %v2522 = vsel %vm2419, %v1454, 0
      %v2523 = vsel %vm2420, %v1455, 0
      %v2524 = vsel %vm2421, %v1456, 0
      %v2525 = vsel %vm2422, %v1457, 0
      %v2526 = vsel %vm2423, %v1458, 0
      %v2527 = vsel %vm2424, %v1459, 0
      %v2528 = vsel %vm2425, %v1460, 0
      %v2529 = vsel %vm2426, %v1461, 0
      %v2530 = vsel %vm2427, %v1462, 0
      %v2531 = vsel %vm2428, %v1463, 0
      %v2532 = vsel %vm2429, %v1464, 0
      %v2533 = vsel %vm2430, %v1465, 0
      %v2534 = vsel %vm2431, %v2468, 0
      %v2535 = vsel %vm2432, %v2469, 0
      %v2536 = vsel %vm2433, %v2503, 0
      %v2537 = vld [vmem:[#allocation2 + $0x14] sm:$0x8]
      %v2538 = vld [vmem:[#allocation2 + $0x90] sm:$0xf]
      %v2539 = vld [vmem:[#allocation2 + $0x94] sm:$0xf]
      %v2540 = vsel %vm1916, %v2537, 0
      %v2541 = vsel %vm1917, %v1438, 0
      %v2542 = vsel %vm1918, %v1439, 0
      %v2543 = vsel %vm1919, %v1440, 0
      %v2544 = vsel %vm1920, %v1441, 0
      %v2545 = vsel %vm1921, %v1442, 0
      %v2546 = vsel %vm1922, %v1443, 0
      %v2547 = vsel %vm1923, %v1444, 0
      %v2548 = vsel %vm1924, %v1445, 0
      %v2549 = vsel %vm1925, %v1446, 0
      %v2550 = vsel %vm1926, %v1447, 0
      %v2551 = vsel %vm1927, %v1448, 0
      %v2552 = vsel %vm1928, %v1449, 0
      %v2553 = vsel %vm1929, %v1450, 0
      %v2554 = vsel %vm1930, %v1451, 0
      %v2555 = vsel %vm1931, %v1452, 0
      %v2556 = vsel %vm1932, %v1453, 0
      %v2557 = vsel %vm1933, %v1454, 0
      %v2558 = vsel %vm1934, %v1455, 0
      %v2559 = vsel %vm1935, %v1456, 0
      %v2560 = vsel %vm1936, %v1457, 0
      %v2561 = vsel %vm1937, %v1458, 0
      %v2562 = vsel %vm1938, %v1459, 0
      %v2563 = vsel %vm1939, %v1460, 0
      %v2564 = vsel %vm1940, %v1461, 0
      %v2565 = vsel %vm1941, %v1462, 0
      %v2566 = vsel %vm1942, %v1463, 0
      %v2567 = vsel %vm1943, %v1464, 0
      %v2568 = vsel %vm1944, %v1465, 0
      %v2569 = vsel %vm1945, %v2468, 0
      %v2570 = vsel %vm1946, %v2469, 0
      %v2571 = vsel %vm1947, %v2538, 0
      %v2572 = vsel %vm1948, %v2539, 0
      %v2573 = vld [vmem:[#allocation2 + $0x98] sm:$0x1]
      %v2574 = vsel %vm2401, %v1438, 0
      %v2575 = vsel %vm2402, %v1439, 0
      %v2576 = vsel %vm2403, %v1440, 0
      %v2577 = vsel %vm2404, %v1441, 0
      %v2578 = vsel %vm2405, %v1442, 0
      %v2579 = vsel %vm2406, %v1443, 0
      %v2580 = vsel %vm2407, %v1444, 0
      %v2581 = vsel %vm2408, %v1445, 0
      %v2582 = vsel %vm2409, %v1446, 0
      %v2583 = vsel %vm2410, %v1447, 0
      %v2584 = vsel %vm2411, %v1448, 0
      %v2585 = vsel %vm2412, %v1449, 0
      %v2586 = vsel %vm2413, %v1450, 0
      %v2587 = vsel %vm2414, %v1451, 0
      %v2588 = vsel %vm2415, %v1452, 0
      %v2589 = vsel %vm2416, %v1453, 0
      %v2590 = vsel %vm2417, %v1454, 0
      %v2591 = vsel %vm2418, %v1455, 0
      %v2592 = vsel %vm2419, %v1456, 0
      %v2593 = vsel %vm2420, %v1457, 0
      %v2594 = vsel %vm2421, %v1458, 0
      %v2595 = vsel %vm2422, %v1459, 0
      %v2596 = vsel %vm2423, %v1460, 0
      %v2597 = vsel %vm2424, %v1461, 0
      %v2598 = vsel %vm2425, %v1462, 0
      %v2599 = vsel %vm2426, %v1463, 0
      %v2600 = vsel %vm2427, %v1464, 0
      %v2601 = vsel %vm2428, %v1465, 0
      %v2602 = vsel %vm2429, %v2468, 0
      %v2603 = vsel %vm2430, %v2469, 0
      %v2604 = vsel %vm2431, %v2538, 0
      %v2605 = vsel %vm2432, %v2539, 0
      %v2606 = vsel %vm2433, %v2573, 0
      %v2640 = vunpack.c.l.b16 %v1949
      %v2641 = vunpack.c.l.b16 %v1950
      %v2642 = vunpack.c.l.b16 %v1951
      %v2643 = vunpack.c.l.b16 %v1952
      %v2644 = vunpack.c.l.b16 %v1953
      %v2645 = vunpack.c.l.b16 %v1954
      %v2646 = vunpack.c.l.b16 %v1955
      %v2647 = vunpack.c.l.b16 %v1956
      %v2648 = vunpack.c.l.b16 %v1957
      %v2649 = vunpack.c.l.b16 %v1958
      %v2650 = vunpack.c.l.b16 %v1959
      %v2651 = vunpack.c.l.b16 %v1960
      %v2652 = vunpack.c.l.b16 %v1961
      %v2653 = vunpack.c.l.b16 %v1962
      %v2654 = vunpack.c.l.b16 %v1963
      %v2655 = vunpack.c.l.b16 %v1964
      %v2656 = vunpack.c.l.b16 %v1965
      %v2657 = vunpack.c.l.b16 %v1966
      %v2658 = vunpack.c.l.b16 %v1967
      %v2659 = vunpack.c.l.b16 %v1968
      %v2660 = vunpack.c.l.b16 %v1969
      %v2661 = vunpack.c.l.b16 %v1970
      %v2662 = vunpack.c.l.b16 %v1971
      %v2663 = vunpack.c.l.b16 %v1972
      %v2664 = vunpack.c.l.b16 %v1973
      %v2665 = vunpack.c.l.b16 %v1974
      %v2666 = vunpack.c.l.b16 %v1975
      %v2667 = vunpack.c.l.b16 %v1976
      %v2668 = vunpack.c.l.b16 %v1977
      %v2669 = vunpack.c.l.b16 %v1978
      %v2670 = vunpack.c.l.b16 %v1979
      %v2671 = vunpack.c.l.b16 %v1980
      %v2672 = vunpack.c.l.b16 %v1981
      %v2673 = vpack.c.b16 %v2641, %v2640
      %v2674 = vpack.c.b16 %v2643, %v2642
      %v2675 = vpack.c.b16 %v2645, %v2644
      %v2676 = vpack.c.b16 %v2647, %v2646
      %v2677 = vpack.c.b16 %v2649, %v2648
      %v2678 = vpack.c.b16 %v2651, %v2650
      %v2679 = vpack.c.b16 %v2653, %v2652
      %v2680 = vpack.c.b16 %v2655, %v2654
      %v2681 = vpack.c.b16 %v2657, %v2656
      %v2682 = vpack.c.b16 %v2659, %v2658
      %v2683 = vpack.c.b16 %v2661, %v2660
      %v2684 = vpack.c.b16 %v2663, %v2662
      %v2685 = vpack.c.b16 %v2665, %v2664
      %v2686 = vpack.c.b16 %v2667, %v2666
      %v2687 = vpack.c.b16 %v2669, %v2668
      %v2688 = vpack.c.b16 %v2671, %v2670
      %v2689 = vpack.c.b16 %v2672, %v2672
      %v2722 = vunpack.c.l.b16 %v1434
      %v2723 = vunpack.c.l.b16 %v1435
      %v2724 = vunpack.c.l.b16 %v1436
      %v2725 = vunpack.c.l.b16 %v1437
      %v2726 = vunpack.c.l.b16 %v1438
      %v2727 = vunpack.c.l.b16 %v1439
      %v2728 = vunpack.c.l.b16 %v1440
      %v2729 = vunpack.c.l.b16 %v1441
      %v2730 = vunpack.c.l.b16 %v1442
      %v2731 = vunpack.c.l.b16 %v1443
      %v2732 = vunpack.c.l.b16 %v1444
      %v2733 = vunpack.c.l.b16 %v1445
      %v2734 = vunpack.c.l.b16 %v1446
      %v2735 = vunpack.c.l.b16 %v1447
      %v2736 = vunpack.c.l.b16 %v1448
      %v2737 = vunpack.c.l.b16 %v1449
      %v2738 = vunpack.c.l.b16 %v1450
      %v2739 = vunpack.c.l.b16 %v1451
      %v2740 = vunpack.c.l.b16 %v1452
      %v2741 = vunpack.c.l.b16 %v1453
      %v2742 = vunpack.c.l.b16 %v1454
      %v2743 = vunpack.c.l.b16 %v1455
      %v2744 = vunpack.c.l.b16 %v1456
      %v2745 = vunpack.c.l.b16 %v1457
      %v2746 = vunpack.c.l.b16 %v1458
      %v2747 = vunpack.c.l.b16 %v1459
      %v2748 = vunpack.c.l.b16 %v1460
      %v2749 = vunpack.c.l.b16 %v1461
      %v2750 = vunpack.c.l.b16 %v1462
      %v2751 = vunpack.c.l.b16 %v1463
      %v2752 = vunpack.c.l.b16 %v1464
      %v2753 = vunpack.c.l.b16 %v1465
      %v2754 = vpack.c.b16 %v2723, %v2722
      %v2755 = vpack.c.b16 %v2725, %v2724
      %v2756 = vpack.c.b16 %v2727, %v2726
      %v2757 = vpack.c.b16 %v2729, %v2728
      %v2758 = vpack.c.b16 %v2731, %v2730
      %v2759 = vpack.c.b16 %v2733, %v2732
      %v2760 = vpack.c.b16 %v2735, %v2734
      %v2761 = vpack.c.b16 %v2737, %v2736
      %v2762 = vpack.c.b16 %v2739, %v2738
      %v2763 = vpack.c.b16 %v2741, %v2740
      %v2764 = vpack.c.b16 %v2743, %v2742
      %v2765 = vpack.c.b16 %v2745, %v2744
      %v2766 = vpack.c.b16 %v2747, %v2746
      %v2767 = vpack.c.b16 %v2749, %v2748
      %v2768 = vpack.c.b16 %v2751, %v2750
      %v2769 = vpack.c.b16 %v2753, %v2752
      %v2771 = vshrl.u32 %v2754, 16
      %v2773 = vrot.slane %v2771, 4
      %v2774 = vshll.u32 %v2754, 16
      %v2776 = vrot.slane %v2774, 5
      %v2777 = vor.u32 %v2773, %v2776
      %v2779 = vshrl.u32 %v2755, 16
      %v2781 = vrot.slane %v2779, 4
      %v2782 = vshll.u32 %v2755, 16
      %v2784 = vrot.slane %v2782, 5
      %v2785 = vor.u32 %v2781, %v2784
      %v2786 = vsel %vm1594, %v2777, %v2785
      %v2788 = vshrl.u32 %v2756, 16
      %v2790 = vrot.slane %v2788, 4
      %v2791 = vshll.u32 %v2756, 16
      %v2793 = vrot.slane %v2791, 5
      %v2794 = vor.u32 %v2790, %v2793
      %v2795 = vsel %vm1594, %v2785, %v2794
      %v2797 = vshrl.u32 %v2757, 16
      %v2799 = vrot.slane %v2797, 4
      %v2800 = vshll.u32 %v2757, 16
      %v2802 = vrot.slane %v2800, 5
      %v2803 = vor.u32 %v2799, %v2802
      %v2804 = vsel %vm1594, %v2794, %v2803
      %v2806 = vshrl.u32 %v2758, 16
      %v2808 = vrot.slane %v2806, 4
      %v2809 = vshll.u32 %v2758, 16
      %v2811 = vrot.slane %v2809, 5
      %v2812 = vor.u32 %v2808, %v2811
      %v2813 = vsel %vm1594, %v2803, %v2812
      %v2815 = vshrl.u32 %v2759, 16
      %v2817 = vrot.slane %v2815, 4
      %v2818 = vshll.u32 %v2759, 16
      %v2820 = vrot.slane %v2818, 5
      %v2821 = vor.u32 %v2817, %v2820
      %v2822 = vsel %vm1594, %v2812, %v2821
      %v2824 = vshrl.u32 %v2760, 16
      %v2826 = vrot.slane %v2824, 4
      %v2827 = vshll.u32 %v2760, 16
      %v2829 = vrot.slane %v2827, 5
      %v2830 = vor.u32 %v2826, %v2829
      %v2831 = vsel %vm1594, %v2821, %v2830
      %v2833 = vshrl.u32 %v2761, 16
      %v2835 = vrot.slane %v2833, 4
      %v2836 = vshll.u32 %v2761, 16
      %v2838 = vrot.slane %v2836, 5
      %v2839 = vor.u32 %v2835, %v2838
      %v2840 = vsel %vm1594, %v2830, %v2839
      %v2842 = vshrl.u32 %v2762, 16
      %v2844 = vrot.slane %v2842, 4
      %v2845 = vshll.u32 %v2762, 16
      %v2847 = vrot.slane %v2845, 5
      %v2848 = vor.u32 %v2844, %v2847
      %v2849 = vsel %vm1594, %v2839, %v2848
      %v2851 = vshrl.u32 %v2763, 16
      %v2853 = vrot.slane %v2851, 4
      %v2854 = vshll.u32 %v2763, 16
      %v2856 = vrot.slane %v2854, 5
      %v2857 = vor.u32 %v2853, %v2856
      %v2858 = vsel %vm1594, %v2848, %v2857
      %v2860 = vshrl.u32 %v2764, 16
      %v2862 = vrot.slane %v2860, 4
      %v2863 = vshll.u32 %v2764, 16
      %v2865 = vrot.slane %v2863, 5
      %v2866 = vor.u32 %v2862, %v2865
      %v2867 = vsel %vm1594, %v2857, %v2866
      %v2869 = vshrl.u32 %v2765, 16
      %v2871 = vrot.slane %v2869, 4
      %v2872 = vshll.u32 %v2765, 16
      %v2874 = vrot.slane %v2872, 5
      %v2875 = vor.u32 %v2871, %v2874
      %v2876 = vsel %vm1594, %v2866, %v2875
      %v2878 = vshrl.u32 %v2766, 16
      %v2880 = vrot.slane %v2878, 4
      %v2881 = vshll.u32 %v2766, 16
      %v2883 = vrot.slane %v2881, 5
      %v2884 = vor.u32 %v2880, %v2883
      %v2885 = vsel %vm1594, %v2875, %v2884
      %v2887 = vshrl.u32 %v2767, 16
      %v2889 = vrot.slane %v2887, 4
      %v2890 = vshll.u32 %v2767, 16
      %v2892 = vrot.slane %v2890, 5
      %v2893 = vor.u32 %v2889, %v2892
      %v2894 = vsel %vm1594, %v2884, %v2893
      %v2896 = vshrl.u32 %v2768, 16
      %v2898 = vrot.slane %v2896, 4
      %v2899 = vshll.u32 %v2768, 16
      %v2901 = vrot.slane %v2899, 5
      %v2902 = vor.u32 %v2898, %v2901
      %v2903 = vsel %vm1594, %v2893, %v2902
      %v2905 = vshrl.u32 %v2769, 16
      %v2907 = vrot.slane %v2905, 4
      %v2908 = vshll.u32 %v2769, 16
      %v2910 = vrot.slane %v2908, 5
      %v2911 = vor.u32 %v2907, %v2910
      %v2912 = vsel %vm1594, %v2902, %v2911
      %2913 = vrot.lane.b32.xlu0 %v2777, 36
      %v2914 = vpop.permute.xlu0 %2913
      %2915 = vrot.lane.b32.xlu0 %v2786, 36
      %v2916 = vpop.permute.xlu0 %2915
      %2917 = vrot.lane.b32.xlu0 %v2795, 36
      %v2918 = vpop.permute.xlu0 %2917
      %2919 = vrot.lane.b32.xlu0 %v2804, 36
      %v2920 = vpop.permute.xlu0 %2919
      %2921 = vrot.lane.b32.xlu0 %v2813, 36
      %v2922 = vpop.permute.xlu0 %2921
      %2923 = vrot.lane.b32.xlu0 %v2822, 36
      %v2924 = vpop.permute.xlu0 %2923
      %2925 = vrot.lane.b32.xlu0 %v2831, 36
      %v2926 = vpop.permute.xlu0 %2925
      %2927 = vrot.lane.b32.xlu0 %v2840, 36
      %v2928 = vpop.permute.xlu0 %2927
      %2929 = vrot.lane.b32.xlu0 %v2849, 36
      %v2930 = vpop.permute.xlu0 %2929
      %2931 = vrot.lane.b32.xlu0 %v2858, 36
      %v2932 = vpop.permute.xlu0 %2931
      %2933 = vrot.lane.b32.xlu0 %v2867, 36
      %v2934 = vpop.permute.xlu0 %2933
      %2935 = vrot.lane.b32.xlu0 %v2876, 36
      %v2936 = vpop.permute.xlu0 %2935
      %2937 = vrot.lane.b32.xlu0 %v2885, 36
      %v2938 = vpop.permute.xlu0 %2937
      %2939 = vrot.lane.b32.xlu0 %v2894, 36
      %v2940 = vpop.permute.xlu0 %2939
      %2941 = vrot.lane.b32.xlu0 %v2903, 36
      %v2942 = vpop.permute.xlu0 %2941
      %2943 = vrot.lane.b32.xlu0 %v2912, 36
      %v2944 = vpop.permute.xlu0 %2943
      %2945 = vrot.lane.b32.xlu0 %v2911, 36
      %v2946 = vpop.permute.xlu0 %2945
      %v2980 = vunpack.c.l.b16 %v2434
      %v2981 = vunpack.c.l.b16 %v2435
      %v2982 = vunpack.c.l.b16 %v2436
      %v2983 = vunpack.c.l.b16 %v2437
      %v2984 = vunpack.c.l.b16 %v2438
      %v2985 = vunpack.c.l.b16 %v2439
      %v2986 = vunpack.c.l.b16 %v2440
      %v2987 = vunpack.c.l.b16 %v2441
      %v2988 = vunpack.c.l.b16 %v2442
      %v2989 = vunpack.c.l.b16 %v2443
      %v2990 = vunpack.c.l.b16 %v2444
      %v2991 = vunpack.c.l.b16 %v2445
      %v2992 = vunpack.c.l.b16 %v2446
      %v2993 = vunpack.c.l.b16 %v2447
      %v2994 = vunpack.c.l.b16 %v2448
      %v2995 = vunpack.c.l.b16 %v2449
      %v2996 = vunpack.c.l.b16 %v2450
      %v2997 = vunpack.c.l.b16 %v2451
      %v2998 = vunpack.c.l.b16 %v2452
      %v2999 = vunpack.c.l.b16 %v2453
      %v3000 = vunpack.c.l.b16 %v2454
      %v3001 = vunpack.c.l.b16 %v2455
      %v3002 = vunpack.c.l.b16 %v2456
      %v3003 = vunpack.c.l.b16 %v2457
      %v3004 = vunpack.c.l.b16 %v2458
      %v3005 = vunpack.c.l.b16 %v2459
      %v3006 = vunpack.c.l.b16 %v2460
      %v3007 = vunpack.c.l.b16 %v2461
      %v3008 = vunpack.c.l.b16 %v2462
      %v3009 = vunpack.c.l.b16 %v2463
      %v3010 = vunpack.c.l.b16 %v2464
      %v3011 = vunpack.c.l.b16 %v2465
      %v3012 = vunpack.c.l.b16 %v2466
      %v3013 = vpack.c.b16 %v2981, %v2980
      %v3014 = vpack.c.b16 %v2983, %v2982
      %v3015 = vpack.c.b16 %v2985, %v2984
      %v3016 = vpack.c.b16 %v2987, %v2986
      %v3017 = vpack.c.b16 %v2989, %v2988
      %v3018 = vpack.c.b16 %v2991, %v2990
      %v3019 = vpack.c.b16 %v2993, %v2992
      %v3020 = vpack.c.b16 %v2995, %v2994
      %v3021 = vpack.c.b16 %v2997, %v2996
      %v3022 = vpack.c.b16 %v2999, %v2998
      %v3023 = vpack.c.b16 %v3001, %v3000
      %v3024 = vpack.c.b16 %v3003, %v3002
      %v3025 = vpack.c.b16 %v3005, %v3004
      %v3026 = vpack.c.b16 %v3007, %v3006
      %v3027 = vpack.c.b16 %v3009, %v3008
      %v3028 = vpack.c.b16 %v3011, %v3010
      %v3029 = vpack.c.b16 %v3012, %v3012
      %vm3030 = vcmask 1042432
      %v3031 = vrot.slane %v3013, 5
      %v3032 = vrot.slane %v3014, 5
      %v3033 = vsel %vm3030, %v3031, %v3032
      %v3034 = vrot.slane %v3015, 5
      %v3035 = vsel %vm3030, %v3032, %v3034
      %v3036 = vrot.slane %v3016, 5
      %v3037 = vsel %vm3030, %v3034, %v3036
      %v3038 = vrot.slane %v3017, 5
      %v3039 = vsel %vm3030, %v3036, %v3038
      %v3040 = vrot.slane %v3018, 5
      %v3041 = vsel %vm3030, %v3038, %v3040
      %v3042 = vrot.slane %v3019, 5
      %v3043 = vsel %vm3030, %v3040, %v3042
      %v3044 = vrot.slane %v3020, 5
      %v3045 = vsel %vm3030, %v3042, %v3044
      %v3046 = vrot.slane %v3021, 5
      %v3047 = vsel %vm3030, %v3044, %v3046
      %v3048 = vrot.slane %v3022, 5
      %v3049 = vsel %vm3030, %v3046, %v3048
      %v3050 = vrot.slane %v3023, 5
      %v3051 = vsel %vm3030, %v3048, %v3050
      %v3052 = vrot.slane %v3024, 5
      %v3053 = vsel %vm3030, %v3050, %v3052
      %v3054 = vrot.slane %v3025, 5
      %v3055 = vsel %vm3030, %v3052, %v3054
      %v3056 = vrot.slane %v3026, 5
      %v3057 = vsel %vm3030, %v3054, %v3056
      %v3058 = vrot.slane %v3027, 5
      %v3059 = vsel %vm3030, %v3056, %v3058
      %v3060 = vrot.slane %v3028, 5
      %v3061 = vsel %vm3030, %v3058, %v3060
      %v3062 = vrot.slane %v3029, 5
      %v3063 = vsel %vm3030, %v3060, %v3062
      %3064 = vrot.lane.b32.xlu0 %v3031, 72
      %v3065 = vpop.permute.xlu0 %3064
      %3066 = vrot.lane.b32.xlu0 %v3033, 72
      %v3067 = vpop.permute.xlu0 %3066
      %3068 = vrot.lane.b32.xlu0 %v3035, 72
      %v3069 = vpop.permute.xlu0 %3068
      %3070 = vrot.lane.b32.xlu0 %v3037, 72
      %v3071 = vpop.permute.xlu0 %3070
      %3072 = vrot.lane.b32.xlu0 %v3039, 72
      %v3073 = vpop.permute.xlu0 %3072
      %3074 = vrot.lane.b32.xlu0 %v3041, 72
      %v3075 = vpop.permute.xlu0 %3074
      %3076 = vrot.lane.b32.xlu0 %v3043, 72
      %v3077 = vpop.permute.xlu0 %3076
      %3078 = vrot.lane.b32.xlu0 %v3045, 72
      %v3079 = vpop.permute.xlu0 %3078
      %3080 = vrot.lane.b32.xlu0 %v3047, 72
      %v3081 = vpop.permute.xlu0 %3080
      %3082 = vrot.lane.b32.xlu0 %v3049, 72
      %v3083 = vpop.permute.xlu0 %3082
      %3084 = vrot.lane.b32.xlu0 %v3051, 72
      %v3085 = vpop.permute.xlu0 %3084
      %3086 = vrot.lane.b32.xlu0 %v3053, 72
      %v3087 = vpop.permute.xlu0 %3086
      %3088 = vrot.lane.b32.xlu0 %v3055, 72
      %v3089 = vpop.permute.xlu0 %3088
      %3090 = vrot.lane.b32.xlu0 %v3057, 72
      %v3091 = vpop.permute.xlu0 %3090
      %3092 = vrot.lane.b32.xlu0 %v3059, 72
      %v3093 = vpop.permute.xlu0 %3092
      %3094 = vrot.lane.b32.xlu0 %v3061, 72
      %v3095 = vpop.permute.xlu0 %3094
      %3096 = vrot.lane.b32.xlu0 %v3063, 72
      %v3097 = vpop.permute.xlu0 %3096
      %v3131 = vunpack.c.l.b16 %v2470
      %v3132 = vunpack.c.l.b16 %v2471
      %v3133 = vunpack.c.l.b16 %v2472
      %v3134 = vunpack.c.l.b16 %v2473
      %v3135 = vunpack.c.l.b16 %v2474
      %v3136 = vunpack.c.l.b16 %v2475
      %v3137 = vunpack.c.l.b16 %v2476
      %v3138 = vunpack.c.l.b16 %v2477
      %v3139 = vunpack.c.l.b16 %v2478
      %v3140 = vunpack.c.l.b16 %v2479
      %v3141 = vunpack.c.l.b16 %v2480
      %v3142 = vunpack.c.l.b16 %v2481
      %v3143 = vunpack.c.l.b16 %v2482
      %v3144 = vunpack.c.l.b16 %v2483
      %v3145 = vunpack.c.l.b16 %v2484
      %v3146 = vunpack.c.l.b16 %v2485
      %v3147 = vunpack.c.l.b16 %v2486
      %v3148 = vunpack.c.l.b16 %v2487
      %v3149 = vunpack.c.l.b16 %v2488
      %v3150 = vunpack.c.l.b16 %v2489
      %v3151 = vunpack.c.l.b16 %v2490
      %v3152 = vunpack.c.l.b16 %v2491
      %v3153 = vunpack.c.l.b16 %v2492
      %v3154 = vunpack.c.l.b16 %v2493
      %v3155 = vunpack.c.l.b16 %v2494
      %v3156 = vunpack.c.l.b16 %v2495
      %v3157 = vunpack.c.l.b16 %v2496
      %v3158 = vunpack.c.l.b16 %v2497
      %v3159 = vunpack.c.l.b16 %v2498
      %v3160 = vunpack.c.l.b16 %v2499
      %v3161 = vunpack.c.l.b16 %v2500
      %v3162 = vunpack.c.l.b16 %v2501
      %v3163 = vunpack.c.l.b16 %v2502
      %v3164 = vpack.c.b16 %v3132, %v3131
      %v3165 = vpack.c.b16 %v3134, %v3133
      %v3166 = vpack.c.b16 %v3136, %v3135
      %v3167 = vpack.c.b16 %v3138, %v3137
      %v3168 = vpack.c.b16 %v3140, %v3139
      %v3169 = vpack.c.b16 %v3142, %v3141
      %v3170 = vpack.c.b16 %v3144, %v3143
      %v3171 = vpack.c.b16 %v3146, %v3145
      %v3172 = vpack.c.b16 %v3148, %v3147
      %v3173 = vpack.c.b16 %v3150, %v3149
      %v3174 = vpack.c.b16 %v3152, %v3151
      %v3175 = vpack.c.b16 %v3154, %v3153
      %v3176 = vpack.c.b16 %v3156, %v3155
      %v3177 = vpack.c.b16 %v3158, %v3157
      %v3178 = vpack.c.b16 %v3160, %v3159
      %v3179 = vpack.c.b16 %v3162, %v3161
      %v3180 = vpack.c.b16 %v3163, %v3163
      %3181 = vrot.lane.b32.xlu0 %v3164, 108
      %v3182 = vpop.permute.xlu0 %3181
      %3183 = vrot.lane.b32.xlu0 %v3165, 108
      %v3184 = vpop.permute.xlu0 %3183
      %3185 = vrot.lane.b32.xlu0 %v3166, 108
      %v3186 = vpop.permute.xlu0 %3185
      %3187 = vrot.lane.b32.xlu0 %v3167, 108
      %v3188 = vpop.permute.xlu0 %3187
      %3189 = vrot.lane.b32.xlu0 %v3168, 108
      %v3190 = vpop.permute.xlu0 %3189
      %3191 = vrot.lane.b32.xlu0 %v3169, 108
      %v3192 = vpop.permute.xlu0 %3191
      %3193 = vrot.lane.b32.xlu0 %v3170, 108
      %v3194 = vpop.permute.xlu0 %3193
      %3195 = vrot.lane.b32.xlu0 %v3171, 108
      %v3196 = vpop.permute.xlu0 %3195
      %3197 = vrot.lane.b32.xlu0 %v3172, 108
      %v3198 = vpop.permute.xlu0 %3197
      %3199 = vrot.lane.b32.xlu0 %v3173, 108
      %v3200 = vpop.permute.xlu0 %3199
      %3201 = vrot.lane.b32.xlu0 %v3174, 108
      %v3202 = vpop.permute.xlu0 %3201
      %3203 = vrot.lane.b32.xlu0 %v3175, 108
      %v3204 = vpop.permute.xlu0 %3203
      %3205 = vrot.lane.b32.xlu0 %v3176, 108
      %v3206 = vpop.permute.xlu0 %3205
      %3207 = vrot.lane.b32.xlu0 %v3177, 108
      %v3208 = vpop.permute.xlu0 %3207
      %3209 = vrot.lane.b32.xlu0 %v3178, 108
      %v3210 = vpop.permute.xlu0 %3209
      %3211 = vrot.lane.b32.xlu0 %v3179, 108
      %v3212 = vpop.permute.xlu0 %3211
      %3213 = vrot.lane.b32.xlu0 %v3180, 108
      %v3214 = vpop.permute.xlu0 %3213
      %v3217 = vunpack.c.l.b16 %v2468
      %v3218 = vunpack.c.l.b16 %v2469
      %v3219 = vpack.c.b16 %v3218, %v3217
      %v3221 = vshrl.u32 %v3219, 16
      %v3223 = vrot.slane %v3221, 4
      %v3224 = vshll.u32 %v3219, 16
      %v3226 = vrot.slane %v3224, 5
      %v3227 = vor.u32 %v3223, %v3226
      %v3228 = vsel %vm1594, %v2911, %v3227
      %3229 = vrot.lane.b32.xlu0 %v2785, 16
      %v3230 = vpop.permute.xlu0 %3229
      %3231 = vrot.lane.b32.xlu0 %v2795, 16
      %v3232 = vpop.permute.xlu0 %3231
      %3233 = vrot.lane.b32.xlu0 %v2804, 16
      %v3234 = vpop.permute.xlu0 %3233
      %3235 = vrot.lane.b32.xlu0 %v2813, 16
      %v3236 = vpop.permute.xlu0 %3235
      %3237 = vrot.lane.b32.xlu0 %v2822, 16
      %v3238 = vpop.permute.xlu0 %3237
      %3239 = vrot.lane.b32.xlu0 %v2831, 16
      %v3240 = vpop.permute.xlu0 %3239
      %3241 = vrot.lane.b32.xlu0 %v2840, 16
      %v3242 = vpop.permute.xlu0 %3241
      %3243 = vrot.lane.b32.xlu0 %v2849, 16
      %v3244 = vpop.permute.xlu0 %3243
      %3245 = vrot.lane.b32.xlu0 %v2858, 16
      %v3246 = vpop.permute.xlu0 %3245
      %3247 = vrot.lane.b32.xlu0 %v2867, 16
      %v3248 = vpop.permute.xlu0 %3247
      %3249 = vrot.lane.b32.xlu0 %v2876, 16
      %v3250 = vpop.permute.xlu0 %3249
      %3251 = vrot.lane.b32.xlu0 %v2885, 16
      %v3252 = vpop.permute.xlu0 %3251
      %3253 = vrot.lane.b32.xlu0 %v2894, 16
      %v3254 = vpop.permute.xlu0 %3253
      %3255 = vrot.lane.b32.xlu0 %v2903, 16
      %v3256 = vpop.permute.xlu0 %3255
      %3257 = vrot.lane.b32.xlu0 %v2912, 16
      %v3258 = vpop.permute.xlu0 %3257
      %3259 = vrot.lane.b32.xlu0 %v3228, 16
      %v3260 = vpop.permute.xlu0 %3259
      %3261 = vrot.lane.b32.xlu0 %v3227, 16
      %v3262 = vpop.permute.xlu0 %3261
      %v3296 = vunpack.c.l.b16 %v2504
      %v3297 = vunpack.c.l.b16 %v2505
      %v3298 = vunpack.c.l.b16 %v2506
      %v3299 = vunpack.c.l.b16 %v2507
      %v3300 = vunpack.c.l.b16 %v2508
      %v3301 = vunpack.c.l.b16 %v2509
      %v3302 = vunpack.c.l.b16 %v2510
      %v3303 = vunpack.c.l.b16 %v2511
      %v3304 = vunpack.c.l.b16 %v2512
      %v3305 = vunpack.c.l.b16 %v2513
      %v3306 = vunpack.c.l.b16 %v2514
      %v3307 = vunpack.c.l.b16 %v2515
      %v3308 = vunpack.c.l.b16 %v2516
      %v3309 = vunpack.c.l.b16 %v2517
      %v3310 = vunpack.c.l.b16 %v2518
      %v3311 = vunpack.c.l.b16 %v2519
      %v3312 = vunpack.c.l.b16 %v2520
      %v3313 = vunpack.c.l.b16 %v2521
      %v3314 = vunpack.c.l.b16 %v2522
      %v3315 = vunpack.c.l.b16 %v2523
      %v3316 = vunpack.c.l.b16 %v2524
      %v3317 = vunpack.c.l.b16 %v2525
      %v3318 = vunpack.c.l.b16 %v2526
      %v3319 = vunpack.c.l.b16 %v2527
      %v3320 = vunpack.c.l.b16 %v2528
      %v3321 = vunpack.c.l.b16 %v2529
      %v3322 = vunpack.c.l.b16 %v2530
      %v3323 = vunpack.c.l.b16 %v2531
      %v3324 = vunpack.c.l.b16 %v2532
      %v3325 = vunpack.c.l.b16 %v2533
      %v3326 = vunpack.c.l.b16 %v2534
      %v3327 = vunpack.c.l.b16 %v2535
      %v3328 = vunpack.c.l.b16 %v2536
      %v3329 = vpack.c.b16 %v3297, %v3296
      %v3330 = vpack.c.b16 %v3299, %v3298
      %v3331 = vpack.c.b16 %v3301, %v3300
      %v3332 = vpack.c.b16 %v3303, %v3302
      %v3333 = vpack.c.b16 %v3305, %v3304
      %v3334 = vpack.c.b16 %v3307, %v3306
      %v3335 = vpack.c.b16 %v3309, %v3308
      %v3336 = vpack.c.b16 %v3311, %v3310
      %v3337 = vpack.c.b16 %v3313, %v3312
      %v3338 = vpack.c.b16 %v3315, %v3314
      %v3339 = vpack.c.b16 %v3317, %v3316
      %v3340 = vpack.c.b16 %v3319, %v3318
      %v3341 = vpack.c.b16 %v3321, %v3320
      %v3342 = vpack.c.b16 %v3323, %v3322
      %v3343 = vpack.c.b16 %v3325, %v3324
      %v3344 = vpack.c.b16 %v3327, %v3326
      %v3345 = vpack.c.b16 %v3328, %v3328
      %v3346 = vrot.slane %v3329, 5
      %v3347 = vrot.slane %v3330, 5
      %v3348 = vsel %vm3030, %v3346, %v3347
      %v3349 = vrot.slane %v3331, 5
      %v3350 = vsel %vm3030, %v3347, %v3349
      %v3351 = vrot.slane %v3332, 5
      %v3352 = vsel %vm3030, %v3349, %v3351
      %v3353 = vrot.slane %v3333, 5
      %v3354 = vsel %vm3030, %v3351, %v3353
      %v3355 = vrot.slane %v3334, 5
      %v3356 = vsel %vm3030, %v3353, %v3355
      %v3357 = vrot.slane %v3335, 5
      %v3358 = vsel %vm3030, %v3355, %v3357
      %v3359 = vrot.slane %v3336, 5
      %v3360 = vsel %vm3030, %v3357, %v3359
      %v3361 = vrot.slane %v3337, 5
      %v3362 = vsel %vm3030, %v3359, %v3361
      %v3363 = vrot.slane %v3338, 5
      %v3364 = vsel %vm3030, %v3361, %v3363
      %v3365 = vrot.slane %v3339, 5
      %v3366 = vsel %vm3030, %v3363, %v3365
      %v3367 = vrot.slane %v3340, 5
      %v3368 = vsel %vm3030, %v3365, %v3367
      %v3369 = vrot.slane %v3341, 5
      %v3370 = vsel %vm3030, %v3367, %v3369
      %v3371 = vrot.slane %v3342, 5
      %v3372 = vsel %vm3030, %v3369, %v3371
      %v3373 = vrot.slane %v3343, 5
      %v3374 = vsel %vm3030, %v3371, %v3373
      %v3375 = vrot.slane %v3344, 5
      %v3376 = vsel %vm3030, %v3373, %v3375
      %v3377 = vrot.slane %v3345, 5
      %v3378 = vsel %vm3030, %v3375, %v3377
      %3379 = vrot.lane.b32.xlu0 %v3346, 52
      %v3380 = vpop.permute.xlu0 %3379
      %3381 = vrot.lane.b32.xlu0 %v3348, 52
      %v3382 = vpop.permute.xlu0 %3381
      %3383 = vrot.lane.b32.xlu0 %v3350, 52
      %v3384 = vpop.permute.xlu0 %3383
      %3385 = vrot.lane.b32.xlu0 %v3352, 52
      %v3386 = vpop.permute.xlu0 %3385
      %3387 = vrot.lane.b32.xlu0 %v3354, 52
      %v3388 = vpop.permute.xlu0 %3387
      %3389 = vrot.lane.b32.xlu0 %v3356, 52
      %v3390 = vpop.permute.xlu0 %3389
      %3391 = vrot.lane.b32.xlu0 %v3358, 52
      %v3392 = vpop.permute.xlu0 %3391
      %3393 = vrot.lane.b32.xlu0 %v3360, 52
      %v3394 = vpop.permute.xlu0 %3393
      %3395 = vrot.lane.b32.xlu0 %v3362, 52
      %v3396 = vpop.permute.xlu0 %3395
      %3397 = vrot.lane.b32.xlu0 %v3364, 52
      %v3398 = vpop.permute.xlu0 %3397
      %3399 = vrot.lane.b32.xlu0 %v3366, 52
      %v3400 = vpop.permute.xlu0 %3399
      %3401 = vrot.lane.b32.xlu0 %v3368, 52
      %v3402 = vpop.permute.xlu0 %3401
      %3403 = vrot.lane.b32.xlu0 %v3370, 52
      %v3404 = vpop.permute.xlu0 %3403
      %3405 = vrot.lane.b32.xlu0 %v3372, 52
      %v3406 = vpop.permute.xlu0 %3405
      %3407 = vrot.lane.b32.xlu0 %v3374, 52
      %v3408 = vpop.permute.xlu0 %3407
      %3409 = vrot.lane.b32.xlu0 %v3376, 52
      %v3410 = vpop.permute.xlu0 %3409
      %3411 = vrot.lane.b32.xlu0 %v3378, 52
      %v3412 = vpop.permute.xlu0 %3411
      %v3446 = vunpack.c.l.b16 %v2540
      %v3447 = vunpack.c.l.b16 %v2541
      %v3448 = vunpack.c.l.b16 %v2542
      %v3449 = vunpack.c.l.b16 %v2543
      %v3450 = vunpack.c.l.b16 %v2544
      %v3451 = vunpack.c.l.b16 %v2545
      %v3452 = vunpack.c.l.b16 %v2546
      %v3453 = vunpack.c.l.b16 %v2547
      %v3454 = vunpack.c.l.b16 %v2548
      %v3455 = vunpack.c.l.b16 %v2549
      %v3456 = vunpack.c.l.b16 %v2550
      %v3457 = vunpack.c.l.b16 %v2551
      %v3458 = vunpack.c.l.b16 %v2552
      %v3459 = vunpack.c.l.b16 %v2553
      %v3460 = vunpack.c.l.b16 %v2554
      %v3461 = vunpack.c.l.b16 %v2555
      %v3462 = vunpack.c.l.b16 %v2556
      %v3463 = vunpack.c.l.b16 %v2557
      %v3464 = vunpack.c.l.b16 %v2558
      %v3465 = vunpack.c.l.b16 %v2559
      %v3466 = vunpack.c.l.b16 %v2560
      %v3467 = vunpack.c.l.b16 %v2561
      %v3468 = vunpack.c.l.b16 %v2562
      %v3469 = vunpack.c.l.b16 %v2563
      %v3470 = vunpack.c.l.b16 %v2564
      %v3471 = vunpack.c.l.b16 %v2565
      %v3472 = vunpack.c.l.b16 %v2566
      %v3473 = vunpack.c.l.b16 %v2567
      %v3474 = vunpack.c.l.b16 %v2568
      %v3475 = vunpack.c.l.b16 %v2569
      %v3476 = vunpack.c.l.b16 %v2570
      %v3477 = vunpack.c.l.b16 %v2571
      %v3478 = vunpack.c.l.b16 %v2572
      %v3479 = vpack.c.b16 %v3447, %v3446
      %v3480 = vpack.c.b16 %v3449, %v3448
      %v3481 = vpack.c.b16 %v3451, %v3450
      %v3482 = vpack.c.b16 %v3453, %v3452
      %v3483 = vpack.c.b16 %v3455, %v3454
      %v3484 = vpack.c.b16 %v3457, %v3456
      %v3485 = vpack.c.b16 %v3459, %v3458
      %v3486 = vpack.c.b16 %v3461, %v3460
      %v3487 = vpack.c.b16 %v3463, %v3462
      %v3488 = vpack.c.b16 %v3465, %v3464
      %v3489 = vpack.c.b16 %v3467, %v3466
      %v3490 = vpack.c.b16 %v3469, %v3468
      %v3491 = vpack.c.b16 %v3471, %v3470
      %v3492 = vpack.c.b16 %v3473, %v3472
      %v3493 = vpack.c.b16 %v3475, %v3474
      %v3494 = vpack.c.b16 %v3477, %v3476
      %v3495 = vpack.c.b16 %v3478, %v3478
      %3496 = vrot.lane.b32.xlu0 %v3479, 88
      %v3497 = vpop.permute.xlu0 %3496
      %3498 = vrot.lane.b32.xlu0 %v3480, 88
      %v3499 = vpop.permute.xlu0 %3498
      %3500 = vrot.lane.b32.xlu0 %v3481, 88
      %v3501 = vpop.permute.xlu0 %3500
      %3502 = vrot.lane.b32.xlu0 %v3482, 88
      %v3503 = vpop.permute.xlu0 %3502
      %3504 = vrot.lane.b32.xlu0 %v3483, 88
      %v3505 = vpop.permute.xlu0 %3504
      %3506 = vrot.lane.b32.xlu0 %v3484, 88
      %v3507 = vpop.permute.xlu0 %3506
      %3508 = vrot.lane.b32.xlu0 %v3485, 88
      %v3509 = vpop.permute.xlu0 %3508
      %3510 = vrot.lane.b32.xlu0 %v3486, 88
      %v3511 = vpop.permute.xlu0 %3510
      %3512 = vrot.lane.b32.xlu0 %v3487, 88
      %v3513 = vpop.permute.xlu0 %3512
      %3514 = vrot.lane.b32.xlu0 %v3488, 88
      %v3515 = vpop.permute.xlu0 %3514
      %3516 = vrot.lane.b32.xlu0 %v3489, 88
      %v3517 = vpop.permute.xlu0 %3516
      %3518 = vrot.lane.b32.xlu0 %v3490, 88
      %v3519 = vpop.permute.xlu0 %3518
      %3520 = vrot.lane.b32.xlu0 %v3491, 88
      %v3521 = vpop.permute.xlu0 %3520
      %3522 = vrot.lane.b32.xlu0 %v3492, 88
      %v3523 = vpop.permute.xlu0 %3522
      %3524 = vrot.lane.b32.xlu0 %v3493, 88
      %v3525 = vpop.permute.xlu0 %3524
      %3526 = vrot.lane.b32.xlu0 %v3494, 88
      %v3527 = vpop.permute.xlu0 %3526
      %3528 = vrot.lane.b32.xlu0 %v3495, 88
      %v3529 = vpop.permute.xlu0 %3528
      %v3532 = vunpack.c.l.b16 %v2538
      %v3533 = vunpack.c.l.b16 %v2539
      %v3534 = vpack.c.b16 %v3533, %v3532
      %v3536 = vshrl.u32 %v3534, 16
      %v3538 = vrot.slane %v3536, 4
      %v3539 = vshll.u32 %v3534, 16
      %v3541 = vrot.slane %v3539, 5
      %v3542 = vor.u32 %v3538, %v3541
      %v3543 = vsel %vm1594, %v3227, %v3542
      %3544 = vrot.lane.b32.xlu0 %v2794, 124
      %v3545 = vpop.permute.xlu0 %3544
      %3546 = vrot.lane.b32.xlu0 %v2804, 124
      %v3547 = vpop.permute.xlu0 %3546
      %3548 = vrot.lane.b32.xlu0 %v2813, 124
      %v3549 = vpop.permute.xlu0 %3548
      %3550 = vrot.lane.b32.xlu0 %v2822, 124
      %v3551 = vpop.permute.xlu0 %3550
      %3552 = vrot.lane.b32.xlu0 %v2831, 124
      %v3553 = vpop.permute.xlu0 %3552
      %3554 = vrot.lane.b32.xlu0 %v2840, 124
      %v3555 = vpop.permute.xlu0 %3554
      %3556 = vrot.lane.b32.xlu0 %v2849, 124
      %v3557 = vpop.permute.xlu0 %3556
      %3558 = vrot.lane.b32.xlu0 %v2858, 124
      %v3559 = vpop.permute.xlu0 %3558
      %3560 = vrot.lane.b32.xlu0 %v2867, 124
      %v3561 = vpop.permute.xlu0 %3560
      %3562 = vrot.lane.b32.xlu0 %v2876, 124
      %v3563 = vpop.permute.xlu0 %3562
      %3564 = vrot.lane.b32.xlu0 %v2885, 124
      %v3565 = vpop.permute.xlu0 %3564
      %3566 = vrot.lane.b32.xlu0 %v2894, 124
      %v3567 = vpop.permute.xlu0 %3566
      %3568 = vrot.lane.b32.xlu0 %v2903, 124
      %v3569 = vpop.permute.xlu0 %3568
      %3570 = vrot.lane.b32.xlu0 %v2912, 124
      %v3571 = vpop.permute.xlu0 %3570
      %3572 = vrot.lane.b32.xlu0 %v3228, 124
      %v3573 = vpop.permute.xlu0 %3572
      %3574 = vrot.lane.b32.xlu0 %v3543, 124
      %v3575 = vpop.permute.xlu0 %3574
      %3576 = vrot.lane.b32.xlu0 %v3542, 124
      %v3577 = vpop.permute.xlu0 %3576
      %v3611 = vunpack.c.l.b16 %v2574
      %v3612 = vunpack.c.l.b16 %v2575
      %v3613 = vunpack.c.l.b16 %v2576
      %v3614 = vunpack.c.l.b16 %v2577
      %v3615 = vunpack.c.l.b16 %v2578
      %v3616 = vunpack.c.l.b16 %v2579
      %v3617 = vunpack.c.l.b16 %v2580
      %v3618 = vunpack.c.l.b16 %v2581
      %v3619 = vunpack.c.l.b16 %v2582
      %v3620 = vunpack.c.l.b16 %v2583
      %v3621 = vunpack.c.l.b16 %v2584
      %v3622 = vunpack.c.l.b16 %v2585
      %v3623 = vunpack.c.l.b16 %v2586
      %v3624 = vunpack.c.l.b16 %v2587
      %v3625 = vunpack.c.l.b16 %v2588
      %v3626 = vunpack.c.l.b16 %v2589
      %v3627 = vunpack.c.l.b16 %v2590
      %v3628 = vunpack.c.l.b16 %v2591
      %v3629 = vunpack.c.l.b16 %v2592
      %v3630 = vunpack.c.l.b16 %v2593
      %v3631 = vunpack.c.l.b16 %v2594
      %v3632 = vunpack.c.l.b16 %v2595
      %v3633 = vunpack.c.l.b16 %v2596
      %v3634 = vunpack.c.l.b16 %v2597
      %v3635 = vunpack.c.l.b16 %v2598
      %v3636 = vunpack.c.l.b16 %v2599
      %v3637 = vunpack.c.l.b16 %v2600
      %v3638 = vunpack.c.l.b16 %v2601
      %v3639 = vunpack.c.l.b16 %v2602
      %v3640 = vunpack.c.l.b16 %v2603
      %v3641 = vunpack.c.l.b16 %v2604
      %v3642 = vunpack.c.l.b16 %v2605
      %v3643 = vunpack.c.l.b16 %v2606
      %v3644 = vpack.c.b16 %v3612, %v3611
      %v3645 = vpack.c.b16 %v3614, %v3613
      %v3646 = vpack.c.b16 %v3616, %v3615
      %v3647 = vpack.c.b16 %v3618, %v3617
      %v3648 = vpack.c.b16 %v3620, %v3619
      %v3649 = vpack.c.b16 %v3622, %v3621
      %v3650 = vpack.c.b16 %v3624, %v3623
      %v3651 = vpack.c.b16 %v3626, %v3625
      %v3652 = vpack.c.b16 %v3628, %v3627
      %v3653 = vpack.c.b16 %v3630, %v3629
      %v3654 = vpack.c.b16 %v3632, %v3631
      %v3655 = vpack.c.b16 %v3634, %v3633
      %v3656 = vpack.c.b16 %v3636, %v3635
      %v3657 = vpack.c.b16 %v3638, %v3637
      %v3658 = vpack.c.b16 %v3640, %v3639
      %v3659 = vpack.c.b16 %v3642, %v3641
      %v3660 = vpack.c.b16 %v3643, %v3643
      %v3661 = vrot.slane %v3644, 5
      %v3662 = vrot.slane %v3645, 5
      %v3663 = vsel %vm3030, %v3661, %v3662
      %v3664 = vrot.slane %v3646, 5
      %v3665 = vsel %vm3030, %v3662, %v3664
      %v3666 = vrot.slane %v3647, 5
      %v3667 = vsel %vm3030, %v3664, %v3666
      %v3668 = vrot.slane %v3648, 5
      %v3669 = vsel %vm3030, %v3666, %v3668
      %v3670 = vrot.slane %v3649, 5
      %v3671 = vsel %vm3030, %v3668, %v3670
      %v3672 = vrot.slane %v3650, 5
      %v3673 = vsel %vm3030, %v3670, %v3672
      %v3674 = vrot.slane %v3651, 5
      %v3675 = vsel %vm3030, %v3672, %v3674
      %v3676 = vrot.slane %v3652, 5
      %v3677 = vsel %vm3030, %v3674, %v3676
      %v3678 = vrot.slane %v3653, 5
      %v3679 = vsel %vm3030, %v3676, %v3678
      %v3680 = vrot.slane %v3654, 5
      %v3681 = vsel %vm3030, %v3678, %v3680
      %v3682 = vrot.slane %v3655, 5
      %v3683 = vsel %vm3030, %v3680, %v3682
      %v3684 = vrot.slane %v3656, 5
      %v3685 = vsel %vm3030, %v3682, %v3684
      %v3686 = vrot.slane %v3657, 5
      %v3687 = vsel %vm3030, %v3684, %v3686
      %v3688 = vrot.slane %v3658, 5
      %v3689 = vsel %vm3030, %v3686, %v3688
      %v3690 = vrot.slane %v3659, 5
      %v3691 = vsel %vm3030, %v3688, %v3690
      %v3692 = vrot.slane %v3660, 5
      %v3693 = vsel %vm3030, %v3690, %v3692
      %3694 = vrot.lane.b32.xlu0 %v3661, 32
      %v3695 = vpop.permute.xlu0 %3694
      %3696 = vrot.lane.b32.xlu0 %v3663, 32
      %v3697 = vpop.permute.xlu0 %3696
      %3698 = vrot.lane.b32.xlu0 %v3665, 32
      %v3699 = vpop.permute.xlu0 %3698
      %3700 = vrot.lane.b32.xlu0 %v3667, 32
      %v3701 = vpop.permute.xlu0 %3700
      %3702 = vrot.lane.b32.xlu0 %v3669, 32
      %v3703 = vpop.permute.xlu0 %3702
      %3704 = vrot.lane.b32.xlu0 %v3671, 32
      %v3705 = vpop.permute.xlu0 %3704
      %3706 = vrot.lane.b32.xlu0 %v3673, 32
      %v3707 = vpop.permute.xlu0 %3706
      %3708 = vrot.lane.b32.xlu0 %v3675, 32
      %v3709 = vpop.permute.xlu0 %3708
      %3710 = vrot.lane.b32.xlu0 %v3677, 32
      %v3711 = vpop.permute.xlu0 %3710
      %3712 = vrot.lane.b32.xlu0 %v3679, 32
      %v3713 = vpop.permute.xlu0 %3712
      %3714 = vrot.lane.b32.xlu0 %v3681, 32
      %v3715 = vpop.permute.xlu0 %3714
      %3716 = vrot.lane.b32.xlu0 %v3683, 32
      %v3717 = vpop.permute.xlu0 %3716
      %3718 = vrot.lane.b32.xlu0 %v3685, 32
      %v3719 = vpop.permute.xlu0 %3718
      %3720 = vrot.lane.b32.xlu0 %v3687, 32
      %v3721 = vpop.permute.xlu0 %3720
      %3722 = vrot.lane.b32.xlu0 %v3689, 32
      %v3723 = vpop.permute.xlu0 %3722
      %3724 = vrot.lane.b32.xlu0 %v3691, 32
      %v3725 = vpop.permute.xlu0 %3724
      %3726 = vrot.lane.b32.xlu0 %v3693, 32
      %v3727 = vpop.permute.xlu0 %3726
      %vm3728 = vcmask 293888
      %v3731 = vsel %vm3728, %v2673, %v2914
      %v3734 = vsel %vm3728, %v2674, %v2916
      %v3737 = vsel %vm3728, %v2675, %v2918
      %v3740 = vsel %vm3728, %v2676, %v2920
      %v3743 = vsel %vm3728, %v2677, %v2922
      %v3746 = vsel %vm3728, %v2678, %v2924
      %v3749 = vsel %vm3728, %v2679, %v2926
      %v3752 = vsel %vm3728, %v2680, %v2928
      %v3755 = vsel %vm3728, %v2681, %v2930
      %v3758 = vsel %vm3728, %v2682, %v2932
      %v3761 = vsel %vm3728, %v2683, %v2934
      %v3764 = vsel %vm3728, %v2684, %v2936
      %v3767 = vsel %vm3728, %v2685, %v2938
      %v3770 = vsel %vm3728, %v2686, %v2940
      %v3773 = vsel %vm3728, %v2687, %v2942
      %v3776 = vsel %vm3728, %v2688, %v2944
      %v3779 = vsel %vm3728, %v2689, %v2946
      %vm3780 = vcmask 588800
      %v3782 = vsel %vm3780, %v3731, %v3065
      %v3784 = vsel %vm3780, %v3734, %v3067
      %v3786 = vsel %vm3780, %v3737, %v3069
      %v3788 = vsel %vm3780, %v3740, %v3071
      %v3790 = vsel %vm3780, %v3743, %v3073
      %v3792 = vsel %vm3780, %v3746, %v3075
      %v3794 = vsel %vm3780, %v3749, %v3077
      %v3796 = vsel %vm3780, %v3752, %v3079
      %v3798 = vsel %vm3780, %v3755, %v3081
      %v3800 = vsel %vm3780, %v3758, %v3083
      %v3802 = vsel %vm3780, %v3761, %v3085
      %v3804 = vsel %vm3780, %v3764, %v3087
      %v3806 = vsel %vm3780, %v3767, %v3089
      %v3808 = vsel %vm3780, %v3770, %v3091
      %v3810 = vsel %vm3780, %v3773, %v3093
      %v3812 = vsel %vm3780, %v3776, %v3095
      %v3814 = vsel %vm3780, %v3779, %v3097
      %vm3815 = vcmask 883712
      %v3817 = vsel %vm3815, %v3782, %v3182
      %v3819 = vsel %vm3815, %v3784, %v3184
      %v3821 = vsel %vm3815, %v3786, %v3186
      %v3823 = vsel %vm3815, %v3788, %v3188
      %v3825 = vsel %vm3815, %v3790, %v3190
      %v3827 = vsel %vm3815, %v3792, %v3192
      %v3829 = vsel %vm3815, %v3794, %v3194
      %v3831 = vsel %vm3815, %v3796, %v3196
      %v3833 = vsel %vm3815, %v3798, %v3198
      %v3835 = vsel %vm3815, %v3800, %v3200
      %v3837 = vsel %vm3815, %v3802, %v3202
      %v3839 = vsel %vm3815, %v3804, %v3204
      %v3841 = vsel %vm3815, %v3806, %v3206
      %v3843 = vsel %vm3815, %v3808, %v3208
      %v3845 = vsel %vm3815, %v3810, %v3210
      %v3847 = vsel %vm3815, %v3812, %v3212
      %v3849 = vsel %vm3815, %v3814, %v3214
      %vm3850 = vcmask 130048
      %v3852 = vsel %vm3850, %v3182, %v3230
      %v3854 = vsel %vm3850, %v3184, %v3232
      %v3856 = vsel %vm3850, %v3186, %v3234
      %v3858 = vsel %vm3850, %v3188, %v3236
      %v3860 = vsel %vm3850, %v3190, %v3238
      %v3862 = vsel %vm3850, %v3192, %v3240
      %v3864 = vsel %vm3850, %v3194, %v3242
      %v3866 = vsel %vm3850, %v3196, %v3244
      %v3868 = vsel %vm3850, %v3198, %v3246
      %v3870 = vsel %vm3850, %v3200, %v3248
      %v3872 = vsel %vm3850, %v3202, %v3250
      %v3874 = vsel %vm3850, %v3204, %v3252
      %v3876 = vsel %vm3850, %v3206, %v3254
      %v3878 = vsel %vm3850, %v3208, %v3256
      %v3880 = vsel %vm3850, %v3210, %v3258
      %v3882 = vsel %vm3850, %v3212, %v3260
      %v3884 = vsel %vm3850, %v3214, %v3262
      %vm3885 = vcmask 424960
      %v3887 = vsel %vm3885, %v3852, %v3380
      %v3889 = vsel %vm3885, %v3854, %v3382
      %v3891 = vsel %vm3885, %v3856, %v3384
      %v3893 = vsel %vm3885, %v3858, %v3386
      %v3895 = vsel %vm3885, %v3860, %v3388
      %v3897 = vsel %vm3885, %v3862, %v3390
      %v3899 = vsel %vm3885, %v3864, %v3392
      %v3901 = vsel %vm3885, %v3866, %v3394
      %v3903 = vsel %vm3885, %v3868, %v3396
      %v3905 = vsel %vm3885, %v3870, %v3398
      %v3907 = vsel %vm3885, %v3872, %v3400
      %v3909 = vsel %vm3885, %v3874, %v3402
      %v3911 = vsel %vm3885, %v3876, %v3404
      %v3913 = vsel %vm3885, %v3878, %v3406
      %v3915 = vsel %vm3885, %v3880, %v3408
      %v3917 = vsel %vm3885, %v3882, %v3410
      %v3919 = vsel %vm3885, %v3884, %v3412
      %vm3920 = vcmask 719872
      %v3922 = vsel %vm3920, %v3887, %v3497
      %v3924 = vsel %vm3920, %v3889, %v3499
      %v3926 = vsel %vm3920, %v3891, %v3501
      %v3928 = vsel %vm3920, %v3893, %v3503
      %v3930 = vsel %vm3920, %v3895, %v3505
      %v3932 = vsel %vm3920, %v3897, %v3507
      %v3934 = vsel %vm3920, %v3899, %v3509
      %v3936 = vsel %vm3920, %v3901, %v3511
      %v3938 = vsel %vm3920, %v3903, %v3513
      %v3940 = vsel %vm3920, %v3905, %v3515
      %v3942 = vsel %vm3920, %v3907, %v3517
      %v3944 = vsel %vm3920, %v3909, %v3519
      %v3946 = vsel %vm3920, %v3911, %v3521
      %v3948 = vsel %vm3920, %v3913, %v3523
      %v3950 = vsel %vm3920, %v3915, %v3525
      %v3952 = vsel %vm3920, %v3917, %v3527
      %v3954 = vsel %vm3920, %v3919, %v3529
      %vm3955 = vcmask 1014784
      %v3957 = vsel %vm3955, %v3922, %v3545
      %v3959 = vsel %vm3955, %v3924, %v3547
      %v3961 = vsel %vm3955, %v3926, %v3549
      %v3963 = vsel %vm3955, %v3928, %v3551
      %v3965 = vsel %vm3955, %v3930, %v3553
      %v3967 = vsel %vm3955, %v3932, %v3555
      %v3969 = vsel %vm3955, %v3934, %v3557
      %v3971 = vsel %vm3955, %v3936, %v3559
      %v3973 = vsel %vm3955, %v3938, %v3561
      %v3975 = vsel %vm3955, %v3940, %v3563
      %v3977 = vsel %vm3955, %v3942, %v3565
      %v3979 = vsel %vm3955, %v3944, %v3567
      %v3981 = vsel %vm3955, %v3946, %v3569
      %v3983 = vsel %vm3955, %v3948, %v3571
      %v3985 = vsel %vm3955, %v3950, %v3573
      %v3987 = vsel %vm3955, %v3952, %v3575
      %v3989 = vsel %vm3955, %v3954, %v3577
      %vm3990 = vcmask 261120
      %v3992 = vsel %vm3990, %v3545, %v3695
      %v3994 = vsel %vm3990, %v3547, %v3697
      %v3996 = vsel %vm3990, %v3549, %v3699
      %v3998 = vsel %vm3990, %v3551, %v3701
      %v4000 = vsel %vm3990, %v3553, %v3703
      %v4002 = vsel %vm3990, %v3555, %v3705
      %v4004 = vsel %vm3990, %v3557, %v3707
      %v4006 = vsel %vm3990, %v3559, %v3709
      %v4008 = vsel %vm3990, %v3561, %v3711
      %v4010 = vsel %vm3990, %v3563, %v3713
      %v4012 = vsel %vm3990, %v3565, %v3715
      %v4014 = vsel %vm3990, %v3567, %v3717
      %v4016 = vsel %vm3990, %v3569, %v3719
      %v4018 = vsel %vm3990, %v3571, %v3721
      %v4020 = vsel %vm3990, %v3573, %v3723
      %v4022 = vsel %vm3990, %v3575, %v3725
      %v4024 = vsel %vm3990, %v3577, %v3727
      %v4025 = vld [vmem:[%s3] sm:$0xf]
      %v4026 = vld [vmem:[%s3 + $0x4] sm:$0xf]
      %v4027 = vld [vmem:[%s3 + $0x8] sm:$0xf]
      %v4028 = vld [vmem:[%s3 + $0xc] sm:$0xf]
      %v4029 = vld [vmem:[%s3 + $0x10] sm:$0xf]
      %v4030 = vld [vmem:[%s3 + $0x14] sm:$0xf]
      %v4031 = vld [vmem:[%s3 + $0x18] sm:$0xf]
      %v4032 = vld [vmem:[%s3 + $0x1c] sm:$0xf]
      %v4033 = vld [vmem:[%s3 + $0x20] sm:$0xf]
      %v4034 = vld [vmem:[%s3 + $0x24] sm:$0xf]
      %v4035 = vld [vmem:[%s3 + $0x28] sm:$0xf]
      %v4036 = vld [vmem:[%s3 + $0x2c] sm:$0xf]
      %v4037 = vld [vmem:[%s3 + $0x30] sm:$0xf]
      %v4038 = vld [vmem:[%s3 + $0x34] sm:$0xf]
      %v4039 = vld [vmem:[%s3 + $0x38] sm:$0xf]
      %v4040 = vld [vmem:[%s3 + $0x3c] sm:$0xf]
      %v4041 = vld [vmem:[%s3 + $0x40] sm:$0xf]
      %v4042 = vld [vmem:[%s3 + $0x44] sm:$0xf]
      %v4043 = vld [vmem:[%s3 + $0x48] sm:$0xf]
      %v4044 = vld [vmem:[%s3 + $0x4c] sm:$0xf]
      %v4045 = vld [vmem:[%s3 + $0x50] sm:$0xf]
      %v4046 = vld [vmem:[%s3 + $0x54] sm:$0xf]
      %v4047 = vld [vmem:[%s3 + $0x58] sm:$0xf]
      %v4048 = vld [vmem:[%s3 + $0x5c] sm:$0xf]
      %v4049 = vld [vmem:[%s3 + $0x60] sm:$0xf]
      %v4050 = vld [vmem:[%s3 + $0x64] sm:$0xf]
      %v4051 = vld [vmem:[%s3 + $0x68] sm:$0xf]
      %v4052 = vld [vmem:[%s3 + $0x6c] sm:$0xf]
      %v4053 = vld [vmem:[%s3 + $0x70] sm:$0xf]
      %v4054 = vld [vmem:[%s3 + $0x74] sm:$0xf]
      %v4055 = vld [vmem:[%s3 + $0x78] sm:$0xf]
      %v4056 = vld [vmem:[%s3 + $0x7c] sm:$0xf]
      %v4057 = vld [vmem:[%s3 + $0x80] sm:$0xf]
      %v4058 = vld [vmem:[%s3 + $0x84] sm:$0xf]
      %v4059 = vld [vmem:[%s3 + $0x88] sm:$0xf]
      %v4060 = vld [vmem:[%s3 + $0x8c] sm:$0xf]
      %v4061 = vld [vmem:[%s3 + $0x90] sm:$0xf]
      %v4062 = vld [vmem:[%s3 + $0x94] sm:$0xf]
      %v4063 = vld [vmem:[%s3 + $0x98] sm:$0xf]
      %v4064 = vld [vmem:[%s3 + $0x9c] sm:$0xf]
      %v4065 = vld [vmem:[%s3 + $0xa0] sm:$0x3]
      %v4066 = vld [vmem:[%s4] sm:$0x1]
      %v4068 = vlaneseq
      %v4069 = vshrl.u32 %v4068, 7
      %v4070 = vsub.s32 0, %v4069
      %v4071 = vrot.slane %v4066, %v4070
      %vm4073 = vsmask.f32 4352
      %v4074 = vshrl.u32 %v3817, 16
      %v4076 = vrot.slane %v4074, 3
      %v4077 = vshll.u32 %v3817, 16
      %v4079 = vrot.slane %v4077, 4
      %v4080 = vor.u32 %v4076, %v4079
      %v4081 = vshrl.u32 %v3819, 16
      %v4083 = vrot.slane %v4081, 3
      %v4084 = vshll.u32 %v3819, 16
      %v4086 = vrot.slane %v4084, 4
      %v4087 = vor.u32 %v4083, %v4086
      %v4088 = vsel %vm4073, %v4080, %v4087
      %v4089 = vshrl.u32 %v3957, 16
      %v4091 = vrot.slane %v4089, 3
      %v4092 = vshll.u32 %v3957, 16
      %v4094 = vrot.slane %v4092, 4
      %v4095 = vor.u32 %v4091, %v4094
      %v4096 = vshrl.u32 %v3959, 16
      %v4098 = vrot.slane %v4096, 3
      %v4099 = vshll.u32 %v3959, 16
      %v4101 = vrot.slane %v4099, 4
      %v4102 = vor.u32 %v4098, %v4101
      %v4103 = vsel %vm4073, %v4095, %v4102
      %v4104 = vshrl.u32 %v3992, 16
      %v4106 = vrot.slane %v4104, 3
      %v4107 = vshll.u32 %v3992, 16
      %v4109 = vrot.slane %v4107, 4
      %v4110 = vor.u32 %v4106, %v4109
      %v4111 = vshrl.u32 %v3994, 16
      %v4113 = vrot.slane %v4111, 3
      %v4114 = vshll.u32 %v3994, 16
      %v4116 = vrot.slane %v4114, 4
      %v4117 = vor.u32 %v4113, %v4116
      %v4118 = vsel %vm4073, %v4110, %v4117
      %v4119 = vshrl.u32 %v3821, 16
      %v4121 = vrot.slane %v4119, 3
      %v4122 = vshll.u32 %v3821, 16
      %v4124 = vrot.slane %v4122, 4
      %v4125 = vor.u32 %v4121, %v4124
      %v4126 = vsel %vm4073, %v4087, %v4125
      %v4127 = vshrl.u32 %v3961, 16
      %v4129 = vrot.slane %v4127, 3
      %v4130 = vshll.u32 %v3961, 16
      %v4132 = vrot.slane %v4130, 4
      %v4133 = vor.u32 %v4129, %v4132
      %v4134 = vsel %vm4073, %v4102, %v4133
      %v4135 = vshrl.u32 %v3996, 16
      %v4137 = vrot.slane %v4135, 3
      %v4138 = vshll.u32 %v3996, 16
      %v4140 = vrot.slane %v4138, 4
      %v4141 = vor.u32 %v4137, %v4140
      %v4142 = vsel %vm4073, %v4117, %v4141
      %v4143 = vshrl.u32 %v3823, 16
      %v4145 = vrot.slane %v4143, 3
      %v4146 = vshll.u32 %v3823, 16
      %v4148 = vrot.slane %v4146, 4
      %v4149 = vor.u32 %v4145, %v4148
      %v4150 = vsel %vm4073, %v4125, %v4149
      %v4151 = vshrl.u32 %v3963, 16
      %v4153 = vrot.slane %v4151, 3
      %v4154 = vshll.u32 %v3963, 16
      %v4156 = vrot.slane %v4154, 4
      %v4157 = vor.u32 %v4153, %v4156
      %v4158 = vsel %vm4073, %v4133, %v4157
      %v4159 = vshrl.u32 %v3998, 16
      %v4161 = vrot.slane %v4159, 3
      %v4162 = vshll.u32 %v3998, 16
      %v4164 = vrot.slane %v4162, 4
      %v4165 = vor.u32 %v4161, %v4164
      %v4166 = vsel %vm4073, %v4141, %v4165
      %v4167 = vshrl.u32 %v3825, 16
      %v4169 = vrot.slane %v4167, 3
      %v4170 = vshll.u32 %v3825, 16
      %v4172 = vrot.slane %v4170, 4
      %v4173 = vor.u32 %v4169, %v4172
      %v4174 = vsel %vm4073, %v4149, %v4173
      %v4175 = vshrl.u32 %v3965, 16
      %v4177 = vrot.slane %v4175, 3
      %v4178 = vshll.u32 %v3965, 16
      %v4180 = vrot.slane %v4178, 4
      %v4181 = vor.u32 %v4177, %v4180
      %v4182 = vsel %vm4073, %v4157, %v4181
      %v4183 = vshrl.u32 %v4000, 16
      %v4185 = vrot.slane %v4183, 3
      %v4186 = vshll.u32 %v4000, 16
      %v4188 = vrot.slane %v4186, 4
      %v4189 = vor.u32 %v4185, %v4188
      %v4190 = vsel %vm4073, %v4165, %v4189
      %v4191 = vshrl.u32 %v3827, 16
      %v4193 = vrot.slane %v4191, 3
      %v4194 = vshll.u32 %v3827, 16
      %v4196 = vrot.slane %v4194, 4
      %v4197 = vor.u32 %v4193, %v4196
      %v4198 = vsel %vm4073, %v4173, %v4197
      %v4199 = vshrl.u32 %v3967, 16
      %v4201 = vrot.slane %v4199, 3
      %v4202 = vshll.u32 %v3967, 16
      %v4204 = vrot.slane %v4202, 4
      %v4205 = vor.u32 %v4201, %v4204
      %v4206 = vsel %vm4073, %v4181, %v4205
      %v4207 = vshrl.u32 %v4002, 16
      %v4209 = vrot.slane %v4207, 3
      %v4210 = vshll.u32 %v4002, 16
      %v4212 = vrot.slane %v4210, 4
      %v4213 = vor.u32 %v4209, %v4212
      %v4214 = vsel %vm4073, %v4189, %v4213
      %v4215 = vshrl.u32 %v3829, 16
      %v4217 = vrot.slane %v4215, 3
      %v4218 = vshll.u32 %v3829, 16
      %v4220 = vrot.slane %v4218, 4
      %v4221 = vor.u32 %v4217, %v4220
      %v4222 = vsel %vm4073, %v4197, %v4221
      %v4223 = vshrl.u32 %v3969, 16
      %v4225 = vrot.slane %v4223, 3
      %v4226 = vshll.u32 %v3969, 16
      %v4228 = vrot.slane %v4226, 4
      %v4229 = vor.u32 %v4225, %v4228
      %v4230 = vsel %vm4073, %v4205, %v4229
      %v4231 = vshrl.u32 %v4004, 16
      %v4233 = vrot.slane %v4231, 3
      %v4234 = vshll.u32 %v4004, 16
      %v4236 = vrot.slane %v4234, 4
      %v4237 = vor.u32 %v4233, %v4236
      %v4238 = vsel %vm4073, %v4213, %v4237
      %v4239 = vshrl.u32 %v3831, 16
      %v4241 = vrot.slane %v4239, 3
      %v4242 = vshll.u32 %v3831, 16
      %v4244 = vrot.slane %v4242, 4
      %v4245 = vor.u32 %v4241, %v4244
      %v4246 = vsel %vm4073, %v4221, %v4245
      %v4247 = vshrl.u32 %v3971, 16
      %v4249 = vrot.slane %v4247, 3
      %v4250 = vshll.u32 %v3971, 16
      %v4252 = vrot.slane %v4250, 4
      %v4253 = vor.u32 %v4249, %v4252
      %v4254 = vsel %vm4073, %v4229, %v4253
      %v4255 = vshrl.u32 %v4006, 16
      %v4257 = vrot.slane %v4255, 3
      %v4258 = vshll.u32 %v4006, 16
      %v4260 = vrot.slane %v4258, 4
      %v4261 = vor.u32 %v4257, %v4260
      %v4262 = vsel %vm4073, %v4237, %v4261
      %v4263 = vshrl.u32 %v3833, 16
      %v4265 = vrot.slane %v4263, 3
      %v4266 = vshll.u32 %v3833, 16
      %v4268 = vrot.slane %v4266, 4
      %v4269 = vor.u32 %v4265, %v4268
      %v4270 = vsel %vm4073, %v4245, %v4269
      %v4271 = vshrl.u32 %v3973, 16
      %v4273 = vrot.slane %v4271, 3
      %v4274 = vshll.u32 %v3973, 16
      %v4276 = vrot.slane %v4274, 4
      %v4277 = vor.u32 %v4273, %v4276
      %v4278 = vsel %vm4073, %v4253, %v4277
      %v4279 = vshrl.u32 %v4008, 16
      %v4281 = vrot.slane %v4279, 3
      %v4282 = vshll.u32 %v4008, 16
      %v4284 = vrot.slane %v4282, 4
      %v4285 = vor.u32 %v4281, %v4284
      %v4286 = vsel %vm4073, %v4261, %v4285
      %v4287 = vshrl.u32 %v3835, 16
      %v4289 = vrot.slane %v4287, 3
      %v4290 = vshll.u32 %v3835, 16
      %v4292 = vrot.slane %v4290, 4
      %v4293 = vor.u32 %v4289, %v4292
      %v4294 = vsel %vm4073, %v4269, %v4293
      %v4295 = vshrl.u32 %v3975, 16
      %v4297 = vrot.slane %v4295, 3
      %v4298 = vshll.u32 %v3975, 16
      %v4300 = vrot.slane %v4298, 4
      %v4301 = vor.u32 %v4297, %v4300
      %v4302 = vsel %vm4073, %v4277, %v4301
      %v4303 = vshrl.u32 %v4010, 16
      %v4305 = vrot.slane %v4303, 3
      %v4306 = vshll.u32 %v4010, 16
      %v4308 = vrot.slane %v4306, 4
      %v4309 = vor.u32 %v4305, %v4308
      %v4310 = vsel %vm4073, %v4285, %v4309
      %v4311 = vshrl.u32 %v3837, 16
      %v4313 = vrot.slane %v4311, 3
      %v4314 = vshll.u32 %v3837, 16
      %v4316 = vrot.slane %v4314, 4
      %v4317 = vor.u32 %v4313, %v4316
      %v4318 = vsel %vm4073, %v4293, %v4317
      %v4319 = vshrl.u32 %v3977, 16
      %v4321 = vrot.slane %v4319, 3
      %v4322 = vshll.u32 %v3977, 16
      %v4324 = vrot.slane %v4322, 4
      %v4325 = vor.u32 %v4321, %v4324
      %v4326 = vsel %vm4073, %v4301, %v4325
      %v4327 = vshrl.u32 %v4012, 16
      %v4329 = vrot.slane %v4327, 3
      %v4330 = vshll.u32 %v4012, 16
      %v4332 = vrot.slane %v4330, 4
      %v4333 = vor.u32 %v4329, %v4332
      %v4334 = vsel %vm4073, %v4309, %v4333
      %v4335 = vshrl.u32 %v3839, 16
      %v4337 = vrot.slane %v4335, 3
      %v4338 = vshll.u32 %v3839, 16
      %v4340 = vrot.slane %v4338, 4
      %v4341 = vor.u32 %v4337, %v4340
      %v4342 = vsel %vm4073, %v4317, %v4341
      %v4343 = vshrl.u32 %v3979, 16
      %v4345 = vrot.slane %v4343, 3
      %v4346 = vshll.u32 %v3979, 16
      %v4348 = vrot.slane %v4346, 4
      %v4349 = vor.u32 %v4345, %v4348
      %v4350 = vsel %vm4073, %v4325, %v4349
      %v4351 = vshrl.u32 %v4014, 16
      %v4353 = vrot.slane %v4351, 3
      %v4354 = vshll.u32 %v4014, 16
      %v4356 = vrot.slane %v4354, 4
      %v4357 = vor.u32 %v4353, %v4356
      %v4358 = vsel %vm4073, %v4333, %v4357
      %v4359 = vshrl.u32 %v3841, 16
      %v4361 = vrot.slane %v4359, 3
      %v4362 = vshll.u32 %v3841, 16
      %v4364 = vrot.slane %v4362, 4
      %v4365 = vor.u32 %v4361, %v4364
      %v4366 = vsel %vm4073, %v4341, %v4365
      %v4367 = vshrl.u32 %v3981, 16
      %v4369 = vrot.slane %v4367, 3
      %v4370 = vshll.u32 %v3981, 16
      %v4372 = vrot.slane %v4370, 4
      %v4373 = vor.u32 %v4369, %v4372
      %v4374 = vsel %vm4073, %v4349, %v4373
      %v4375 = vshrl.u32 %v4016, 16
      %v4377 = vrot.slane %v4375, 3
      %v4378 = vshll.u32 %v4016, 16
      %v4380 = vrot.slane %v4378, 4
      %v4381 = vor.u32 %v4377, %v4380
      %v4382 = vsel %vm4073, %v4357, %v4381
      %v4383 = vshrl.u32 %v3843, 16
      %v4385 = vrot.slane %v4383, 3
      %v4386 = vshll.u32 %v3843, 16
      %v4388 = vrot.slane %v4386, 4
      %v4389 = vor.u32 %v4385, %v4388
      %v4390 = vsel %vm4073, %v4365, %v4389
      %v4391 = vshrl.u32 %v3983, 16
      %v4393 = vrot.slane %v4391, 3
      %v4394 = vshll.u32 %v3983, 16
      %v4396 = vrot.slane %v4394, 4
      %v4397 = vor.u32 %v4393, %v4396
      %v4398 = vsel %vm4073, %v4373, %v4397
      %v4399 = vshrl.u32 %v4018, 16
      %v4401 = vrot.slane %v4399, 3
      %v4402 = vshll.u32 %v4018, 16
      %v4404 = vrot.slane %v4402, 4
      %v4405 = vor.u32 %v4401, %v4404
      %v4406 = vsel %vm4073, %v4381, %v4405
      %v4407 = vshrl.u32 %v3845, 16
      %v4409 = vrot.slane %v4407, 3
      %v4410 = vshll.u32 %v3845, 16
      %v4412 = vrot.slane %v4410, 4
      %v4413 = vor.u32 %v4409, %v4412
      %v4414 = vsel %vm4073, %v4389, %v4413
      %v4415 = vshrl.u32 %v3985, 16
      %v4417 = vrot.slane %v4415, 3
      %v4418 = vshll.u32 %v3985, 16
      %v4420 = vrot.slane %v4418, 4
      %v4421 = vor.u32 %v4417, %v4420
      %v4422 = vsel %vm4073, %v4397, %v4421
      %v4423 = vshrl.u32 %v4020, 16
      %v4425 = vrot.slane %v4423, 3
      %v4426 = vshll.u32 %v4020, 16
      %v4428 = vrot.slane %v4426, 4
      %v4429 = vor.u32 %v4425, %v4428
      %v4430 = vsel %vm4073, %v4405, %v4429
      %v4431 = vshrl.u32 %v3847, 16
      %v4433 = vrot.slane %v4431, 3
      %v4434 = vshll.u32 %v3847, 16
      %v4436 = vrot.slane %v4434, 4
      %v4437 = vor.u32 %v4433, %v4436
      %v4438 = vsel %vm4073, %v4413, %v4437
      %v4439 = vshrl.u32 %v3987, 16
      %v4441 = vrot.slane %v4439, 3
      %v4442 = vshll.u32 %v3987, 16
      %v4444 = vrot.slane %v4442, 4
      %v4445 = vor.u32 %v4441, %v4444
      %v4446 = vsel %vm4073, %v4421, %v4445
      %v4447 = vshrl.u32 %v4022, 16
      %v4449 = vrot.slane %v4447, 3
      %v4450 = vshll.u32 %v4022, 16
      %v4452 = vrot.slane %v4450, 4
      %v4453 = vor.u32 %v4449, %v4452
      %v4454 = vsel %vm4073, %v4429, %v4453
      %v4455 = vshrl.u32 %v3849, 16
      %v4457 = vrot.slane %v4455, 3
      %v4458 = vshll.u32 %v3849, 16
      %v4460 = vrot.slane %v4458, 4
      %v4461 = vor.u32 %v4457, %v4460
      %v4462 = vsel %vm4073, %v4437, %v4461
      %v4463 = vshrl.u32 %v3989, 16
      %v4465 = vrot.slane %v4463, 3
      %v4466 = vshll.u32 %v3989, 16
      %v4468 = vrot.slane %v4466, 4
      %v4469 = vor.u32 %v4465, %v4468
      %v4470 = vsel %vm4073, %v4445, %v4469
      %v4471 = vshrl.u32 %v4024, 16
      %v4473 = vrot.slane %v4471, 3
      %v4474 = vshll.u32 %v4024, 16
      %v4476 = vrot.slane %v4474, 4
      %v4477 = vor.u32 %v4473, %v4476
      %v4478 = vsel %vm4073, %v4453, %v4477
      %v4552 = vunpack.c.l.b16 %v4025
      %v4553 = vunpack.c.l.b16 %v4026
      %v4554 = vunpack.c.l.b16 %v4027
      %v4555 = vunpack.c.l.b16 %v4028
      %v4556 = vunpack.c.l.b16 %v4029
      %v4557 = vunpack.c.l.b16 %v4030
      %v4558 = vunpack.c.l.b16 %v4031
      %v4559 = vunpack.c.l.b16 %v4032
      %v4560 = vunpack.c.l.b16 %v4033
      %v4561 = vunpack.c.l.b16 %v4034
      %v4562 = vunpack.c.l.b16 %v4035
      %v4563 = vunpack.c.l.b16 %v4036
      %v4564 = vunpack.c.l.b16 %v4037
      %v4565 = vunpack.c.l.b16 %v4038
      %v4566 = vunpack.c.l.b16 %v4039
      %v4567 = vunpack.c.l.b16 %v4040
      %v4568 = vunpack.c.l.b16 %v4041
      %v4569 = vunpack.c.l.b16 %v4042
      %v4570 = vunpack.c.l.b16 %v4043
      %v4571 = vunpack.c.l.b16 %v4044
      %v4572 = vunpack.c.l.b16 %v4045
      %v4573 = vunpack.c.l.b16 %v4046
      %v4574 = vunpack.c.l.b16 %v4047
      %v4575 = vunpack.c.l.b16 %v4048
      %v4576 = vunpack.c.l.b16 %v4049
      %v4577 = vunpack.c.l.b16 %v4050
      %v4578 = vunpack.c.l.b16 %v4051
      %v4579 = vunpack.c.l.b16 %v4052
      %v4580 = vunpack.c.l.b16 %v4053
      %v4581 = vunpack.c.l.b16 %v4054
      %v4582 = vunpack.c.l.b16 %v4055
      %v4583 = vunpack.c.l.b16 %v4056
      %v4584 = vunpack.c.l.b16 %v4057
      %v4585 = vunpack.c.l.b16 %v4058
      %v4586 = vunpack.c.l.b16 %v4059
      %v4587 = vunpack.c.l.b16 %v4060
      %v4588 = vunpack.c.l.b16 %v4061
      %v4589 = vunpack.c.l.b16 %v4062
      %v4590 = vunpack.c.l.b16 %v4063
      %v4591 = vunpack.c.l.b16 %v4064
      %v4592 = vunpack.c.l.b16 %v4065
      %v4593 = vpack.c.b16 %v4553, %v4552
      %v4594 = vpack.c.b16 %v4555, %v4554
      %v4595 = vpack.c.b16 %v4557, %v4556
      %v4596 = vpack.c.b16 %v4559, %v4558
      %v4597 = vpack.c.b16 %v4561, %v4560
      %v4598 = vpack.c.b16 %v4563, %v4562
      %v4599 = vpack.c.b16 %v4565, %v4564
      %v4600 = vpack.c.b16 %v4567, %v4566
      %v4601 = vpack.c.b16 %v4569, %v4568
      %v4602 = vpack.c.b16 %v4571, %v4570
      %v4603 = vpack.c.b16 %v4573, %v4572
      %v4604 = vpack.c.b16 %v4575, %v4574
      %v4605 = vpack.c.b16 %v4577, %v4576
      %v4606 = vpack.c.b16 %v4579, %v4578
      %v4607 = vpack.c.b16 %v4581, %v4580
      %v4608 = vpack.c.b16 %v4583, %v4582
      %v4609 = vpack.c.b16 %v4585, %v4584
      %v4610 = vpack.c.b16 %v4587, %v4586
      %v4611 = vpack.c.b16 %v4589, %v4588
      %v4612 = vpack.c.b16 %v4591, %v4590
      %v4613 = vpack.c.b16 %v4592, %v4592
      %vm4634 = vcmask 556032
      %v4636 = vsel %vm4634, %v4118, 0
      %v4639 = vsel %vm4634, %v4142, 0
      %v4642 = vsel %vm4634, %v4166, 0
      %v4645 = vsel %vm4634, %v4190, 0
      %v4648 = vsel %vm4634, %v4214, 0
      %v4651 = vsel %vm4634, %v4238, 0
      %v4654 = vsel %vm4634, %v4262, 0
      %v4657 = vsel %vm4634, %v4286, 0
      %v4660 = vsel %vm4634, %v4310, 0
      %v4663 = vsel %vm4634, %v4334, 0
      %v4666 = vsel %vm4634, %v4358, 0
      %v4669 = vsel %vm4634, %v4382, 0
      %v4672 = vsel %vm4634, %v4406, 0
      %v4675 = vsel %vm4634, %v4430, 0
      %v4678 = vsel %vm4634, %v4454, 0
      %v4681 = vsel %vm4634, %v4478, 0
      %vm4683 = vcmask 1041408
      %v4685 = vsel %vm4683, %v4613, 0
      %4687 = vmatprep.subr.bf16.mxu0 0
      %4688 = vmatpush1.bf16.msra.mxu0 %v4600
      %4689 = vmatprep.subr.bf16.mxu0 0
      %4690 = vmatpush1.bf16.msra.mxu0 %v4599
      %4691 = vmatprep.subr.bf16.mxu0 0
      %4692 = vmatpush1.bf16.msra.mxu0 %v4598
      %4693 = vmatprep.subr.bf16.mxu0 0
      %4694 = vmatpush1.bf16.msra.mxu0 %v4597
      %4695 = vmatprep.subr.bf16.mxu0 0
      %4696 = vmatpush1.bf16.msra.mxu0 %v4596
      %4697 = vmatprep.subr.bf16.mxu0 0
      %4698 = vmatpush1.bf16.msra.mxu0 %v4595
      %4699 = vmatprep.subr.bf16.mxu0 0
      %4700 = vmatpush1.bf16.msra.mxu0 %v4594
      %4701 = vmatprep.subr.bf16.mxu0 0
      %4702 = vmatpush1.bf16.msra.mxu0 %v4593
      %4703 = vmatprep.subr.bf16.mxu0 0
      %4704 = vmatpush2.bf16.msra.mxu0 %v4608
      %4705 = vmatprep.subr.bf16.mxu0 0
      %4706 = vmatpush2.bf16.msra.mxu0 %v4607
      %4707 = vmatprep.subr.bf16.mxu0 0
      %4708 = vmatpush2.bf16.msra.mxu0 %v4606
      %4709 = vmatprep.subr.bf16.mxu0 0
      %4710 = vmatpush2.bf16.msra.mxu0 %v4605
      %4711 = vmatprep.subr.bf16.mxu0 0
      %4712 = vmatpush2.bf16.msra.mxu0 %v4604
      %4713 = vmatprep.subr.bf16.mxu0 0
      %4714 = vmatpush2.bf16.msra.mxu0 %v4603
      %4715 = vmatprep.subr.bf16.mxu0 0
      %4716 = vmatpush2.bf16.msra.mxu0 %v4602
      %4717 = vmatprep.subr.bf16.mxu0 0
      %4718 = vmatpush2.bf16.msra.mxu0 %v4601
      %4719 = vmatprep.mubr.bf16.mxu0 %v4103
      %4720 = vmatmul.mubr.bf16.gmra.mxu0 %v4088
      %v4721 = vpop.f32.mrf.mxu0
      %v4722 = vadd.f32 %v4071, %v4721
      %v4723 = vpop.f32.mrf.mxu0
      %v4724 = vpop.f32.mrf.mxu0
      %v4725 = vadd.f32 %v4071, %v4724
      %v4726 = vpop.f32.mrf.mxu0
      %4727 = vmatprep.mubr.bf16.mxu0 %v4134
      %4728 = vmatmul.mubr.bf16.gmra.mxu0 %v4126
      %v4729 = vpop.f32.mrf.mxu0
      %v4730 = vadd.f32 %v4071, %v4729
      %v4731 = vpop.f32.mrf.mxu0
      %v4732 = vpop.f32.mrf.mxu0
      %v4733 = vadd.f32 %v4071, %v4732
      %v4734 = vpop.f32.mrf.mxu0
      %4735 = vmatprep.mubr.bf16.mxu0 %v4158
      %4736 = vmatmul.mubr.bf16.gmra.mxu0 %v4150
      %v4737 = vpop.f32.mrf.mxu0
      %v4738 = vadd.f32 %v4071, %v4737
      %v4739 = vpop.f32.mrf.mxu0
      %v4740 = vpop.f32.mrf.mxu0
      %v4741 = vadd.f32 %v4071, %v4740
      %v4742 = vpop.f32.mrf.mxu0
      %4743 = vmatprep.mubr.bf16.mxu0 %v4182
      %4744 = vmatmul.mubr.bf16.gmra.mxu0 %v4174
      %v4745 = vpop.f32.mrf.mxu0
      %v4746 = vadd.f32 %v4071, %v4745
      %v4747 = vpop.f32.mrf.mxu0
      %v4748 = vpop.f32.mrf.mxu0
      %v4749 = vadd.f32 %v4071, %v4748
      %v4750 = vpop.f32.mrf.mxu0
      %4751 = vmatprep.mubr.bf16.mxu0 %v4206
      %4752 = vmatmul.mubr.bf16.gmra.mxu0 %v4198
      %v4753 = vpop.f32.mrf.mxu0
      %v4754 = vadd.f32 %v4071, %v4753
      %v4755 = vpop.f32.mrf.mxu0
      %v4756 = vpop.f32.mrf.mxu0
      %v4757 = vadd.f32 %v4071, %v4756
      %v4758 = vpop.f32.mrf.mxu0
      %4759 = vmatprep.mubr.bf16.mxu0 %v4230
      %4760 = vmatmul.mubr.bf16.gmra.mxu0 %v4222
      %v4761 = vpop.f32.mrf.mxu0
      %v4762 = vadd.f32 %v4071, %v4761
      %v4763 = vpop.f32.mrf.mxu0
      %v4764 = vpop.f32.mrf.mxu0
      %v4765 = vadd.f32 %v4071, %v4764
      %v4766 = vpop.f32.mrf.mxu0
      %4767 = vmatprep.mubr.bf16.mxu0 %v4254
      %4768 = vmatmul.mubr.bf16.gmra.mxu0 %v4246
      %v4769 = vpop.f32.mrf.mxu0
      %v4770 = vadd.f32 %v4071, %v4769
      %v4771 = vpop.f32.mrf.mxu0
      %v4772 = vpop.f32.mrf.mxu0
      %v4773 = vadd.f32 %v4071, %v4772
      %v4774 = vpop.f32.mrf.mxu0
      %4775 = vmatprep.mubr.bf16.mxu0 %v4278
      %4776 = vmatmul.mubr.bf16.gmra.mxu0 %v4270
      %v4777 = vpop.f32.mrf.mxu0
      %v4778 = vadd.f32 %v4071, %v4777
      %v4779 = vpop.f32.mrf.mxu0
      %v4780 = vpop.f32.mrf.mxu0
      %v4781 = vadd.f32 %v4071, %v4780
      %v4782 = vpop.f32.mrf.mxu0
      %4783 = vmatprep.mubr.bf16.mxu0 %v4302
      %4784 = vmatmul.mubr.bf16.gmra.mxu0 %v4294
      %v4785 = vpop.f32.mrf.mxu0
      %v4786 = vadd.f32 %v4071, %v4785
      %v4787 = vpop.f32.mrf.mxu0
      %v4788 = vpop.f32.mrf.mxu0
      %v4789 = vadd.f32 %v4071, %v4788
      %v4790 = vpop.f32.mrf.mxu0
      %4791 = vmatprep.mubr.bf16.mxu0 %v4326
      %4792 = vmatmul.mubr.bf16.gmra.mxu0 %v4318
      %v4793 = vpop.f32.mrf.mxu0
      %v4794 = vadd.f32 %v4071, %v4793
      %v4795 = vpop.f32.mrf.mxu0
      %v4796 = vpop.f32.mrf.mxu0
      %v4797 = vadd.f32 %v4071, %v4796
      %v4798 = vpop.f32.mrf.mxu0
      %4799 = vmatprep.mubr.bf16.mxu0 %v4350
      %4800 = vmatmul.mubr.bf16.gmra.mxu0 %v4342
      %v4801 = vpop.f32.mrf.mxu0
      %v4802 = vadd.f32 %v4071, %v4801
      %v4803 = vpop.f32.mrf.mxu0
      %v4804 = vpop.f32.mrf.mxu0
      %v4805 = vadd.f32 %v4071, %v4804
      %v4806 = vpop.f32.mrf.mxu0
      %4807 = vmatprep.mubr.bf16.mxu0 %v4374
      %4808 = vmatmul.mubr.bf16.gmra.mxu0 %v4366
      %v4809 = vpop.f32.mrf.mxu0
      %v4810 = vadd.f32 %v4071, %v4809
      %v4811 = vpop.f32.mrf.mxu0
      %v4812 = vpop.f32.mrf.mxu0
      %v4813 = vadd.f32 %v4071, %v4812
      %v4814 = vpop.f32.mrf.mxu0
      %4815 = vmatprep.mubr.bf16.mxu0 %v4398
      %4816 = vmatmul.mubr.bf16.gmra.mxu0 %v4390
      %v4817 = vpop.f32.mrf.mxu0
      %v4818 = vadd.f32 %v4071, %v4817
      %v4819 = vpop.f32.mrf.mxu0
      %v4820 = vpop.f32.mrf.mxu0
      %v4821 = vadd.f32 %v4071, %v4820
      %v4822 = vpop.f32.mrf.mxu0
      %4823 = vmatprep.mubr.bf16.mxu0 %v4422
      %4824 = vmatmul.mubr.bf16.gmra.mxu0 %v4414
      %v4825 = vpop.f32.mrf.mxu0
      %v4826 = vadd.f32 %v4071, %v4825
      %v4827 = vpop.f32.mrf.mxu0
      %v4828 = vpop.f32.mrf.mxu0
      %v4829 = vadd.f32 %v4071, %v4828
      %v4830 = vpop.f32.mrf.mxu0
      %4831 = vmatprep.mubr.bf16.mxu0 %v4446
      %4832 = vmatmul.mubr.bf16.gmra.mxu0 %v4438
      %v4833 = vpop.f32.mrf.mxu0
      %v4834 = vadd.f32 %v4071, %v4833
      %v4835 = vpop.f32.mrf.mxu0
      %v4836 = vpop.f32.mrf.mxu0
      %v4837 = vadd.f32 %v4071, %v4836
      %v4838 = vpop.f32.mrf.mxu0
      %4839 = vmatprep.mubr.bf16.mxu0 %v4470
      %4840 = vmatmul.mubr.bf16.gmra.mxu0 %v4462
      %v4841 = vpop.f32.mrf.mxu0
      %v4842 = vadd.f32 %v4071, %v4841
      %v4843 = vpop.f32.mrf.mxu0
      %v4844 = vpop.f32.mrf.mxu0
      %v4845 = vadd.f32 %v4071, %v4844
      %v4846 = vpop.f32.mrf.mxu0
      %4847 = vdwg.mxu0
      %4848 = vmatprep.subr.bf16.mxu0 0
      %4849 = vmatpush1.bf16.msra.mxu0 0
      %4850 = vmatprep.subr.bf16.mxu0 0
      %4851 = vmatpush1.bf16.msra.mxu0 0
      %4852 = vmatprep.subr.bf16.mxu0 0
      %4853 = vmatpush1.bf16.msra.mxu0 0
      %4854 = vmatprep.subr.bf16.mxu0 0
      %4855 = vmatpush1.bf16.msra.mxu0 %v4685
      %4856 = vmatprep.subr.bf16.mxu0 0
      %4857 = vmatpush1.bf16.msra.mxu0 %v4612
      %4858 = vmatprep.subr.bf16.mxu0 0
      %4859 = vmatpush1.bf16.msra.mxu0 %v4611
      %4860 = vmatprep.subr.bf16.mxu0 0
      %4861 = vmatpush1.bf16.msra.mxu0 %v4610
      %4862 = vmatprep.subr.bf16.mxu0 0
      %4863 = vmatpush1.bf16.msra.mxu0 %v4609
      %4864 = vmatprep.subr.bf16.mxu0 0
      %4865 = vmatpush2.bf16.msra.mxu0 0
      %4866 = vmatprep.subr.bf16.mxu0 0
      %4867 = vmatpush2.bf16.msra.mxu0 0
      %4868 = vmatprep.subr.bf16.mxu0 0
      %4869 = vmatpush2.bf16.msra.mxu0 0
      %4870 = vmatprep.subr.bf16.mxu0 0
      %4871 = vmatpush2.bf16.msra.mxu0 0
      %4872 = vmatprep.subr.bf16.mxu0 0
      %4873 = vmatpush2.bf16.msra.mxu0 0
      %4874 = vmatprep.subr.bf16.mxu0 0
      %4875 = vmatpush2.bf16.msra.mxu0 0
      %4876 = vmatprep.subr.bf16.mxu0 0
      %4877 = vmatpush2.bf16.msra.mxu0 0
      %4878 = vmatprep.subr.bf16.mxu0 0
      %4879 = vmatpush2.bf16.msra.mxu0 0
      %4880 = vmatprep.mubr.bf16.mxu0 0
      %4881 = vmatmul.mubr.bf16.gmra.mxu0 %v4636
      %v4882 = vpop.f32.mrf.mxu0
      %v4883 = vadd.f32 %v4722, %v4882
      %v4884 = vpop.f32.mrf.mxu0
      %v4885 = vpop.f32.mrf.mxu0
      %v4886 = vadd.f32 %v4725, %v4885
      %v4887 = vpop.f32.mrf.mxu0
      %4888 = vmatprep.mubr.bf16.mxu0 0
      %4889 = vmatmul.mubr.bf16.gmra.mxu0 %v4639
      %v4890 = vpop.f32.mrf.mxu0
      %v4891 = vadd.f32 %v4730, %v4890
      %v4892 = vpop.f32.mrf.mxu0
      %v4893 = vpop.f32.mrf.mxu0
      %v4894 = vadd.f32 %v4733, %v4893
      %v4895 = vpop.f32.mrf.mxu0
      %4896 = vmatprep.mubr.bf16.mxu0 0
      %4897 = vmatmul.mubr.bf16.gmra.mxu0 %v4642
      %v4898 = vpop.f32.mrf.mxu0
      %v4899 = vadd.f32 %v4738, %v4898
      %v4900 = vpop.f32.mrf.mxu0
      %v4901 = vpop.f32.mrf.mxu0
      %v4902 = vadd.f32 %v4741, %v4901
      %v4903 = vpop.f32.mrf.mxu0
      %4904 = vmatprep.mubr.bf16.mxu0 0
      %4905 = vmatmul.mubr.bf16.gmra.mxu0 %v4645
      %v4906 = vpop.f32.mrf.mxu0
      %v4907 = vadd.f32 %v4746, %v4906
      %v4908 = vpop.f32.mrf.mxu0
      %v4909 = vpop.f32.mrf.mxu0
      %v4910 = vadd.f32 %v4749, %v4909
      %v4911 = vpop.f32.mrf.mxu0
      %4912 = vmatprep.mubr.bf16.mxu0 0
      %4913 = vmatmul.mubr.bf16.gmra.mxu0 %v4648
      %v4914 = vpop.f32.mrf.mxu0
      %v4915 = vadd.f32 %v4754, %v4914
      %v4916 = vpop.f32.mrf.mxu0
      %v4917 = vpop.f32.mrf.mxu0
      %v4918 = vadd.f32 %v4757, %v4917
      %v4919 = vpop.f32.mrf.mxu0
      %4920 = vmatprep.mubr.bf16.mxu0 0
      %4921 = vmatmul.mubr.bf16.gmra.mxu0 %v4651
      %v4922 = vpop.f32.mrf.mxu0
      %v4923 = vadd.f32 %v4762, %v4922
      %v4924 = vpop.f32.mrf.mxu0
      %v4925 = vpop.f32.mrf.mxu0
      %v4926 = vadd.f32 %v4765, %v4925
      %v4927 = vpop.f32.mrf.mxu0
      %4928 = vmatprep.mubr.bf16.mxu0 0
      %4929 = vmatmul.mubr.bf16.gmra.mxu0 %v4654
      %v4930 = vpop.f32.mrf.mxu0
      %v4931 = vadd.f32 %v4770, %v4930
      %v4932 = vpop.f32.mrf.mxu0
      %v4933 = vpop.f32.mrf.mxu0
      %v4934 = vadd.f32 %v4773, %v4933
      %v4935 = vpop.f32.mrf.mxu0
      %4936 = vmatprep.mubr.bf16.mxu0 0
      %4937 = vmatmul.mubr.bf16.gmra.mxu0 %v4657
      %v4938 = vpop.f32.mrf.mxu0
      %v4939 = vadd.f32 %v4778, %v4938
      %v4940 = vpop.f32.mrf.mxu0
      %v4941 = vpop.f32.mrf.mxu0
      %v4942 = vadd.f32 %v4781, %v4941
      %v4943 = vpop.f32.mrf.mxu0
      %4944 = vmatprep.mubr.bf16.mxu0 0
      %4945 = vmatmul.mubr.bf16.gmra.mxu0 %v4660
      %v4946 = vpop.f32.mrf.mxu0
      %v4947 = vadd.f32 %v4786, %v4946
      %v4948 = vpop.f32.mrf.mxu0
      %v4949 = vpop.f32.mrf.mxu0
      %v4950 = vadd.f32 %v4789, %v4949
      %v4951 = vpop.f32.mrf.mxu0
      %4952 = vmatprep.mubr.bf16.mxu0 0
      %4953 = vmatmul.mubr.bf16.gmra.mxu0 %v4663
      %v4954 = vpop.f32.mrf.mxu0
      %v4955 = vadd.f32 %v4794, %v4954
      %v4956 = vpop.f32.mrf.mxu0
      %v4957 = vpop.f32.mrf.mxu0
      %v4958 = vadd.f32 %v4797, %v4957
      %v4959 = vpop.f32.mrf.mxu0
      %4960 = vmatprep.mubr.bf16.mxu0 0
      %4961 = vmatmul.mubr.bf16.gmra.mxu0 %v4666
      %v4962 = vpop.f32.mrf.mxu0
      %v4963 = vadd.f32 %v4802, %v4962
      %v4964 = vpop.f32.mrf.mxu0
      %v4965 = vpop.f32.mrf.mxu0
      %v4966 = vadd.f32 %v4805, %v4965
      %v4967 = vpop.f32.mrf.mxu0
      %4968 = vmatprep.mubr.bf16.mxu0 0
      %4969 = vmatmul.mubr.bf16.gmra.mxu0 %v4669
      %v4970 = vpop.f32.mrf.mxu0
      %v4971 = vadd.f32 %v4810, %v4970
      %v4972 = vpop.f32.mrf.mxu0
      %v4973 = vpop.f32.mrf.mxu0
      %v4974 = vadd.f32 %v4813, %v4973
      %v4975 = vpop.f32.mrf.mxu0
      %4976 = vmatprep.mubr.bf16.mxu0 0
      %4977 = vmatmul.mubr.bf16.gmra.mxu0 %v4672
      %v4978 = vpop.f32.mrf.mxu0
      %v4979 = vadd.f32 %v4818, %v4978
      %v4980 = vpop.f32.mrf.mxu0
      %v4981 = vpop.f32.mrf.mxu0
      %v4982 = vadd.f32 %v4821, %v4981
      %v4983 = vpop.f32.mrf.mxu0
      %4984 = vmatprep.mubr.bf16.mxu0 0
      %4985 = vmatmul.mubr.bf16.gmra.mxu0 %v4675
      %v4986 = vpop.f32.mrf.mxu0
      %v4987 = vadd.f32 %v4826, %v4986
      %v4988 = vpop.f32.mrf.mxu0
      %v4989 = vpop.f32.mrf.mxu0
      %v4990 = vadd.f32 %v4829, %v4989
      %v4991 = vpop.f32.mrf.mxu0
      %4992 = vmatprep.mubr.bf16.mxu0 0
      %4993 = vmatmul.mubr.bf16.gmra.mxu0 %v4678
      %v4994 = vpop.f32.mrf.mxu0
      %v4995 = vadd.f32 %v4834, %v4994
      %v4996 = vpop.f32.mrf.mxu0
      %v4997 = vpop.f32.mrf.mxu0
      %v4998 = vadd.f32 %v4837, %v4997
      %v4999 = vpop.f32.mrf.mxu0
      %5000 = vmatprep.mubr.bf16.mxu0 0
      %5001 = vmatmul.mubr.bf16.gmra.mxu0 %v4681
      %v5002 = vpop.f32.mrf.mxu0
      %v5003 = vadd.f32 %v4842, %v5002
      %v5004 = vpop.f32.mrf.mxu0
      %v5005 = vpop.f32.mrf.mxu0
      %v5006 = vadd.f32 %v4845, %v5005
      %v5007 = vpop.f32.mrf.mxu0
      %5008 = vdwg.mxu0
      %v5009 = vxor.u32 %v4883, 2147483648
      %v5010 = vxor.u32 %v4886, 2147483648
      %v5011 = vxor.u32 %v4891, 2147483648
      %v5012 = vxor.u32 %v4894, 2147483648
      %v5013 = vxor.u32 %v4899, 2147483648
      %v5014 = vxor.u32 %v4902, 2147483648
      %v5015 = vxor.u32 %v4907, 2147483648
      %v5016 = vxor.u32 %v4910, 2147483648
      %v5017 = vxor.u32 %v4915, 2147483648
      %v5018 = vxor.u32 %v4918, 2147483648
      %v5019 = vxor.u32 %v4923, 2147483648
      %v5020 = vxor.u32 %v4926, 2147483648
      %v5021 = vxor.u32 %v4931, 2147483648
      %v5022 = vxor.u32 %v4934, 2147483648
      %v5023 = vxor.u32 %v4939, 2147483648
      %v5024 = vxor.u32 %v4942, 2147483648
      %v5025 = vxor.u32 %v4947, 2147483648
      %v5026 = vxor.u32 %v4950, 2147483648
      %v5027 = vxor.u32 %v4955, 2147483648
      %v5028 = vxor.u32 %v4958, 2147483648
      %v5029 = vxor.u32 %v4963, 2147483648
      %v5030 = vxor.u32 %v4966, 2147483648
      %v5031 = vxor.u32 %v4971, 2147483648
      %v5032 = vxor.u32 %v4974, 2147483648
      %v5033 = vxor.u32 %v4979, 2147483648
      %v5034 = vxor.u32 %v4982, 2147483648
      %v5035 = vxor.u32 %v4987, 2147483648
      %v5036 = vxor.u32 %v4990, 2147483648
      %v5037 = vxor.u32 %v4995, 2147483648
      %v5038 = vxor.u32 %v4998, 2147483648
      %v5039 = vxor.u32 %v5003, 2147483648
      %v5040 = vxor.u32 %v5006, 2147483648
      %v5041 = vmul.f32 %v5009, 1.442695
      %v5042 = vpow.pop %v5041
      %v5043 = vmul.f32 %v5010, 1.442695
      %v5044 = vpow.pop %v5043
      %v5045 = vmul.f32 %v5011, 1.442695
      %v5046 = vpow.pop %v5045
      %v5047 = vmul.f32 %v5012, 1.442695
      %v5048 = vpow.pop %v5047
      %v5049 = vmul.f32 %v5013, 1.442695
      %v5050 = vpow.pop %v5049
      %v5051 = vmul.f32 %v5014, 1.442695
      %v5052 = vpow.pop %v5051
      %v5053 = vmul.f32 %v5015, 1.442695
      %v5054 = vpow.pop %v5053
      %v5055 = vmul.f32 %v5016, 1.442695
      %v5056 = vpow.pop %v5055
      %v5057 = vmul.f32 %v5017, 1.442695
      %v5058 = vpow.pop %v5057
      %v5059 = vmul.f32 %v5018, 1.442695
      %v5060 = vpow.pop %v5059
      %v5061 = vmul.f32 %v5019, 1.442695
      %v5062 = vpow.pop %v5061
      %v5063 = vmul.f32 %v5020, 1.442695
      %v5064 = vpow.pop %v5063
      %v5065 = vmul.f32 %v5021, 1.442695
      %v5066 = vpow.pop %v5065
      %v5067 = vmul.f32 %v5022, 1.442695
      %v5068 = vpow.pop %v5067
      %v5069 = vmul.f32 %v5023, 1.442695
      %v5070 = vpow.pop %v5069
      %v5071 = vmul.f32 %v5024, 1.442695
      %v5072 = vpow.pop %v5071
      %v5073 = vmul.f32 %v5025, 1.442695
      %v5074 = vpow.pop %v5073
      %v5075 = vmul.f32 %v5026, 1.442695
      %v5076 = vpow.pop %v5075
      %v5077 = vmul.f32 %v5027, 1.442695
      %v5078 = vpow.pop %v5077
      %v5079 = vmul.f32 %v5028, 1.442695
      %v5080 = vpow.pop %v5079
      %v5081 = vmul.f32 %v5029, 1.442695
      %v5082 = vpow.pop %v5081
      %v5083 = vmul.f32 %v5030, 1.442695
      %v5084 = vpow.pop %v5083
      %v5085 = vmul.f32 %v5031, 1.442695
      %v5086 = vpow.pop %v5085
      %v5087 = vmul.f32 %v5032, 1.442695
      %v5088 = vpow.pop %v5087
      %v5089 = vmul.f32 %v5033, 1.442695
      %v5090 = vpow.pop %v5089
      %v5091 = vmul.f32 %v5034, 1.442695
      %v5092 = vpow.pop %v5091
      %v5093 = vmul.f32 %v5035, 1.442695
      %v5094 = vpow.pop %v5093
      %v5095 = vmul.f32 %v5036, 1.442695
      %v5096 = vpow.pop %v5095
      %v5097 = vmul.f32 %v5037, 1.442695
      %v5098 = vpow.pop %v5097
      %v5099 = vmul.f32 %v5038, 1.442695
      %v5100 = vpow.pop %v5099
      %v5101 = vmul.f32 %v5039, 1.442695
      %v5102 = vpow.pop %v5101
      %v5103 = vmul.f32 %v5040, 1.442695
      %v5104 = vpow.pop %v5103
      %v5105 = vadd.f32 %v5042, 1.0
      %v5106 = vadd.f32 %v5044, 1.0
      %v5107 = vadd.f32 %v5046, 1.0
      %v5108 = vadd.f32 %v5048, 1.0
      %v5109 = vadd.f32 %v5050, 1.0
      %v5110 = vadd.f32 %v5052, 1.0
      %v5111 = vadd.f32 %v5054, 1.0
      %v5112 = vadd.f32 %v5056, 1.0
      %v5113 = vadd.f32 %v5058, 1.0
      %v5114 = vadd.f32 %v5060, 1.0
      %v5115 = vadd.f32 %v5062, 1.0
      %v5116 = vadd.f32 %v5064, 1.0
      %v5117 = vadd.f32 %v5066, 1.0
      %v5118 = vadd.f32 %v5068, 1.0
      %v5119 = vadd.f32 %v5070, 1.0
      %v5120 = vadd.f32 %v5072, 1.0
      %v5121 = vadd.f32 %v5074, 1.0
      %v5122 = vadd.f32 %v5076, 1.0
      %v5123 = vadd.f32 %v5078, 1.0
      %v5124 = vadd.f32 %v5080, 1.0
      %v5125 = vadd.f32 %v5082, 1.0
      %v5126 = vadd.f32 %v5084, 1.0
      %v5127 = vadd.f32 %v5086, 1.0
      %v5128 = vadd.f32 %v5088, 1.0
      %v5129 = vadd.f32 %v5090, 1.0
      %v5130 = vadd.f32 %v5092, 1.0
      %v5131 = vadd.f32 %v5094, 1.0
      %v5132 = vadd.f32 %v5096, 1.0
      %v5133 = vadd.f32 %v5098, 1.0
      %v5134 = vadd.f32 %v5100, 1.0
      %v5135 = vadd.f32 %v5102, 1.0
      %v5136 = vadd.f32 %v5104, 1.0
      %v5137 = vrcp.pop %v5105
      %v5138 = vmul.f32 1.0, %v5137
      %v5139 = vrcp.pop %v5106
      %v5140 = vmul.f32 1.0, %v5139
      %v5141 = vrcp.pop %v5107
      %v5142 = vmul.f32 1.0, %v5141
      %v5143 = vrcp.pop %v5108
      %v5144 = vmul.f32 1.0, %v5143
      %v5145 = vrcp.pop %v5109
      %v5146 = vmul.f32 1.0, %v5145
      %v5147 = vrcp.pop %v5110
      %v5148 = vmul.f32 1.0, %v5147
      %v5149 = vrcp.pop %v5111
      %v5150 = vmul.f32 1.0, %v5149
      %v5151 = vrcp.pop %v5112
      %v5152 = vmul.f32 1.0, %v5151
      %v5153 = vrcp.pop %v5113
      %v5154 = vmul.f32 1.0, %v5153
      %v5155 = vrcp.pop %v5114
      %v5156 = vmul.f32 1.0, %v5155
      %v5157 = vrcp.pop %v5115
      %v5158 = vmul.f32 1.0, %v5157
      %v5159 = vrcp.pop %v5116
      %v5160 = vmul.f32 1.0, %v5159
      %v5161 = vrcp.pop %v5117
      %v5162 = vmul.f32 1.0, %v5161
      %v5163 = vrcp.pop %v5118
      %v5164 = vmul.f32 1.0, %v5163
      %v5165 = vrcp.pop %v5119
      %v5166 = vmul.f32 1.0, %v5165
      %v5167 = vrcp.pop %v5120
      %v5168 = vmul.f32 1.0, %v5167
      %v5169 = vrcp.pop %v5121
      %v5170 = vmul.f32 1.0, %v5169
      %v5171 = vrcp.pop %v5122
      %v5172 = vmul.f32 1.0, %v5171
      %v5173 = vrcp.pop %v5123
      %v5174 = vmul.f32 1.0, %v5173
      %v5175 = vrcp.pop %v5124
      %v5176 = vmul.f32 1.0, %v5175
      %v5177 = vrcp.pop %v5125
      %v5178 = vmul.f32 1.0, %v5177
      %v5179 = vrcp.pop %v5126
      %v5180 = vmul.f32 1.0, %v5179
      %v5181 = vrcp.pop %v5127
      %v5182 = vmul.f32 1.0, %v5181
      %v5183 = vrcp.pop %v5128
      %v5184 = vmul.f32 1.0, %v5183
      %v5185 = vrcp.pop %v5129
      %v5186 = vmul.f32 1.0, %v5185
      %v5187 = vrcp.pop %v5130
      %v5188 = vmul.f32 1.0, %v5187
      %v5189 = vrcp.pop %v5131
      %v5190 = vmul.f32 1.0, %v5189
      %v5191 = vrcp.pop %v5132
      %v5192 = vmul.f32 1.0, %v5191
      %v5193 = vrcp.pop %v5133
      %v5194 = vmul.f32 1.0, %v5193
      %v5195 = vrcp.pop %v5134
      %v5196 = vmul.f32 1.0, %v5195
      %v5197 = vrcp.pop %v5135
      %v5198 = vmul.f32 1.0, %v5197
      %v5199 = vrcp.pop %v5136
      %v5200 = vmul.f32 1.0, %v5199
      %v5201 = vtanh.pop %v4883
      %v5202 = vtanh.pop %v4886
      %v5203 = vtanh.pop %v4891
      %v5204 = vtanh.pop %v4894
      %v5205 = vtanh.pop %v4899
      %v5206 = vtanh.pop %v4902
      %v5207 = vtanh.pop %v4907
      %v5208 = vtanh.pop %v4910
      %v5209 = vtanh.pop %v4915
      %v5210 = vtanh.pop %v4918
      %v5211 = vtanh.pop %v4923
      %v5212 = vtanh.pop %v4926
      %v5213 = vtanh.pop %v4931
      %v5214 = vtanh.pop %v4934
      %v5215 = vtanh.pop %v4939
      %v5216 = vtanh.pop %v4942
      %v5217 = vtanh.pop %v4947
      %v5218 = vtanh.pop %v4950
      %v5219 = vtanh.pop %v4955
      %v5220 = vtanh.pop %v4958
      %v5221 = vtanh.pop %v4963
      %v5222 = vtanh.pop %v4966
      %v5223 = vtanh.pop %v4971
      %v5224 = vtanh.pop %v4974
      %v5225 = vtanh.pop %v4979
      %v5226 = vtanh.pop %v4982
      %v5227 = vtanh.pop %v4987
      %v5228 = vtanh.pop %v4990
      %v5229 = vtanh.pop %v4995
      %v5230 = vtanh.pop %v4998
      %v5231 = vtanh.pop %v5003
      %v5232 = vtanh.pop %v5006
      %v5233 = vld [vmem:[%s333] sm:$0xff]
      %v5234 = vld [vmem:[%s333 + $0x8] sm:$0xff]
      %v5235 = vld [vmem:[%s333 + $0x10] sm:$0xff]
      %v5236 = vld [vmem:[%s333 + $0x18] sm:$0xff]
      %v5237 = vld [vmem:[%s333 + $0x20] sm:$0xff]
      %v5238 = vld [vmem:[%s333 + $0x28] sm:$0xff]
      %v5239 = vld [vmem:[%s333 + $0x30] sm:$0xff]
      %v5240 = vld [vmem:[%s333 + $0x38] sm:$0xff]
      %v5241 = vld [vmem:[%s333 + $0x40] sm:$0xff]
      %v5242 = vld [vmem:[%s333 + $0x48] sm:$0xff]
      %v5243 = vld [vmem:[%s333 + $0x50] sm:$0xff]
      %v5244 = vld [vmem:[%s333 + $0x58] sm:$0xff]
      %v5245 = vld [vmem:[%s333 + $0x60] sm:$0xff]
      %v5246 = vld [vmem:[%s333 + $0x68] sm:$0xff]
      %v5247 = vld [vmem:[%s333 + $0x70] sm:$0xff]
      %v5248 = vld [vmem:[%s333 + $0x78] sm:$0xff]
      %v5249 = vld [vmem:[%s333 + $0x80] sm:$0xff]
      %v5250 = vld [vmem:[%s333 + $0x88] sm:$0xff]
      %v5251 = vld [vmem:[%s333 + $0x90] sm:$0xff]
      %v5252 = vld [vmem:[%s333 + $0x98] sm:$0xff]
      %v5253 = vld [vmem:[%s333 + $0xa0] sm:$0xff]
      %v5254 = vld [vmem:[%s333 + $0xa8] sm:$0xff]
      %v5255 = vld [vmem:[%s333 + $0xb0] sm:$0xff]
      %v5256 = vld [vmem:[%s333 + $0xb8] sm:$0xff]
      %v5257 = vld [vmem:[%s333 + $0xc0] sm:$0xff]
      %v5258 = vld [vmem:[%s333 + $0xc8] sm:$0xff]
      %v5259 = vld [vmem:[%s333 + $0xd0] sm:$0xff]
      %v5260 = vld [vmem:[%s333 + $0xd8] sm:$0xff]
      %v5261 = vld [vmem:[%s333 + $0xe0] sm:$0xff]
      %v5262 = vld [vmem:[%s333 + $0xe8] sm:$0xff]
      %v5263 = vld [vmem:[%s333 + $0xf0] sm:$0xff]
      %v5264 = vld [vmem:[%s333 + $0xf8] sm:$0xff]
      %5297 = vrot.lane.b32.xlu0 %v5233, 32
      %v5298 = vpop.permute.xlu0 %5297
      %5299 = vrot.lane.b32.xlu0 %v5234, 32
      %v5300 = vpop.permute.xlu0 %5299
      %5301 = vrot.lane.b32.xlu0 %v5235, 32
      %v5302 = vpop.permute.xlu0 %5301
      %5303 = vrot.lane.b32.xlu0 %v5236, 32
      %v5304 = vpop.permute.xlu0 %5303
      %5305 = vrot.lane.b32.xlu0 %v5237, 32
      %v5306 = vpop.permute.xlu0 %5305
      %5307 = vrot.lane.b32.xlu0 %v5238, 32
      %v5308 = vpop.permute.xlu0 %5307
      %5309 = vrot.lane.b32.xlu0 %v5239, 32
      %v5310 = vpop.permute.xlu0 %5309
      %5311 = vrot.lane.b32.xlu0 %v5240, 32
      %v5312 = vpop.permute.xlu0 %5311
      %5313 = vrot.lane.b32.xlu0 %v5241, 32
      %v5314 = vpop.permute.xlu0 %5313
      %5315 = vrot.lane.b32.xlu0 %v5242, 32
      %v5316 = vpop.permute.xlu0 %5315
      %5317 = vrot.lane.b32.xlu0 %v5243, 32
      %v5318 = vpop.permute.xlu0 %5317
      %5319 = vrot.lane.b32.xlu0 %v5244, 32
      %v5320 = vpop.permute.xlu0 %5319
      %5321 = vrot.lane.b32.xlu0 %v5245, 32
      %v5322 = vpop.permute.xlu0 %5321
      %5323 = vrot.lane.b32.xlu0 %v5246, 32
      %v5324 = vpop.permute.xlu0 %5323
      %5325 = vrot.lane.b32.xlu0 %v5247, 32
      %v5326 = vpop.permute.xlu0 %5325
      %5327 = vrot.lane.b32.xlu0 %v5248, 32
      %v5328 = vpop.permute.xlu0 %5327
      %5329 = vrot.lane.b32.xlu0 %v5249, 32
      %v5330 = vpop.permute.xlu0 %5329
      %5331 = vrot.lane.b32.xlu0 %v5250, 32
      %v5332 = vpop.permute.xlu0 %5331
      %5333 = vrot.lane.b32.xlu0 %v5251, 32
      %v5334 = vpop.permute.xlu0 %5333
      %5335 = vrot.lane.b32.xlu0 %v5252, 32
      %v5336 = vpop.permute.xlu0 %5335
      %5337 = vrot.lane.b32.xlu0 %v5253, 32
      %v5338 = vpop.permute.xlu0 %5337
      %5339 = vrot.lane.b32.xlu0 %v5254, 32
      %v5340 = vpop.permute.xlu0 %5339
      %5341 = vrot.lane.b32.xlu0 %v5255, 32
      %v5342 = vpop.permute.xlu0 %5341
      %5343 = vrot.lane.b32.xlu0 %v5256, 32
      %v5344 = vpop.permute.xlu0 %5343
      %5345 = vrot.lane.b32.xlu0 %v5257, 32
      %v5346 = vpop.permute.xlu0 %5345
      %5347 = vrot.lane.b32.xlu0 %v5258, 32
      %v5348 = vpop.permute.xlu0 %5347
      %5349 = vrot.lane.b32.xlu0 %v5259, 32
      %v5350 = vpop.permute.xlu0 %5349
      %5351 = vrot.lane.b32.xlu0 %v5260, 32
      %v5352 = vpop.permute.xlu0 %5351
      %5353 = vrot.lane.b32.xlu0 %v5261, 32
      %v5354 = vpop.permute.xlu0 %5353
      %5355 = vrot.lane.b32.xlu0 %v5262, 32
      %v5356 = vpop.permute.xlu0 %5355
      %5357 = vrot.lane.b32.xlu0 %v5263, 32
      %v5358 = vpop.permute.xlu0 %5357
      %5359 = vrot.lane.b32.xlu0 %v5264, 32
      %v5360 = vpop.permute.xlu0 %5359
      %v5393 = vmul.f32 %v5138, %v5298
      %v5394 = vmul.f32 %v5140, %v5300
      %v5395 = vmul.f32 %v5142, %v5302
      %v5396 = vmul.f32 %v5144, %v5304
      %v5397 = vmul.f32 %v5146, %v5306
      %v5398 = vmul.f32 %v5148, %v5308
      %v5399 = vmul.f32 %v5150, %v5310
      %v5400 = vmul.f32 %v5152, %v5312
      %v5401 = vmul.f32 %v5154, %v5314
      %v5402 = vmul.f32 %v5156, %v5316
      %v5403 = vmul.f32 %v5158, %v5318
      %v5404 = vmul.f32 %v5160, %v5320
      %v5405 = vmul.f32 %v5162, %v5322
      %v5406 = vmul.f32 %v5164, %v5324
      %v5407 = vmul.f32 %v5166, %v5326
      %v5408 = vmul.f32 %v5168, %v5328
      %v5409 = vmul.f32 %v5170, %v5330
      %v5410 = vmul.f32 %v5172, %v5332
      %v5411 = vmul.f32 %v5174, %v5334
      %v5412 = vmul.f32 %v5176, %v5336
      %v5413 = vmul.f32 %v5178, %v5338
      %v5414 = vmul.f32 %v5180, %v5340
      %v5415 = vmul.f32 %v5182, %v5342
      %v5416 = vmul.f32 %v5184, %v5344
      %v5417 = vmul.f32 %v5186, %v5346
      %v5418 = vmul.f32 %v5188, %v5348
      %v5419 = vmul.f32 %v5190, %v5350
      %v5420 = vmul.f32 %v5192, %v5352
      %v5421 = vmul.f32 %v5194, %v5354
      %v5422 = vmul.f32 %v5196, %v5356
      %v5423 = vmul.f32 %v5198, %v5358
      %v5424 = vmul.f32 %v5200, %v5360
      %5457 = vrot.lane.b32.xlu0 %v5201, 32
      %v5458 = vpop.permute.xlu0 %5457
      %5459 = vrot.lane.b32.xlu0 %v5202, 32
      %v5460 = vpop.permute.xlu0 %5459
      %5461 = vrot.lane.b32.xlu0 %v5203, 32
      %v5462 = vpop.permute.xlu0 %5461
      %5463 = vrot.lane.b32.xlu0 %v5204, 32
      %v5464 = vpop.permute.xlu0 %5463
      %5465 = vrot.lane.b32.xlu0 %v5205, 32
      %v5466 = vpop.permute.xlu0 %5465
      %5467 = vrot.lane.b32.xlu0 %v5206, 32
      %v5468 = vpop.permute.xlu0 %5467
      %5469 = vrot.lane.b32.xlu0 %v5207, 32
      %v5470 = vpop.permute.xlu0 %5469
      %5471 = vrot.lane.b32.xlu0 %v5208, 32
      %v5472 = vpop.permute.xlu0 %5471
      %5473 = vrot.lane.b32.xlu0 %v5209, 32
      %v5474 = vpop.permute.xlu0 %5473
      %5475 = vrot.lane.b32.xlu0 %v5210, 32
      %v5476 = vpop.permute.xlu0 %5475
      %5477 = vrot.lane.b32.xlu0 %v5211, 32
      %v5478 = vpop.permute.xlu0 %5477
      %5479 = vrot.lane.b32.xlu0 %v5212, 32
      %v5480 = vpop.permute.xlu0 %5479
      %5481 = vrot.lane.b32.xlu0 %v5213, 32
      %v5482 = vpop.permute.xlu0 %5481
      %5483 = vrot.lane.b32.xlu0 %v5214, 32
      %v5484 = vpop.permute.xlu0 %5483
      %5485 = vrot.lane.b32.xlu0 %v5215, 32
      %v5486 = vpop.permute.xlu0 %5485
      %5487 = vrot.lane.b32.xlu0 %v5216, 32
      %v5488 = vpop.permute.xlu0 %5487
      %5489 = vrot.lane.b32.xlu0 %v5217, 32
      %v5490 = vpop.permute.xlu0 %5489
      %5491 = vrot.lane.b32.xlu0 %v5218, 32
      %v5492 = vpop.permute.xlu0 %5491
      %5493 = vrot.lane.b32.xlu0 %v5219, 32
      %v5494 = vpop.permute.xlu0 %5493
      %5495 = vrot.lane.b32.xlu0 %v5220, 32
      %v5496 = vpop.permute.xlu0 %5495
      %5497 = vrot.lane.b32.xlu0 %v5221, 32
      %v5498 = vpop.permute.xlu0 %5497
      %5499 = vrot.lane.b32.xlu0 %v5222, 32
      %v5500 = vpop.permute.xlu0 %5499
      %5501 = vrot.lane.b32.xlu0 %v5223, 32
      %v5502 = vpop.permute.xlu0 %5501
      %5503 = vrot.lane.b32.xlu0 %v5224, 32
      %v5504 = vpop.permute.xlu0 %5503
      %5505 = vrot.lane.b32.xlu0 %v5225, 32
      %v5506 = vpop.permute.xlu0 %5505
      %5507 = vrot.lane.b32.xlu0 %v5226, 32
      %v5508 = vpop.permute.xlu0 %5507
      %5509 = vrot.lane.b32.xlu0 %v5227, 32
      %v5510 = vpop.permute.xlu0 %5509
      %5511 = vrot.lane.b32.xlu0 %v5228, 32
      %v5512 = vpop.permute.xlu0 %5511
      %5513 = vrot.lane.b32.xlu0 %v5229, 32
      %v5514 = vpop.permute.xlu0 %5513
      %5515 = vrot.lane.b32.xlu0 %v5230, 32
      %v5516 = vpop.permute.xlu0 %5515
      %5517 = vrot.lane.b32.xlu0 %v5231, 32
      %v5518 = vpop.permute.xlu0 %5517
      %5519 = vrot.lane.b32.xlu0 %v5232, 32
      %v5520 = vpop.permute.xlu0 %5519
      %v5553 = vmul.f32 %v5138, %v5458
      %v5554 = vmul.f32 %v5140, %v5460
      %v5555 = vmul.f32 %v5142, %v5462
      %v5556 = vmul.f32 %v5144, %v5464
      %v5557 = vmul.f32 %v5146, %v5466
      %v5558 = vmul.f32 %v5148, %v5468
      %v5559 = vmul.f32 %v5150, %v5470
      %v5560 = vmul.f32 %v5152, %v5472
      %v5561 = vmul.f32 %v5154, %v5474
      %v5562 = vmul.f32 %v5156, %v5476
      %v5563 = vmul.f32 %v5158, %v5478
      %v5564 = vmul.f32 %v5160, %v5480
      %v5565 = vmul.f32 %v5162, %v5482
      %v5566 = vmul.f32 %v5164, %v5484
      %v5567 = vmul.f32 %v5166, %v5486
      %v5568 = vmul.f32 %v5168, %v5488
      %v5569 = vmul.f32 %v5170, %v5490
      %v5570 = vmul.f32 %v5172, %v5492
      %v5571 = vmul.f32 %v5174, %v5494
      %v5572 = vmul.f32 %v5176, %v5496
      %v5573 = vmul.f32 %v5178, %v5498
      %v5574 = vmul.f32 %v5180, %v5500
      %v5575 = vmul.f32 %v5182, %v5502
      %v5576 = vmul.f32 %v5184, %v5504
      %v5577 = vmul.f32 %v5186, %v5506
      %v5578 = vmul.f32 %v5188, %v5508
      %v5579 = vmul.f32 %v5190, %v5510
      %v5580 = vmul.f32 %v5192, %v5512
      %v5581 = vmul.f32 %v5194, %v5514
      %v5582 = vmul.f32 %v5196, %v5516
      %v5583 = vmul.f32 %v5198, %v5518
      %v5584 = vmul.f32 %v5200, %v5520
      %5617 = vrot.lane.b32.xlu0 %v5553, 32
      %v5618 = vpop.permute.xlu0 %5617
      %5619 = vrot.lane.b32.xlu0 %v5554, 32
      %v5620 = vpop.permute.xlu0 %5619
      %5621 = vrot.lane.b32.xlu0 %v5555, 32
      %v5622 = vpop.permute.xlu0 %5621
      %5623 = vrot.lane.b32.xlu0 %v5556, 32
      %v5624 = vpop.permute.xlu0 %5623
      %5625 = vrot.lane.b32.xlu0 %v5557, 32
      %v5626 = vpop.permute.xlu0 %5625
      %5627 = vrot.lane.b32.xlu0 %v5558, 32
      %v5628 = vpop.permute.xlu0 %5627
      %5629 = vrot.lane.b32.xlu0 %v5559, 32
      %v5630 = vpop.permute.xlu0 %5629
      %5631 = vrot.lane.b32.xlu0 %v5560, 32
      %v5632 = vpop.permute.xlu0 %5631
      %5633 = vrot.lane.b32.xlu0 %v5561, 32
      %v5634 = vpop.permute.xlu0 %5633
      %5635 = vrot.lane.b32.xlu0 %v5562, 32
      %v5636 = vpop.permute.xlu0 %5635
      %5637 = vrot.lane.b32.xlu0 %v5563, 32
      %v5638 = vpop.permute.xlu0 %5637
      %5639 = vrot.lane.b32.xlu0 %v5564, 32
      %v5640 = vpop.permute.xlu0 %5639
      %5641 = vrot.lane.b32.xlu0 %v5565, 32
      %v5642 = vpop.permute.xlu0 %5641
      %5643 = vrot.lane.b32.xlu0 %v5566, 32
      %v5644 = vpop.permute.xlu0 %5643
      %5645 = vrot.lane.b32.xlu0 %v5567, 32
      %v5646 = vpop.permute.xlu0 %5645
      %5647 = vrot.lane.b32.xlu0 %v5568, 32
      %v5648 = vpop.permute.xlu0 %5647
      %5649 = vrot.lane.b32.xlu0 %v5569, 32
      %v5650 = vpop.permute.xlu0 %5649
      %5651 = vrot.lane.b32.xlu0 %v5570, 32
      %v5652 = vpop.permute.xlu0 %5651
      %5653 = vrot.lane.b32.xlu0 %v5571, 32
      %v5654 = vpop.permute.xlu0 %5653
      %5655 = vrot.lane.b32.xlu0 %v5572, 32
      %v5656 = vpop.permute.xlu0 %5655
      %5657 = vrot.lane.b32.xlu0 %v5573, 32
      %v5658 = vpop.permute.xlu0 %5657
      %5659 = vrot.lane.b32.xlu0 %v5574, 32
      %v5660 = vpop.permute.xlu0 %5659
      %5661 = vrot.lane.b32.xlu0 %v5575, 32
      %v5662 = vpop.permute.xlu0 %5661
      %5663 = vrot.lane.b32.xlu0 %v5576, 32
      %v5664 = vpop.permute.xlu0 %5663
      %5665 = vrot.lane.b32.xlu0 %v5577, 32
      %v5666 = vpop.permute.xlu0 %5665
      %5667 = vrot.lane.b32.xlu0 %v5578, 32
      %v5668 = vpop.permute.xlu0 %5667
      %5669 = vrot.lane.b32.xlu0 %v5579, 32
      %v5670 = vpop.permute.xlu0 %5669
      %5671 = vrot.lane.b32.xlu0 %v5580, 32
      %v5672 = vpop.permute.xlu0 %5671
      %5673 = vrot.lane.b32.xlu0 %v5581, 32
      %v5674 = vpop.permute.xlu0 %5673
      %5675 = vrot.lane.b32.xlu0 %v5582, 32
      %v5676 = vpop.permute.xlu0 %5675
      %5677 = vrot.lane.b32.xlu0 %v5583, 32
      %v5678 = vpop.permute.xlu0 %5677
      %5679 = vrot.lane.b32.xlu0 %v5584, 32
      %v5680 = vpop.permute.xlu0 %5679
      %v5713 = vadd.f32 %v5393, %v5618
      %v5714 = vadd.f32 %v5394, %v5620
      %v5715 = vadd.f32 %v5395, %v5622
      %v5716 = vadd.f32 %v5396, %v5624
      %v5717 = vadd.f32 %v5397, %v5626
      %v5718 = vadd.f32 %v5398, %v5628
      %v5719 = vadd.f32 %v5399, %v5630
      %v5720 = vadd.f32 %v5400, %v5632
      %v5721 = vadd.f32 %v5401, %v5634
      %v5722 = vadd.f32 %v5402, %v5636
      %v5723 = vadd.f32 %v5403, %v5638
      %v5724 = vadd.f32 %v5404, %v5640
      %v5725 = vadd.f32 %v5405, %v5642
      %v5726 = vadd.f32 %v5406, %v5644
      %v5727 = vadd.f32 %v5407, %v5646
      %v5728 = vadd.f32 %v5408, %v5648
      %v5729 = vadd.f32 %v5409, %v5650
      %v5730 = vadd.f32 %v5410, %v5652
      %v5731 = vadd.f32 %v5411, %v5654
      %v5732 = vadd.f32 %v5412, %v5656
      %v5733 = vadd.f32 %v5413, %v5658
      %v5734 = vadd.f32 %v5414, %v5660
      %v5735 = vadd.f32 %v5415, %v5662
      %v5736 = vadd.f32 %v5416, %v5664
      %v5737 = vadd.f32 %v5417, %v5666
      %v5738 = vadd.f32 %v5418, %v5668
      %v5739 = vadd.f32 %v5419, %v5670
      %v5740 = vadd.f32 %v5420, %v5672
      %v5741 = vadd.f32 %v5421, %v5674
      %v5742 = vadd.f32 %v5422, %v5676
      %v5743 = vadd.f32 %v5423, %v5678
      %v5744 = vadd.f32 %v5424, %v5680
      %v5745 = vtanh.pop %v5713
      %v5746 = vtanh.pop %v5714
      %v5747 = vtanh.pop %v5715
      %v5748 = vtanh.pop %v5716
      %v5749 = vtanh.pop %v5717
      %v5750 = vtanh.pop %v5718
      %v5751 = vtanh.pop %v5719
      %v5752 = vtanh.pop %v5720
      %v5753 = vtanh.pop %v5721
      %v5754 = vtanh.pop %v5722
      %v5755 = vtanh.pop %v5723
      %v5756 = vtanh.pop %v5724
      %v5757 = vtanh.pop %v5725
      %v5758 = vtanh.pop %v5726
      %v5759 = vtanh.pop %v5727
      %v5760 = vtanh.pop %v5728
      %v5761 = vtanh.pop %v5729
      %v5762 = vtanh.pop %v5730
      %v5763 = vtanh.pop %v5731
      %v5764 = vtanh.pop %v5732
      %v5765 = vtanh.pop %v5733
      %v5766 = vtanh.pop %v5734
      %v5767 = vtanh.pop %v5735
      %v5768 = vtanh.pop %v5736
      %v5769 = vtanh.pop %v5737
      %v5770 = vtanh.pop %v5738
      %v5771 = vtanh.pop %v5739
      %v5772 = vtanh.pop %v5740
      %v5773 = vtanh.pop %v5741
      %v5774 = vtanh.pop %v5742
      %v5775 = vtanh.pop %v5743
      %v5776 = vtanh.pop %v5744
      %5809 = vrot.lane.b32.xlu0 %v5745, 32
      %v5810 = vpop.permute.xlu0 %5809
      %5811 = vrot.lane.b32.xlu0 %v5746, 32
      %v5812 = vpop.permute.xlu0 %5811
      %5813 = vrot.lane.b32.xlu0 %v5747, 32
      %v5814 = vpop.permute.xlu0 %5813
      %5815 = vrot.lane.b32.xlu0 %v5748, 32
      %v5816 = vpop.permute.xlu0 %5815
      %5817 = vrot.lane.b32.xlu0 %v5749, 32
      %v5818 = vpop.permute.xlu0 %5817
      %5819 = vrot.lane.b32.xlu0 %v5750, 32
      %v5820 = vpop.permute.xlu0 %5819
      %5821 = vrot.lane.b32.xlu0 %v5751, 32
      %v5822 = vpop.permute.xlu0 %5821
      %5823 = vrot.lane.b32.xlu0 %v5752, 32
      %v5824 = vpop.permute.xlu0 %5823
      %5825 = vrot.lane.b32.xlu0 %v5753, 32
      %v5826 = vpop.permute.xlu0 %5825
      %5827 = vrot.lane.b32.xlu0 %v5754, 32
      %v5828 = vpop.permute.xlu0 %5827
      %5829 = vrot.lane.b32.xlu0 %v5755, 32
      %v5830 = vpop.permute.xlu0 %5829
      %5831 = vrot.lane.b32.xlu0 %v5756, 32
      %v5832 = vpop.permute.xlu0 %5831
      %5833 = vrot.lane.b32.xlu0 %v5757, 32
      %v5834 = vpop.permute.xlu0 %5833
      %5835 = vrot.lane.b32.xlu0 %v5758, 32
      %v5836 = vpop.permute.xlu0 %5835
      %5837 = vrot.lane.b32.xlu0 %v5759, 32
      %v5838 = vpop.permute.xlu0 %5837
      %5839 = vrot.lane.b32.xlu0 %v5760, 32
      %v5840 = vpop.permute.xlu0 %5839
      %5841 = vrot.lane.b32.xlu0 %v5761, 32
      %v5842 = vpop.permute.xlu0 %5841
      %5843 = vrot.lane.b32.xlu0 %v5762, 32
      %v5844 = vpop.permute.xlu0 %5843
      %5845 = vrot.lane.b32.xlu0 %v5763, 32
      %v5846 = vpop.permute.xlu0 %5845
      %5847 = vrot.lane.b32.xlu0 %v5764, 32
      %v5848 = vpop.permute.xlu0 %5847
      %5849 = vrot.lane.b32.xlu0 %v5765, 32
      %v5850 = vpop.permute.xlu0 %5849
      %5851 = vrot.lane.b32.xlu0 %v5766, 32
      %v5852 = vpop.permute.xlu0 %5851
      %5853 = vrot.lane.b32.xlu0 %v5767, 32
      %v5854 = vpop.permute.xlu0 %5853
      %5855 = vrot.lane.b32.xlu0 %v5768, 32
      %v5856 = vpop.permute.xlu0 %5855
      %5857 = vrot.lane.b32.xlu0 %v5769, 32
      %v5858 = vpop.permute.xlu0 %5857
      %5859 = vrot.lane.b32.xlu0 %v5770, 32
      %v5860 = vpop.permute.xlu0 %5859
      %5861 = vrot.lane.b32.xlu0 %v5771, 32
      %v5862 = vpop.permute.xlu0 %5861
      %5863 = vrot.lane.b32.xlu0 %v5772, 32
      %v5864 = vpop.permute.xlu0 %5863
      %5865 = vrot.lane.b32.xlu0 %v5773, 32
      %v5866 = vpop.permute.xlu0 %5865
      %5867 = vrot.lane.b32.xlu0 %v5774, 32
      %v5868 = vpop.permute.xlu0 %5867
      %5869 = vrot.lane.b32.xlu0 %v5775, 32
      %v5870 = vpop.permute.xlu0 %5869
      %5871 = vrot.lane.b32.xlu0 %v5776, 32
      %v5872 = vpop.permute.xlu0 %5871
      %v5905 = vmul.f32 %v5138, %v5810
      %v5906 = vmul.f32 %v5140, %v5812
      %v5907 = vmul.f32 %v5142, %v5814
      %v5908 = vmul.f32 %v5144, %v5816
      %v5909 = vmul.f32 %v5146, %v5818
      %v5910 = vmul.f32 %v5148, %v5820
      %v5911 = vmul.f32 %v5150, %v5822
      %v5912 = vmul.f32 %v5152, %v5824
      %v5913 = vmul.f32 %v5154, %v5826
      %v5914 = vmul.f32 %v5156, %v5828
      %v5915 = vmul.f32 %v5158, %v5830
      %v5916 = vmul.f32 %v5160, %v5832
      %v5917 = vmul.f32 %v5162, %v5834
      %v5918 = vmul.f32 %v5164, %v5836
      %v5919 = vmul.f32 %v5166, %v5838
      %v5920 = vmul.f32 %v5168, %v5840
      %v5921 = vmul.f32 %v5170, %v5842
      %v5922 = vmul.f32 %v5172, %v5844
      %v5923 = vmul.f32 %v5174, %v5846
      %v5924 = vmul.f32 %v5176, %v5848
      %v5925 = vmul.f32 %v5178, %v5850
      %v5926 = vmul.f32 %v5180, %v5852
      %v5927 = vmul.f32 %v5182, %v5854
      %v5928 = vmul.f32 %v5184, %v5856
      %v5929 = vmul.f32 %v5186, %v5858
      %v5930 = vmul.f32 %v5188, %v5860
      %v5931 = vmul.f32 %v5190, %v5862
      %v5932 = vmul.f32 %v5192, %v5864
      %v5933 = vmul.f32 %v5194, %v5866
      %v5934 = vmul.f32 %v5196, %v5868
      %v5935 = vmul.f32 %v5198, %v5870
      %v5936 = vmul.f32 %v5200, %v5872
      %v5937 = vpack.c.bf16 %v5906, %v5905
      %v5938 = vpack.c.bf16 %v5908, %v5907
      %v5939 = vpack.c.bf16 %v5910, %v5909
      %v5940 = vpack.c.bf16 %v5912, %v5911
      %v5941 = vpack.c.bf16 %v5914, %v5913
      %v5942 = vpack.c.bf16 %v5916, %v5915
      %v5943 = vpack.c.bf16 %v5918, %v5917
      %v5944 = vpack.c.bf16 %v5920, %v5919
      %v5945 = vpack.c.bf16 %v5922, %v5921
      %v5946 = vpack.c.bf16 %v5924, %v5923
      %v5947 = vpack.c.bf16 %v5926, %v5925
      %v5948 = vpack.c.bf16 %v5928, %v5927
      %v5949 = vpack.c.bf16 %v5930, %v5929
      %v5950 = vpack.c.bf16 %v5932, %v5931
      %v5951 = vpack.c.bf16 %v5934, %v5933
      %v5952 = vpack.c.bf16 %v5936, %v5935
      %v5969 = vunpack.c.l.b16 %v5937
      %v5970 = vunpack.c.h.b16 %v5937
      %v5971 = vunpack.c.l.b16 %v5938
      %v5972 = vunpack.c.h.b16 %v5938
      %v5973 = vunpack.c.l.b16 %v5939
      %v5974 = vunpack.c.h.b16 %v5939
      %v5975 = vunpack.c.l.b16 %v5940
      %v5976 = vunpack.c.h.b16 %v5940
      %v5977 = vunpack.c.l.b16 %v5941
      %v5978 = vunpack.c.h.b16 %v5941
      %v5979 = vunpack.c.l.b16 %v5942
      %v5980 = vunpack.c.h.b16 %v5942
      %v5981 = vunpack.c.l.b16 %v5943
      %v5982 = vunpack.c.h.b16 %v5943
      %v5983 = vunpack.c.l.b16 %v5944
      %v5984 = vunpack.c.h.b16 %v5944
      %v5985 = vunpack.c.l.b16 %v5945
      %v5986 = vunpack.c.h.b16 %v5945
      %v5987 = vunpack.c.l.b16 %v5946
      %v5988 = vunpack.c.h.b16 %v5946
      %v5989 = vunpack.c.l.b16 %v5947
      %v5990 = vunpack.c.h.b16 %v5947
      %v5991 = vunpack.c.l.b16 %v5948
      %v5992 = vunpack.c.h.b16 %v5948
      %v5993 = vunpack.c.l.b16 %v5949
      %v5994 = vunpack.c.h.b16 %v5949
      %v5995 = vunpack.c.l.b16 %v5950
      %v5996 = vunpack.c.h.b16 %v5950
      %v5997 = vunpack.c.l.b16 %v5951
      %v5998 = vunpack.c.h.b16 %v5951
      %v5999 = vunpack.c.l.b16 %v5952
      %v6000 = vunpack.c.h.b16 %v5952
      %v6001 = vpack.c.b16 %v5969, %v5969
      %v6002 = vpack.c.b16 %v5970, %v5970
      %v6003 = vpack.c.b16 %v5971, %v5971
      %v6004 = vpack.c.b16 %v5972, %v5972
      %v6005 = vpack.c.b16 %v5973, %v5973
      %v6006 = vpack.c.b16 %v5974, %v5974
      %v6007 = vpack.c.b16 %v5975, %v5975
      %v6008 = vpack.c.b16 %v5976, %v5976
      %v6009 = vpack.c.b16 %v5977, %v5977
      %v6010 = vpack.c.b16 %v5978, %v5978
      %v6011 = vpack.c.b16 %v5979, %v5979
      %v6012 = vpack.c.b16 %v5980, %v5980
      %v6013 = vpack.c.b16 %v5981, %v5981
      %v6014 = vpack.c.b16 %v5982, %v5982
      %v6015 = vpack.c.b16 %v5983, %v5983
      %v6016 = vpack.c.b16 %v5984, %v5984
      %v6017 = vpack.c.b16 %v5985, %v5985
      %v6018 = vpack.c.b16 %v5986, %v5986
      %v6019 = vpack.c.b16 %v5987, %v5987
      %v6020 = vpack.c.b16 %v5988, %v5988
      %v6021 = vpack.c.b16 %v5989, %v5989
      %v6022 = vpack.c.b16 %v5990, %v5990
      %v6023 = vpack.c.b16 %v5991, %v5991
      %v6024 = vpack.c.b16 %v5992, %v5992
      %v6025 = vpack.c.b16 %v5993, %v5993
      %v6026 = vpack.c.b16 %v5994, %v5994
      %v6027 = vpack.c.b16 %v5995, %v5995
      %v6028 = vpack.c.b16 %v5996, %v5996
      %v6029 = vpack.c.b16 %v5997, %v5997
      %v6030 = vpack.c.b16 %v5998, %v5998
      %v6031 = vpack.c.b16 %v5999, %v5999
      %v6032 = vpack.c.b16 %v6000, %v6000
      %6033 = vrot.lane.b32.xlu0 %v6001, 64
      %v6034 = vpop.permute.xlu0 %6033
      %6035 = vrot.lane.b32.xlu0 %v6002, 64
      %v6036 = vpop.permute.xlu0 %6035
      %6037 = vrot.lane.b32.xlu0 %v6003, 64
      %v6038 = vpop.permute.xlu0 %6037
      %6039 = vrot.lane.b32.xlu0 %v6004, 64
      %v6040 = vpop.permute.xlu0 %6039
      %6041 = vrot.lane.b32.xlu0 %v6005, 64
      %v6042 = vpop.permute.xlu0 %6041
      %6043 = vrot.lane.b32.xlu0 %v6006, 64
      %v6044 = vpop.permute.xlu0 %6043
      %6045 = vrot.lane.b32.xlu0 %v6007, 64
      %v6046 = vpop.permute.xlu0 %6045
      %6047 = vrot.lane.b32.xlu0 %v6008, 64
      %v6048 = vpop.permute.xlu0 %6047
      %6049 = vrot.lane.b32.xlu0 %v6009, 64
      %v6050 = vpop.permute.xlu0 %6049
      %6051 = vrot.lane.b32.xlu0 %v6010, 64
      %v6052 = vpop.permute.xlu0 %6051
      %6053 = vrot.lane.b32.xlu0 %v6011, 64
      %v6054 = vpop.permute.xlu0 %6053
      %6055 = vrot.lane.b32.xlu0 %v6012, 64
      %v6056 = vpop.permute.xlu0 %6055
      %6057 = vrot.lane.b32.xlu0 %v6013, 64
      %v6058 = vpop.permute.xlu0 %6057
      %6059 = vrot.lane.b32.xlu0 %v6014, 64
      %v6060 = vpop.permute.xlu0 %6059
      %6061 = vrot.lane.b32.xlu0 %v6015, 64
      %v6062 = vpop.permute.xlu0 %6061
      %6063 = vrot.lane.b32.xlu0 %v6016, 64
      %v6064 = vpop.permute.xlu0 %6063
      %6065 = vrot.lane.b32.xlu0 %v6017, 64
      %v6066 = vpop.permute.xlu0 %6065
      %6067 = vrot.lane.b32.xlu0 %v6018, 64
      %v6068 = vpop.permute.xlu0 %6067
      %6069 = vrot.lane.b32.xlu0 %v6019, 64
      %v6070 = vpop.permute.xlu0 %6069
      %6071 = vrot.lane.b32.xlu0 %v6020, 64
      %v6072 = vpop.permute.xlu0 %6071
      %6073 = vrot.lane.b32.xlu0 %v6021, 64
      %v6074 = vpop.permute.xlu0 %6073
      %6075 = vrot.lane.b32.xlu0 %v6022, 64
      %v6076 = vpop.permute.xlu0 %6075
      %6077 = vrot.lane.b32.xlu0 %v6023, 64
      %v6078 = vpop.permute.xlu0 %6077
      %6079 = vrot.lane.b32.xlu0 %v6024, 64
      %v6080 = vpop.permute.xlu0 %6079
      %6081 = vrot.lane.b32.xlu0 %v6025, 64
      %v6082 = vpop.permute.xlu0 %6081
      %6083 = vrot.lane.b32.xlu0 %v6026, 64
      %v6084 = vpop.permute.xlu0 %6083
      %6085 = vrot.lane.b32.xlu0 %v6027, 64
      %v6086 = vpop.permute.xlu0 %6085
      %6087 = vrot.lane.b32.xlu0 %v6028, 64
      %v6088 = vpop.permute.xlu0 %6087
      %6089 = vrot.lane.b32.xlu0 %v6029, 64
      %v6090 = vpop.permute.xlu0 %6089
      %6091 = vrot.lane.b32.xlu0 %v6030, 64
      %v6092 = vpop.permute.xlu0 %6091
      %6093 = vrot.lane.b32.xlu0 %v6031, 64
      %v6094 = vpop.permute.xlu0 %6093
      %6095 = vrot.lane.b32.xlu0 %v6032, 64
      %v6096 = vpop.permute.xlu0 %6095
      %vm6129 = vcmask 257024
      %6130 = vst.msk [vmem:[%s343] sm:$0xf] %vm6129, %v6034
      %6131 = vst.msk [vmem:[%s343 + $0x4] sm:$0xf] %vm6129, %v6036
      %6132 = vst.msk [vmem:[%s343 + $0x8] sm:$0xf] %vm6129, %v6038
      %6133 = vst.msk [vmem:[%s343 + $0xc] sm:$0xf] %vm6129, %v6040
      %6134 = vst.msk [vmem:[%s343 + $0x10] sm:$0xf] %vm6129, %v6042
      %6135 = vst.msk [vmem:[%s343 + $0x14] sm:$0xf] %vm6129, %v6044
      %6136 = vst.msk [vmem:[%s343 + $0x18] sm:$0xf] %vm6129, %v6046
      %6137 = vst.msk [vmem:[%s343 + $0x1c] sm:$0xf] %vm6129, %v6048
      %6138 = vst.msk [vmem:[%s343 + $0x20] sm:$0xf] %vm6129, %v6050
      %6139 = vst.msk [vmem:[%s343 + $0x24] sm:$0xf] %vm6129, %v6052
      %6140 = vst.msk [vmem:[%s343 + $0x28] sm:$0xf] %vm6129, %v6054
      %6141 = vst.msk [vmem:[%s343 + $0x2c] sm:$0xf] %vm6129, %v6056
      %6142 = vst.msk [vmem:[%s343 + $0x30] sm:$0xf] %vm6129, %v6058
      %6143 = vst.msk [vmem:[%s343 + $0x34] sm:$0xf] %vm6129, %v6060
      %6144 = vst.msk [vmem:[%s343 + $0x38] sm:$0xf] %vm6129, %v6062
      %6145 = vst.msk [vmem:[%s343 + $0x3c] sm:$0xf] %vm6129, %v6064
      %6146 = vst.msk [vmem:[%s343 + $0x40] sm:$0xf] %vm6129, %v6066
      %6147 = vst.msk [vmem:[%s343 + $0x44] sm:$0xf] %vm6129, %v6068
      %6148 = vst.msk [vmem:[%s343 + $0x48] sm:$0xf] %vm6129, %v6070
      %6149 = vst.msk [vmem:[%s343 + $0x4c] sm:$0xf] %vm6129, %v6072
      %6150 = vst.msk [vmem:[%s343 + $0x50] sm:$0xf] %vm6129, %v6074
      %6151 = vst.msk [vmem:[%s343 + $0x54] sm:$0xf] %vm6129, %v6076
      %6152 = vst.msk [vmem:[%s343 + $0x58] sm:$0xf] %vm6129, %v6078
      %6153 = vst.msk [vmem:[%s343 + $0x5c] sm:$0xf] %vm6129, %v6080
      %6154 = vst.msk [vmem:[%s343 + $0x60] sm:$0xf] %vm6129, %v6082
      %6155 = vst.msk [vmem:[%s343 + $0x64] sm:$0xf] %vm6129, %v6084
      %6156 = vst.msk [vmem:[%s343 + $0x68] sm:$0xf] %vm6129, %v6086
      %6157 = vst.msk [vmem:[%s343 + $0x6c] sm:$0xf] %vm6129, %v6088
      %6158 = vst.msk [vmem:[%s343 + $0x70] sm:$0xf] %vm6129, %v6090
      %6159 = vst.msk [vmem:[%s343 + $0x74] sm:$0xf] %vm6129, %v6092
      %6160 = vst.msk [vmem:[%s343 + $0x78] sm:$0xf] %vm6129, %v6094
      %6161 = vst.msk [vmem:[%s343 + $0x7c] sm:$0xf] %vm6129, %v6096
      %6194 = vrot.lane.b32.xlu0 %v5713, 96
      %v6195 = vpop.permute.xlu0 %6194
      %6196 = vrot.lane.b32.xlu0 %v5714, 96
      %v6197 = vpop.permute.xlu0 %6196
      %6198 = vrot.lane.b32.xlu0 %v5715, 96
      %v6199 = vpop.permute.xlu0 %6198
      %6200 = vrot.lane.b32.xlu0 %v5716, 96
      %v6201 = vpop.permute.xlu0 %6200
      %6202 = vrot.lane.b32.xlu0 %v5717, 96
      %v6203 = vpop.permute.xlu0 %6202
      %6204 = vrot.lane.b32.xlu0 %v5718, 96
      %v6205 = vpop.permute.xlu0 %6204
      %6206 = vrot.lane.b32.xlu0 %v5719, 96
      %v6207 = vpop.permute.xlu0 %6206
      %6208 = vrot.lane.b32.xlu0 %v5720, 96
      %v6209 = vpop.permute.xlu0 %6208
      %6210 = vrot.lane.b32.xlu0 %v5721, 96
      %v6211 = vpop.permute.xlu0 %6210
      %6212 = vrot.lane.b32.xlu0 %v5722, 96
      %v6213 = vpop.permute.xlu0 %6212
      %6214 = vrot.lane.b32.xlu0 %v5723, 96
      %v6215 = vpop.permute.xlu0 %6214
      %6216 = vrot.lane.b32.xlu0 %v5724, 96
      %v6217 = vpop.permute.xlu0 %6216
      %6218 = vrot.lane.b32.xlu0 %v5725, 96
      %v6219 = vpop.permute.xlu0 %6218
      %6220 = vrot.lane.b32.xlu0 %v5726, 96
      %v6221 = vpop.permute.xlu0 %6220
      %6222 = vrot.lane.b32.xlu0 %v5727, 96
      %v6223 = vpop.permute.xlu0 %6222
      %6224 = vrot.lane.b32.xlu0 %v5728, 96
      %v6225 = vpop.permute.xlu0 %6224
      %6226 = vrot.lane.b32.xlu0 %v5729, 96
      %v6227 = vpop.permute.xlu0 %6226
      %6228 = vrot.lane.b32.xlu0 %v5730, 96
      %v6229 = vpop.permute.xlu0 %6228
      %6230 = vrot.lane.b32.xlu0 %v5731, 96
      %v6231 = vpop.permute.xlu0 %6230
      %6232 = vrot.lane.b32.xlu0 %v5732, 96
      %v6233 = vpop.permute.xlu0 %6232
      %6234 = vrot.lane.b32.xlu0 %v5733, 96
      %v6235 = vpop.permute.xlu0 %6234
      %6236 = vrot.lane.b32.xlu0 %v5734, 96
      %v6237 = vpop.permute.xlu0 %6236
      %6238 = vrot.lane.b32.xlu0 %v5735, 96
      %v6239 = vpop.permute.xlu0 %6238
      %6240 = vrot.lane.b32.xlu0 %v5736, 96
      %v6241 = vpop.permute.xlu0 %6240
      %6242 = vrot.lane.b32.xlu0 %v5737, 96
      %v6243 = vpop.permute.xlu0 %6242
      %6244 = vrot.lane.b32.xlu0 %v5738, 96
      %v6245 = vpop.permute.xlu0 %6244
      %6246 = vrot.lane.b32.xlu0 %v5739, 96
      %v6247 = vpop.permute.xlu0 %6246
      %6248 = vrot.lane.b32.xlu0 %v5740, 96
      %v6249 = vpop.permute.xlu0 %6248
      %6250 = vrot.lane.b32.xlu0 %v5741, 96
      %v6251 = vpop.permute.xlu0 %6250
      %6252 = vrot.lane.b32.xlu0 %v5742, 96
      %v6253 = vpop.permute.xlu0 %6252
      %6254 = vrot.lane.b32.xlu0 %v5743, 96
      %v6255 = vpop.permute.xlu0 %6254
      %6256 = vrot.lane.b32.xlu0 %v5744, 96
      %v6257 = vpop.permute.xlu0 %6256
      %6290 = vst.msk [vmem:[%s353] sm:$0xff] %vm3990, %v6195
      %6291 = vst.msk [vmem:[%s353 + $0x8] sm:$0xff] %vm3990, %v6197
      %6292 = vst.msk [vmem:[%s353 + $0x10] sm:$0xff] %vm3990, %v6199
      %6293 = vst.msk [vmem:[%s353 + $0x18] sm:$0xff] %vm3990, %v6201
      %6294 = vst.msk [vmem:[%s353 + $0x20] sm:$0xff] %vm3990, %v6203
      %6295 = vst.msk [vmem:[%s353 + $0x28] sm:$0xff] %vm3990, %v6205
      %6296 = vst.msk [vmem:[%s353 + $0x30] sm:$0xff] %vm3990, %v6207
      %6297 = vst.msk [vmem:[%s353 + $0x38] sm:$0xff] %vm3990, %v6209
      %6298 = vst.msk [vmem:[%s353 + $0x40] sm:$0xff] %vm3990, %v6211
      %6299 = vst.msk [vmem:[%s353 + $0x48] sm:$0xff] %vm3990, %v6213
      %6300 = vst.msk [vmem:[%s353 + $0x50] sm:$0xff] %vm3990, %v6215
      %6301 = vst.msk [vmem:[%s353 + $0x58] sm:$0xff] %vm3990, %v6217
      %6302 = vst.msk [vmem:[%s353 + $0x60] sm:$0xff] %vm3990, %v6219
      %6303 = vst.msk [vmem:[%s353 + $0x68] sm:$0xff] %vm3990, %v6221
      %6304 = vst.msk [vmem:[%s353 + $0x70] sm:$0xff] %vm3990, %v6223
      %6305 = vst.msk [vmem:[%s353 + $0x78] sm:$0xff] %vm3990, %v6225
      %6306 = vst.msk [vmem:[%s353 + $0x80] sm:$0xff] %vm3990, %v6227
      %6307 = vst.msk [vmem:[%s353 + $0x88] sm:$0xff] %vm3990, %v6229
      %6308 = vst.msk [vmem:[%s353 + $0x90] sm:$0xff] %vm3990, %v6231
      %6309 = vst.msk [vmem:[%s353 + $0x98] sm:$0xff] %vm3990, %v6233
      %6310 = vst.msk [vmem:[%s353 + $0xa0] sm:$0xff] %vm3990, %v6235
      %6311 = vst.msk [vmem:[%s353 + $0xa8] sm:$0xff] %vm3990, %v6237
      %6312 = vst.msk [vmem:[%s353 + $0xb0] sm:$0xff] %vm3990, %v6239
      %6313 = vst.msk [vmem:[%s353 + $0xb8] sm:$0xff] %vm3990, %v6241
      %6314 = vst.msk [vmem:[%s353 + $0xc0] sm:$0xff] %vm3990, %v6243
      %6315 = vst.msk [vmem:[%s353 + $0xc8] sm:$0xff] %vm3990, %v6245
      %6316 = vst.msk [vmem:[%s353 + $0xd0] sm:$0xff] %vm3990, %v6247
      %6317 = vst.msk [vmem:[%s353 + $0xd8] sm:$0xff] %vm3990, %v6249
      %6318 = vst.msk [vmem:[%s353 + $0xe0] sm:$0xff] %vm3990, %v6251
      %6319 = vst.msk [vmem:[%s353 + $0xe8] sm:$0xff] %vm3990, %v6253
      %6320 = vst.msk [vmem:[%s353 + $0xf0] sm:$0xff] %vm3990, %v6255
      %6321 = vst.msk [vmem:[%s353 + $0xf8] sm:$0xff] %vm3990, %v6257
      %s6322 = smul.u32 32, %s23
      %p6323 = scmp.lt.s32.totalorder %s22, 1
      %s6324 = scalar_select %p6323, %s22, 1
      %p6325 = scmp.lt.s32.totalorder %s6322, 31
      %s6326 = scalar_select %p6325, %s6322, 31
      %s6327 = smul.addr %s6324, 32
      %s6328 = sadd.s32 %s6326, %s6327
      %s6329 = smul.addr %s6328, 4
      %s6330 = scalar_lea.vmem %s5, %s6329
      %s6331 = smul.u32 32, %s23
      %p6332 = scmp.lt.s32.totalorder %s22, 1
      %s6333 = scalar_select %p6332, %s22, 1
      %p6334 = scmp.lt.s32.totalorder %s6331, 31
      %s6335 = scalar_select %p6334, %s6331, 31
      %s6336 = smul.addr %s6333, 32
      %s6337 = sadd.s32 %s6335, %s6336
      %s6338 = smul.addr %s6337, 8
      %s6339 = scalar_lea.vmem %s6, %s6338
      // Predicated region
      $region45: #{tpu_custom_call.1} parent=39 // pred_check
        %p6340 = pneg %p172
      $region46: #{tpu_custom_call.1} parent=39 // pred_check_branch
        %6342 = sbr.rel (%p6340) target = $region48
      $region47: #{tpu_custom_call.1} parent=39 // pred_region
        %s6343 = smul.u32 32, %s23
      $region48: #{tpu_custom_call.1} parent=39 // pred_fallthru
        _
      // Predicated region
      $region49: #{tpu_custom_call.1} parent=39 // pred_check
        %p6344 = pneg %p200
      $region50: #{tpu_custom_call.1} parent=39 // pred_check_branch
        %6346 = sbr.rel (%p6344) target = $region52
      $region51: #{tpu_custom_call.1} parent=39 // pred_region
        %s6347 = smul.u32 32, %s23
      $region52: #{tpu_custom_call.1} parent=39 // pred_fallthru
        _
    $region40: #{tpu_custom_call.1} parent=5 // pred_fallthru
      _
    %p6348 = scmp.le.s32.totalorder 2, %s13
    // Predicated region
    $region53: #{tpu_custom_call.1} parent=5 // pred_check
      %p6349 = pneg %p6348
    $region54: #{tpu_custom_call.1} parent=5 // pred_check_branch
      %6351 = sbr.rel (%p6349) target = $region56
    $region55: #{tpu_custom_call.1} parent=5 // pred_region
      %s6352 = ssub.s32 %s13, 2
      // Predicated region
      $region57: #{tpu_custom_call.1} parent=55 // pred_check
        %p6353 = pneg %p178
      $region58: #{tpu_custom_call.1} parent=55 // pred_check_branch
        %6355 = sbr.rel (%p6353) target = $region60
      $region59: #{tpu_custom_call.1} parent=55 // pred_region
        %s6356 = smul.u32 32, %s25
        %p6357 = scmp.lt.s32.totalorder %s24, 1
        %s6358 = scalar_select %p6357, %s24, 1
        %p6359 = scmp.lt.s32.totalorder %s6356, 31
        %s6360 = scalar_select %p6359, %s6356, 31
        %s6361 = smul.addr %s6358, 32
        %s6362 = sadd.s32 %s6360, %s6361
        %s6363 = smul.addr %s6362, 4
        %s6364 = scalar_lea.vmem %s5, %s6363
      $region60: #{tpu_custom_call.1} parent=55 // pred_fallthru
        _
      // Predicated region
      $region61: #{tpu_custom_call.1} parent=55 // pred_check
        %p6365 = pneg %p206
      $region62: #{tpu_custom_call.1} parent=55 // pred_check_branch
        %6367 = sbr.rel (%p6365) target = $region64
      $region63: #{tpu_custom_call.1} parent=55 // pred_region
        %s6368 = smul.u32 32, %s25
        %p6369 = scmp.lt.s32.totalorder %s24, 1
        %s6370 = scalar_select %p6369, %s24, 1
        %p6371 = scmp.lt.s32.totalorder %s6368, 31
        %s6372 = scalar_select %p6371, %s6368, 31
        %s6373 = smul.addr %s6370, 32
        %s6374 = sadd.s32 %s6372, %s6373
        %s6375 = smul.addr %s6374, 8
        %s6376 = scalar_lea.vmem %s6, %s6375
      $region64: #{tpu_custom_call.1} parent=55 // pred_fallthru
        _
    $region56: #{tpu_custom_call.1} parent=5 // pred_fallthru
      _
  $region6: #{tpu_custom_call.1} parent=0 // loop_footer
    %s17 = sadd.s32 1, %s13
  $region7: #{tpu_custom_call.1} parent=0 // loop_footer_branch
    %12 = sbr.rel target = $region3
  $region8: #{tpu_custom_call.1} parent=0 // loop_exit
    _

</llo_original>
